<compile_context>
chip_gen: v6e
topology: v6e:2x2x1
jax: 0.10.0
libtpu: 0.0.40
codegen_flags: <defaults>
</compile_context>

<pallas_src>
import functools

import jax
import jax.numpy as jnp
from jax.experimental import pallas as pl
from jax.experimental.pallas import tpu as pltpu

BN_EPS = 1e-5
LEAKY_SLOPE = 0.2


# ---------------------------------------------------------------------------
# Kernels
# ---------------------------------------------------------------------------
def _mm_bias_act_kernel(pat_ref, w_ref, b_ref, out_ref, acc_ref, *, use_act):
    """Tiled matmul + bias (+ LeakyReLU).  grid = (M tiles, K tiles)."""
    k = pl.program_id(1)

    @pl.when(k == 0)
    def _():
        acc_ref[...] = jnp.zeros_like(acc_ref)

    acc_ref[...] += jnp.dot(pat_ref[...], w_ref[...],
                            preferred_element_type=jnp.float32)

    @pl.when(k == pl.num_programs(1) - 1)
    def _():
        z = acc_ref[...] + b_ref[...]
        if use_act:
            z = jnp.maximum(z, LEAKY_SLOPE * z)        # LeakyReLU(0.2)
        out_ref[...] = z.astype(out_ref.dtype)


def _mm_stats_kernel(pat_ref, w_ref, z_ref, stats_ref, acc_ref):
    """Tiled matmul (no bias: cancelled by BN) + per-M-tile channel stats."""
    k = pl.program_id(1)

    @pl.when(k == 0)
    def _():
        acc_ref[...] = jnp.zeros_like(acc_ref)

    acc_ref[...] += jnp.dot(pat_ref[...], w_ref[...],
                            preferred_element_type=jnp.float32)

    @pl.when(k == pl.num_programs(1) - 1)
    def _():
        z = acc_ref[...]
        z_ref[...] = z
        s = jnp.sum(z, axis=0, keepdims=True)          # [1, N]
        ss = jnp.sum(z * z, axis=0, keepdims=True)     # [1, N]
        stats_ref[...] = jnp.concatenate([s, ss], axis=0)[None, :, :]


def _bn_act_kernel(z_ref, stats_ref, gamma_ref, beta_ref, *rest,
                   inv_m, fuse_final):
    """Finalize BN stats, normalize + affine + LeakyReLU (+ fused final 1x1)."""
    if fuse_final:
        wf_ref, bf_ref, out_ref = rest
    else:
        (out_ref,) = rest

    tot = jnp.sum(stats_ref[...], axis=0)              # [2, N]
    mean = tot[0:1, :] * inv_m                         # [1, N]
    var = tot[1:2, :] * inv_m - mean * mean            # biased (training) var
    inv = jax.lax.rsqrt(var + BN_EPS)
    scale = gamma_ref[...] * inv                       # [1, N]
    shift = beta_ref[...] - mean * scale               # [1, N]

    y = z_ref[...] * scale + shift
    y = jnp.maximum(y, LEAKY_SLOPE * y)                # LeakyReLU(0.2)

    if fuse_final:
        out_ref[...] = (jnp.dot(y.astype(jnp.bfloat16), wf_ref[...],
                                preferred_element_type=jnp.float32)
                        + bf_ref[...])
    else:
        out_ref[...] = y.astype(out_ref.dtype)


# ---------------------------------------------------------------------------
# Host-side glue (layout / tiling helpers)
# ---------------------------------------------------------------------------
def _pick_tile(dim, max_tile, align):
    """Largest tile <= max_tile that divides dim and is a multiple of align;
    falls back to the full dim (always a legal block shape)."""
    if dim <= max_tile:
        return dim
    t = (max_tile // align) * align
    while t >= align:
        if dim % t == 0:
            return t
        t -= align
    return dim


def _im2col_nhwc(x_nhwc, kh, kw, stride, pad):
    """[B,H,W,C] -> bf16 patch matrix [B*OH*OW, kh*kw*C] (C fastest)."""
    x = x_nhwc.astype(jnp.bfloat16)
    B, H, W, C = x.shape
    xp = jnp.pad(x, ((0, 0), (pad, pad), (pad, pad), (0, 0)))
    OH = (H + 2 * pad - kh) // stride + 1
    OW = (W + 2 * pad - kw) // stride + 1
    taps = []
    for i in range(kh):
        for j in range(kw):
            taps.append(xp[:, i:i + stride * OH:stride,
                           j:j + stride * OW:stride, :])
    pat = jnp.stack(taps, axis=3)                      # [B,OH,OW,kh*kw,C]
    pat = pat.reshape(B * OH * OW, kh * kw * C)
    return pat, OH, OW


def _weight_matrix(w):
    """PyTorch [Cout,Cin,kh,kw] -> bf16 [kh*kw*Cin, Cout], matching im2col."""
    cout, cin, kh, kw = w.shape
    return jnp.transpose(w, (2, 3, 1, 0)).reshape(kh * kw * cin,
                                                  cout).astype(jnp.bfloat16)


def _compiler_params(dims, est_bytes):
    return pltpu.CompilerParams(
        dimension_semantics=dims,
        vmem_limit_bytes=int(min(max(2 * est_bytes, 16 * 2**20), 48 * 2**20)))


# ---------------------------------------------------------------------------
# Layers
# ---------------------------------------------------------------------------
def conv_leaky(x_nhwc, w, b, *, stride=2, pad=1):
    """DownSampleConv with batchnorm=False: conv + bias + LeakyReLU(0.2)."""
    B = x_nhwc.shape[0]
    cout, cin, kh, kw = w.shape
    pat, OH, OW = _im2col_nhwc(x_nhwc, kh, kw, stride, pad)
    wm = _weight_matrix(w)
    M, K = pat.shape
    tm = _pick_tile(M, 512, 8)
    tk = _pick_tile(K, 1024, 128)
    nm, nk = M // tm, K // tk

    est = 2 * (tm * tk * 2 + tk * cout * 2) + 3 * tm * cout * 4
    out = pl.pallas_call(
        functools.partial(_mm_bias_act_kernel, use_act=True),
        out_shape=jax.ShapeDtypeStruct((M, cout), jnp.bfloat16),
        grid_spec=pltpu.PrefetchScalarGridSpec(
            num_scalar_prefetch=0,
            grid=(nm, nk),
            in_specs=[pl.BlockSpec((tm, tk), lambda i, k: (i, k)),
                      pl.BlockSpec((tk, cout), lambda i, k: (k, 0)),
                      pl.BlockSpec((1, cout), lambda i, k: (0, 0))],
            out_specs=pl.BlockSpec((tm, cout), lambda i, k: (i, 0)),
            scratch_shapes=[pltpu.VMEM((tm, cout), jnp.float32)]),
        compiler_params=_compiler_params(("parallel", "arbitrary"), est),
        cost_estimate=pl.CostEstimate(
            flops=2 * M * K * cout, transcendentals=0,
            bytes_accessed=M * K * 2 + K * cout * 2 + M * cout * 2),
    )(pat, wm, b.reshape(1, cout).astype(jnp.float32))
    return out.reshape(B, OH, OW, cout)


def conv_bn_leaky(x_nhwc, w, gamma, beta, *, stride=2, pad=1,
                  final_w=None, final_b=None):
    """DownSampleConv with batchnorm=True (training-mode batch stats) +
    LeakyReLU(0.2).  Optionally fuses the trailing 1x1 `final` conv
    (lane-padded to 128 output channels; caller slices channel 0)."""
    B = x_nhwc.shape[0]
    cout, cin, kh, kw = w.shape
    pat, OH, OW = _im2col_nhwc(x_nhwc, kh, kw, stride, pad)
    wm = _weight_matrix(w)
    M, K = pat.shape
    tm = _pick_tile(M, 512, 8)
    tk = _pick_tile(K, 1024, 128)
    nm, nk = M // tm, K // tk

    # ---- pass 1: conv matmul + per-M-tile channel sum / sum-of-squares ----
    est1 = 2 * (tm * tk * 2 + tk * cout * 2) + 3 * tm * cout * 4
    z, stats = pl.pallas_call(
        _mm_stats_kernel,
        out_shape=(jax.ShapeDtypeStruct((M, cout), jnp.float32),
                   jax.ShapeDtypeStruct((nm, 2, cout), jnp.float32)),
        grid_spec=pltpu.PrefetchScalarGridSpec(
            num_scalar_prefetch=0,
            grid=(nm, nk),
            in_specs=[pl.BlockSpec((tm, tk), lambda i, k: (i, k)),
                      pl.BlockSpec((tk, cout), lambda i, k: (k, 0))],
            out_specs=[pl.BlockSpec((tm, cout), lambda i, k: (i, 0)),
                       pl.BlockSpec((1, 2, cout), lambda i, k: (i, 0, 0))],
            scratch_shapes=[pltpu.VMEM((tm, cout), jnp.float32)]),
        compiler_params=_compiler_params(("parallel", "arbitrary"), est1),
        cost_estimate=pl.CostEstimate(
            flops=2 * M * K * cout, transcendentals=0,
            bytes_accessed=M * K * 2 + K * cout * 2 + M * cout * 4),
    )(pat, wm)

    # ---- pass 2: finalize BN stats, normalize + gamma/beta + LeakyReLU ----
    fuse_final = final_w is not None
    args = [z, stats,
            gamma.reshape(1, cout).astype(jnp.float32),
            beta.reshape(1, cout).astype(jnp.float32)]
    in_specs = [pl.BlockSpec((tm, cout), lambda i: (i, 0)),
                pl.BlockSpec((nm, 2, cout), lambda i: (0, 0, 0)),
                pl.BlockSpec((1, cout), lambda i: (0, 0)),
                pl.BlockSpec((1, cout), lambda i: (0, 0))]
    if fuse_final:
        nf = 128                              # pad Cout=1 -> lane-dense 128
        wf = jnp.zeros((cout, nf), jnp.bfloat16)
        wf = wf.at[:, :1].set(final_w.reshape(-1, cout).T.astype(jnp.bfloat16))
        bf = jnp.zeros((1, nf), jnp.float32)
        bf = bf.at[:, :1].set(final_b.reshape(1, 1).astype(jnp.float32))
        args += [wf, bf]
        in_specs += [pl.BlockSpec((cout, nf), lambda i: (0, 0)),
                     pl.BlockSpec((1, nf), lambda i: (0, 0))]
        out_shape = jax.ShapeDtypeStruct((M, nf), jnp.float32)
        out_spec = pl.BlockSpec((tm, nf), lambda i: (i, 0))
        nout = nf
    else:
        out_shape = jax.ShapeDtypeStruct((M, cout), jnp.bfloat16)
        out_spec = pl.BlockSpec((tm, cout), lambda i: (i, 0))
        nout = cout

    est2 = 2 * tm * cout * 4 + nm * 2 * cout * 4 + 2 * tm * nout * 4
    out = pl.pallas_call(
        functools.partial(_bn_act_kernel, inv_m=1.0 / float(M),
                          fuse_final=fuse_final),
        out_shape=out_shape,
        grid_spec=pltpu.PrefetchScalarGridSpec(
            num_scalar_prefetch=0,
            grid=(nm,),
            in_specs=in_specs,
            out_specs=out_spec),
        compiler_params=_compiler_params(("parallel",), est2),
        cost_estimate=pl.CostEstimate(
            flops=8 * M * cout + (2 * M * cout * nout if fuse_final else 0),
            transcendentals=0,
            bytes_accessed=M * cout * 4 + M * nout * 4),
    )(*args)

    if fuse_final:
        return out[:, :1].reshape(B, OH, OW, 1)
    return out.reshape(B, OH, OW, cout)


# ---------------------------------------------------------------------------
# PatchGAN forward + params
# ---------------------------------------------------------------------------
def init_patchgan_params(input_channels, key):
    """Deterministic synthetic parameters matching PatchGAN(__init__) shapes."""
    dims = [(input_channels, 64), (64, 128), (128, 256), (256, 512)]
    params = {}
    keys = jax.random.split(key, 2 * len(dims) + 2)
    for li, (cin, cout) in enumerate(dims):
        kw_, kb_ = keys[2 * li], keys[2 * li + 1]
        params[f"d{li + 1}_w"] = 0.05 * jax.random.normal(
            kw_, (cout, cin, 4, 4), jnp.float32)
        params[f"d{li + 1}_b"] = 0.05 * jax.random.normal(
            kb_, (cout,), jnp.float32)
        if li > 0:  # d1 has batchnorm=False
            params[f"d{li + 1}_gamma"] = jnp.ones((cout,), jnp.float32)
            params[f"d{li + 1}_beta"] = jnp.zeros((cout,), jnp.float32)
    params["final_w"] = 0.05 * jax.random.normal(keys[-2], (1, 512, 1, 1),
                                                 jnp.float32)
    params["final_b"] = 0.05 * jax.random.normal(keys[-1], (1,), jnp.float32)
    return params


def patchgan_forward(params, x, y):
    """x, y: [B, C, H, W] NCHW.  Returns [B, 1, H/16, W/16] NCHW (f32)."""
    h = jnp.concatenate([x, y], axis=1)              # channel concat (NCHW)
    h = jnp.transpose(h, (0, 2, 3, 1))               # -> NHWC once, stays NHWC

    # d1: conv 4x4 s2 p1, NO batchnorm, LeakyReLU(0.2)
    h = conv_leaky(h, params["d1_w"], params["d1_b"])
    # d2, d3: conv + BatchNorm + LeakyReLU(0.2)
    # (conv bias is dropped on BN layers: it cancels against the BN mean)
    h = conv_bn_leaky(h, params["d2_w"], params["d2_gamma"], params["d2_beta"])
    h = conv_bn_leaky(h, params["d3_w"], params["d3_gamma"], params["d3_beta"])
    # d4 + fused final 1x1 conv (512 -> 1)
    out = conv_bn_leaky(h, params["d4_w"], params["d4_gamma"],
                        params["d4_beta"],
                        final_w=params["final_w"], final_b=params["final_b"])
    return jnp.transpose(out, (0, 3, 1, 2))          # -> [B, 1, OH, OW] NCHW


if __name__ == "__main__":
    B, C, H, W = 2, 4, 16, 16   # per-image channels; PatchGAN sees 2*C after concat
    key = jax.random.PRNGKey(0)
    kx, ky, kp = jax.random.split(key, 3)
    x = jax.random.normal(kx, (B, C, H, W), jnp.float32)
    y = jax.random.normal(ky, (B, C, H, W), jnp.float32)

    params = init_patchgan_params(input_channels=2 * C, key=kp)

    out = jax.jit(patchgan_forward)(params, x, y)
    out = jax.block_until_ready(out)
    assert out.shape == (B, 1, H // 16, W // 16), out.shape
    assert bool(jnp.all(jnp.isfinite(out)))
    print("KERNEL_OK")
</pallas_src>

<mosaic_0001>
module attributes {stable_mosaic.version = 11 : i64} {
  func.func @_mm_bias_act_kernel(%arg0: i32, %arg1: i32, %arg2: memref<128x128xbf16, #tpu.memory_space<vmem>>, %arg3: memref<128x64xbf16, #tpu.memory_space<vmem>>, %arg4: memref<1x64xf32, #tpu.memory_space<vmem>>, %arg5: memref<128x64xbf16, #tpu.memory_space<vmem>>, %arg6: memref<128x64xf32, #tpu.memory_space<vmem>>) attributes {dimension_semantics = [#tpu.dimension_semantics<parallel>, #tpu.dimension_semantics<arbitrary>], iteration_bounds = array<i64: 1, 1>, scalar_prefetch = 0 : i64, scratch_operands = 1 : i64, tpu.core_type = #tpu.core_type<tc>, window_params = [{transform_indices = @transform_0, window_bounds = array<i64: 128, 128>}, {transform_indices = @transform_1, window_bounds = array<i64: 128, 64>}, {pipeline_mode = #tpu.pipeline_mode<synchronous>, transform_indices = @transform_2, window_bounds = array<i64: 1, 64>}, {transform_indices = @transform_3, window_bounds = array<i64: 128, 64>}]} {
    %c0_i32 = arith.constant 0 : i32
    %0 = arith.cmpi eq, %arg1, %c0_i32 : i32
    %1 = arith.extui %0 : i1 to i32
    %c0_i32_0 = arith.constant 0 : i32
    %2 = arith.cmpi ne, %1, %c0_i32_0 : i32
    scf.if %2 {
      %cst_10 = arith.constant 0.000000e+00 : f32
      %12 = vector.broadcast %cst_10 : f32 to vector<128x64xf32>
      %c0_11 = arith.constant 0 : index
      %c0_12 = arith.constant 0 : index
      %13 = vector.load %arg6[%c0_11, %c0_12] : memref<128x64xf32, #tpu.memory_space<vmem>>, vector<128x64xf32>
      tpu.vector_store %arg6[%c0_11, %c0_12], %12 {strides = array<i32>} : memref<128x64xf32, #tpu.memory_space<vmem>>, vector<128x64xf32>,
    } else {
    }
    %c0 = arith.constant 0 : index
    %c0_1 = arith.constant 0 : index
    %3 = vector.load %arg6[%c0, %c0_1] : memref<128x64xf32, #tpu.memory_space<vmem>>, vector<128x64xf32>
    %c0_2 = arith.constant 0 : index
    %c0_3 = arith.constant 0 : index
    %4 = vector.load %arg2[%c0_2, %c0_3] : memref<128x128xbf16, #tpu.memory_space<vmem>>, vector<128x128xbf16>
    %c0_4 = arith.constant 0 : index
    %c0_5 = arith.constant 0 : index
    %5 = vector.load %arg3[%c0_4, %c0_5] : memref<128x64xbf16, #tpu.memory_space<vmem>>, vector<128x64xbf16>
    %cst = arith.constant dense<0.000000e+00> : vector<128x64xf32>
    %6 = tpu.matmul %4, %5, %cst {dimension_numbers = #tpu.dot_dimension_numbers<[1], [0], [0], [1], [0, 0, 1, 1], [], []>} : vector<128x128xbf16>, vector<128x64xbf16>, vector<128x64xf32> -> vector<128x64xf32>
    %7 = arith.addf %3, %6 : vector<128x64xf32>
    %c0_6 = arith.constant 0 : index
    %c0_7 = arith.constant 0 : index
    %8 = vector.load %arg6[%c0_6, %c0_7] : memref<128x64xf32, #tpu.memory_space<vmem>>, vector<128x64xf32>
    tpu.vector_store %arg6[%c0_6, %c0_7], %7 {strides = array<i32>} : memref<128x64xf32, #tpu.memory_space<vmem>>, vector<128x64xf32>,
    %c0_i32_8 = arith.constant 0 : i32
    %9 = arith.cmpi eq, %arg1, %c0_i32_8 : i32
    %10 = arith.extui %9 : i1 to i32
    %c0_i32_9 = arith.constant 0 : i32
    %11 = arith.cmpi ne, %10, %c0_i32_9 : i32
    scf.if %11 {
      %c0_10 = arith.constant 0 : index
      %c0_11 = arith.constant 0 : index
      %12 = vector.load %arg6[%c0_10, %c0_11] : memref<128x64xf32, #tpu.memory_space<vmem>>, vector<128x64xf32>
      %c0_12 = arith.constant 0 : index
      %c0_13 = arith.constant 0 : index
      %13 = vector.load %arg4[%c0_12, %c0_13] : memref<1x64xf32, #tpu.memory_space<vmem>>, vector<1x64xf32>
      %14 = vector.broadcast %13 : vector<1x64xf32> to vector<128x64xf32>
      %15 = arith.addf %12, %14 : vector<128x64xf32>
      %cst_14 = arith.constant 2.000000e-01 : f32
      %16 = vector.broadcast %cst_14 : f32 to vector<128x64xf32>
      %17 = arith.mulf %16, %15 : vector<128x64xf32>
      %18 = arith.maximumf %15, %17 : vector<128x64xf32>
      %19 = arith.truncf %18 : vector<128x64xf32> to vector<128x64xbf16>
      %c0_15 = arith.constant 0 : index
      %c0_16 = arith.constant 0 : index
      %20 = vector.load %arg5[%c0_15, %c0_16] : memref<128x64xbf16, #tpu.memory_space<vmem>>, vector<128x64xbf16>
      tpu.vector_store %arg5[%c0_15, %c0_16], %19 {strides = array<i32>} : memref<128x64xbf16, #tpu.memory_space<vmem>>, vector<128x64xbf16>,
    } else {
    }
    return
  }
  func.func @transform_0(%arg0: i32, %arg1: i32) -> (i32, i32) {
    %c0_i32 = arith.constant 0 : i32
    return %arg0, %arg1 : i32, i32
  }
  func.func @transform_1(%arg0: i32, %arg1: i32) -> (i32, i32) {
    %c0_i32 = arith.constant 0 : i32
    %c0_i32_0 = arith.constant 0 : i32
    return %arg1, %c0_i32 : i32, i32
  }
  func.func @transform_2(%arg0: i32, %arg1: i32) -> (i32, i32) {
    %c0_i32 = arith.constant 0 : i32
    %c0_i32_0 = arith.constant 0 : i32
    %c0_i32_1 = arith.constant 0 : i32
    return %c0_i32, %c0_i32_0 : i32, i32
  }
  func.func @transform_3(%arg0: i32, %arg1: i32) -> (i32, i32) {
    %c0_i32 = arith.constant 0 : i32
    %c0_i32_0 = arith.constant 0 : i32
    return %arg0, %c0_i32 : i32, i32
  }
}

module attributes {stable_mosaic.version = 11 : i64} {
  func.func @_mm_stats_kernel(%arg0: i32, %arg1: i32, %arg2: memref<32x1024xbf16, #tpu.memory_space<vmem>>, %arg3: memref<1024x128xbf16, #tpu.memory_space<vmem>>, %arg4: memref<32x128xf32, #tpu.memory_space<vmem>>, %arg5: memref<1x2x128xf32, #tpu.memory_space<vmem>>, %arg6: memref<32x128xf32, #tpu.memory_space<vmem>>) attributes {dimension_semantics = [#tpu.dimension_semantics<parallel>, #tpu.dimension_semantics<arbitrary>], iteration_bounds = array<i64: 1, 1>, scalar_prefetch = 0 : i64, scratch_operands = 1 : i64, tpu.core_type = #tpu.core_type<tc>, window_params = [{transform_indices = @transform_0, window_bounds = array<i64: 32, 1024>}, {transform_indices = @transform_1, window_bounds = array<i64: 1024, 128>}, {transform_indices = @transform_2, window_bounds = array<i64: 32, 128>}, {transform_indices = @transform_3, window_bounds = array<i64: 1, 2, 128>}]} {
    %c0_i32 = arith.constant 0 : i32
    %0 = arith.cmpi eq, %arg1, %c0_i32 : i32
    %1 = arith.extui %0 : i1 to i32
    %c0_i32_0 = arith.constant 0 : i32
    %2 = arith.cmpi ne, %1, %c0_i32_0 : i32
    scf.if %2 {
      %cst_10 = arith.constant 0.000000e+00 : f32
      %12 = vector.broadcast %cst_10 : f32 to vector<32x128xf32>
      %c0_11 = arith.constant 0 : index
      %c0_12 = arith.constant 0 : index
      %13 = vector.load %arg6[%c0_11, %c0_12] : memref<32x128xf32, #tpu.memory_space<vmem>>, vector<32x128xf32>
      tpu.vector_store %arg6[%c0_11, %c0_12], %12 {strides = array<i32>} : memref<32x128xf32, #tpu.memory_space<vmem>>, vector<32x128xf32>,
    } else {
    }
    %c0 = arith.constant 0 : index
    %c0_1 = arith.constant 0 : index
    %3 = vector.load %arg6[%c0, %c0_1] : memref<32x128xf32, #tpu.memory_space<vmem>>, vector<32x128xf32>
    %c0_2 = arith.constant 0 : index
    %c0_3 = arith.constant 0 : index
    %4 = vector.load %arg2[%c0_2, %c0_3] : memref<32x1024xbf16, #tpu.memory_space<vmem>>, vector<32x1024xbf16>
    %c0_4 = arith.constant 0 : index
    %c0_5 = arith.constant 0 : index
    %5 = vector.load %arg3[%c0_4, %c0_5] : memref<1024x128xbf16, #tpu.memory_space<vmem>>, vector<1024x128xbf16>
    %cst = arith.constant dense<0.000000e+00> : vector<32x128xf32>
    %6 = tpu.matmul %4, %5, %cst {dimension_numbers = #tpu.dot_dimension_numbers<[1], [0], [0], [1], [0, 0, 1, 1], [], []>} : vector<32x1024xbf16>, vector<1024x128xbf16>, vector<32x128xf32> -> vector<32x128xf32>
    %7 = arith.addf %3, %6 : vector<32x128xf32>
    %c0_6 = arith.constant 0 : index
    %c0_7 = arith.constant 0 : index
    %8 = vector.load %arg6[%c0_6, %c0_7] : memref<32x128xf32, #tpu.memory_space<vmem>>, vector<32x128xf32>
    tpu.vector_store %arg6[%c0_6, %c0_7], %7 {strides = array<i32>} : memref<32x128xf32, #tpu.memory_space<vmem>>, vector<32x128xf32>,
    %c0_i32_8 = arith.constant 0 : i32
    %9 = arith.cmpi eq, %arg1, %c0_i32_8 : i32
    %10 = arith.extui %9 : i1 to i32
    %c0_i32_9 = arith.constant 0 : i32
    %11 = arith.cmpi ne, %10, %c0_i32_9 : i32
    scf.if %11 {
      %c0_10 = arith.constant 0 : index
      %c0_11 = arith.constant 0 : index
      %12 = vector.load %arg6[%c0_10, %c0_11] : memref<32x128xf32, #tpu.memory_space<vmem>>, vector<32x128xf32>
      %c0_12 = arith.constant 0 : index
      %c0_13 = arith.constant 0 : index
      %13 = vector.load %arg4[%c0_12, %c0_13] : memref<32x128xf32, #tpu.memory_space<vmem>>, vector<32x128xf32>
      tpu.vector_store %arg4[%c0_12, %c0_13], %12 {strides = array<i32>} : memref<32x128xf32, #tpu.memory_space<vmem>>, vector<32x128xf32>,
      %cst_14 = arith.constant dense<0.000000e+00> : vector<128xf32>
      %14 = vector.multi_reduction <add>, %12, %cst_14 [0] : vector<32x128xf32> to vector<128xf32>
      %15 = vector.shape_cast %14 : vector<128xf32> to vector<1x128xf32>
      %16 = arith.mulf %12, %12 : vector<32x128xf32>
      %cst_15 = arith.constant dense<0.000000e+00> : vector<128xf32>
      %17 = vector.multi_reduction <add>, %16, %cst_15 [0] : vector<32x128xf32> to vector<128xf32>
      %18 = vector.shape_cast %17 : vector<128xf32> to vector<1x128xf32>
      %19 = tpu.concatenate %15, %18 in 0 : vector<1x128xf32>, vector<1x128xf32> -> vector<2x128xf32>
      %20 = vector.shape_cast %19 : vector<2x128xf32> to vector<1x2x128xf32>
      %c0_16 = arith.constant 0 : index
      %c0_17 = arith.constant 0 : index
      %c0_18 = arith.constant 0 : index
      %21 = vector.load %arg5[%c0_16, %c0_17, %c0_18] : memref<1x2x128xf32, #tpu.memory_space<vmem>>, vector<1x2x128xf32>
      tpu.vector_store %arg5[%c0_16, %c0_17, %c0_18], %20 {strides = array<i32>} : memref<1x2x128xf32, #tpu.memory_space<vmem>>, vector<1x2x128xf32>,
    } else {
    }
    return
  }
  func.func @transform_0(%arg0: i32, %arg1: i32) -> (i32, i32) {
    %c0_i32 = arith.constant 0 : i32
    return %arg0, %arg1 : i32, i32
  }
  func.func @transform_1(%arg0: i32, %arg1: i32) -> (i32, i32) {
    %c0_i32 = arith.constant 0 : i32
    %c0_i32_0 = arith.constant 0 : i32
    return %arg1, %c0_i32 : i32, i32
  }
  func.func @transform_2(%arg0: i32, %arg1: i32) -> (i32, i32) {
    %c0_i32 = arith.constant 0 : i32
    %c0_i32_0 = arith.constant 0 : i32
    return %arg0, %c0_i32 : i32, i32
  }
  func.func @transform_3(%arg0: i32, %arg1: i32) -> (i32, i32, i32) {
    %c0_i32 = arith.constant 0 : i32
    %c0_i32_0 = arith.constant 0 : i32
    %c0_i32_1 = arith.constant 0 : i32
    return %arg0, %c0_i32, %c0_i32_0 : i32, i32, i32
  }
}

module attributes {stable_mosaic.version = 11 : i64} {
  func.func @_bn_act_kernel(%arg0: i32, %arg1: memref<32x128xf32, #tpu.memory_space<vmem>>, %arg2: memref<1x2x128xf32, #tpu.memory_space<vmem>>, %arg3: memref<1x128xf32, #tpu.memory_space<vmem>>, %arg4: memref<1x128xf32, #tpu.memory_space<vmem>>, %arg5: memref<32x128xbf16, #tpu.memory_space<vmem>>) attributes {dimension_semantics = [#tpu.dimension_semantics<parallel>], iteration_bounds = array<i64: 1>, scalar_prefetch = 0 : i64, scratch_operands = 0 : i64, tpu.core_type = #tpu.core_type<tc>, window_params = [{transform_indices = @transform_0, window_bounds = array<i64: 32, 128>}, {pipeline_mode = #tpu.pipeline_mode<synchronous>, transform_indices = @transform_1, window_bounds = array<i64: 1, 2, 128>}, {pipeline_mode = #tpu.pipeline_mode<synchronous>, transform_indices = @transform_2, window_bounds = array<i64: 1, 128>}, {pipeline_mode = #tpu.pipeline_mode<synchronous>, transform_indices = @transform_3, window_bounds = array<i64: 1, 128>}, {transform_indices = @transform_4, window_bounds = array<i64: 32, 128>}]} {
    %c0 = arith.constant 0 : index
    %c0_0 = arith.constant 0 : index
    %c0_1 = arith.constant 0 : index
    %0 = vector.load %arg2[%c0, %c0_0, %c0_1] : memref<1x2x128xf32, #tpu.memory_space<vmem>>, vector<1x2x128xf32>
    %cst = arith.constant dense<0.000000e+00> : vector<2x128xf32>
    %1 = vector.multi_reduction <add>, %0, %cst [0] : vector<1x2x128xf32> to vector<2x128xf32>
    %2 = vector.extract_strided_slice %1 {offsets = [0, 0], sizes = [1, 128], strides = [1, 1]} : vector<2x128xf32> to vector<1x128xf32>
    %cst_2 = arith.constant 3.125000e-02 : f32
    %3 = vector.broadcast %cst_2 : f32 to vector<1x128xf32>
    %4 = arith.mulf %2, %3 : vector<1x128xf32>
    %5 = vector.extract_strided_slice %1 {offsets = [1, 0], sizes = [1, 128], strides = [1, 1]} : vector<2x128xf32> to vector<1x128xf32>
    %cst_3 = arith.constant 3.125000e-02 : f32
    %6 = vector.broadcast %cst_3 : f32 to vector<1x128xf32>
    %7 = arith.mulf %5, %6 : vector<1x128xf32>
    %8 = arith.mulf %4, %4 : vector<1x128xf32>
    %9 = arith.subf %7, %8 : vector<1x128xf32>
    %cst_4 = arith.constant 9.99999974E-6 : f32
    %10 = vector.broadcast %cst_4 : f32 to vector<1x128xf32>
    %11 = arith.addf %9, %10 : vector<1x128xf32>
    %12 = math.rsqrt %11 : vector<1x128xf32>
    %c0_5 = arith.constant 0 : index
    %c0_6 = arith.constant 0 : index
    %13 = vector.load %arg3[%c0_5, %c0_6] : memref<1x128xf32, #tpu.memory_space<vmem>>, vector<1x128xf32>
    %14 = arith.mulf %13, %12 : vector<1x128xf32>
    %c0_7 = arith.constant 0 : index
    %c0_8 = arith.constant 0 : index
    %15 = vector.load %arg4[%c0_7, %c0_8] : memref<1x128xf32, #tpu.memory_space<vmem>>, vector<1x128xf32>
    %16 = arith.mulf %4, %14 : vector<1x128xf32>
    %17 = arith.subf %15, %16 : vector<1x128xf32>
    %c0_9 = arith.constant 0 : index
    %c0_10 = arith.constant 0 : index
    %18 = vector.load %arg1[%c0_9, %c0_10] : memref<32x128xf32, #tpu.memory_space<vmem>>, vector<32x128xf32>
    %19 = vector.broadcast %14 : vector<1x128xf32> to vector<32x128xf32>
    %20 = arith.mulf %18, %19 : vector<32x128xf32>
    %21 = vector.broadcast %17 : vector<1x128xf32> to vector<32x128xf32>
    %22 = arith.addf %20, %21 : vector<32x128xf32>
    %cst_11 = arith.constant 2.000000e-01 : f32
    %23 = vector.broadcast %cst_11 : f32 to vector<32x128xf32>
    %24 = arith.mulf %23, %22 : vector<32x128xf32>
    %25 = arith.maximumf %22, %24 : vector<32x128xf32>
    %26 = arith.truncf %25 : vector<32x128xf32> to vector<32x128xbf16>
    %c0_12 = arith.constant 0 : index
    %c0_13 = arith.constant 0 : index
    %27 = vector.load %arg5[%c0_12, %c0_13] : memref<32x128xbf16, #tpu.memory_space<vmem>>, vector<32x128xbf16>
    tpu.vector_store %arg5[%c0_12, %c0_13], %26 {strides = array<i32>} : memref<32x128xbf16, #tpu.memory_space<vmem>>, vector<32x128xbf16>,
    return
  }
  func.func @transform_0(%arg0: i32) -> (i32, i32) {
    %c0_i32 = arith.constant 0 : i32
    %c0_i32_0 = arith.constant 0 : i32
    return %arg0, %c0_i32 : i32, i32
  }
  func.func @transform_1(%arg0: i32) -> (i32, i32, i32) {
    %c0_i32 = arith.constant 0 : i32
    %c0_i32_0 = arith.constant 0 : i32
    %c0_i32_1 = arith.constant 0 : i32
    %c0_i32_2 = arith.constant 0 : i32
    return %c0_i32, %c0_i32_0, %c0_i32_1 : i32, i32, i32
  }
  func.func @transform_2(%arg0: i32) -> (i32, i32) {
    %c0_i32 = arith.constant 0 : i32
    %c0_i32_0 = arith.constant 0 : i32
    %c0_i32_1 = arith.constant 0 : i32
    return %c0_i32, %c0_i32_0 : i32, i32
  }
  func.func @transform_3(%arg0: i32) -> (i32, i32) {
    %c0_i32 = arith.constant 0 : i32
    %c0_i32_0 = arith.constant 0 : i32
    %c0_i32_1 = arith.constant 0 : i32
    return %c0_i32, %c0_i32_0 : i32, i32
  }
  func.func @transform_4(%arg0: i32) -> (i32, i32) {
    %c0_i32 = arith.constant 0 : i32
    %c0_i32_0 = arith.constant 0 : i32
    return %arg0, %c0_i32 : i32, i32
  }
}

module attributes {stable_mosaic.version = 11 : i64} {
  func.func @_bn_act_kernel(%arg0: i32, %arg1: memref<8x256xf32, #tpu.memory_space<vmem>>, %arg2: memref<1x2x256xf32, #tpu.memory_space<vmem>>, %arg3: memref<1x256xf32, #tpu.memory_space<vmem>>, %arg4: memref<1x256xf32, #tpu.memory_space<vmem>>, %arg5: memref<8x256xbf16, #tpu.memory_space<vmem>>) attributes {dimension_semantics = [#tpu.dimension_semantics<parallel>], iteration_bounds = array<i64: 1>, scalar_prefetch = 0 : i64, scratch_operands = 0 : i64, tpu.core_type = #tpu.core_type<tc>, window_params = [{transform_indices = @transform_0, window_bounds = array<i64: 8, 256>}, {pipeline_mode = #tpu.pipeline_mode<synchronous>, transform_indices = @transform_1, window_bounds = array<i64: 1, 2, 256>}, {pipeline_mode = #tpu.pipeline_mode<synchronous>, transform_indices = @transform_2, window_bounds = array<i64: 1, 256>}, {pipeline_mode = #tpu.pipeline_mode<synchronous>, transform_indices = @transform_3, window_bounds = array<i64: 1, 256>}, {transform_indices = @transform_4, window_bounds = array<i64: 8, 256>}]} {
    %c0 = arith.constant 0 : index
    %c0_0 = arith.constant 0 : index
    %c0_1 = arith.constant 0 : index
    %0 = vector.load %arg2[%c0, %c0_0, %c0_1] : memref<1x2x256xf32, #tpu.memory_space<vmem>>, vector<1x2x256xf32>
    %cst = arith.constant dense<0.000000e+00> : vector<2x256xf32>
    %1 = vector.multi_reduction <add>, %0, %cst [0] : vector<1x2x256xf32> to vector<2x256xf32>
    %2 = vector.extract_strided_slice %1 {offsets = [0, 0], sizes = [1, 256], strides = [1, 1]} : vector<2x256xf32> to vector<1x256xf32>
    %cst_2 = arith.constant 1.250000e-01 : f32
    %3 = vector.broadcast %cst_2 : f32 to vector<1x256xf32>
    %4 = arith.mulf %2, %3 : vector<1x256xf32>
    %5 = vector.extract_strided_slice %1 {offsets = [1, 0], sizes = [1, 256], strides = [1, 1]} : vector<2x256xf32> to vector<1x256xf32>
    %cst_3 = arith.constant 1.250000e-01 : f32
    %6 = vector.broadcast %cst_3 : f32 to vector<1x256xf32>
    %7 = arith.mulf %5, %6 : vector<1x256xf32>
    %8 = arith.mulf %4, %4 : vector<1x256xf32>
    %9 = arith.subf %7, %8 : vector<1x256xf32>
    %cst_4 = arith.constant 9.99999974E-6 : f32
    %10 = vector.broadcast %cst_4 : f32 to vector<1x256xf32>
    %11 = arith.addf %9, %10 : vector<1x256xf32>
    %12 = math.rsqrt %11 : vector<1x256xf32>
    %c0_5 = arith.constant 0 : index
    %c0_6 = arith.constant 0 : index
    %13 = vector.load %arg3[%c0_5, %c0_6] : memref<1x256xf32, #tpu.memory_space<vmem>>, vector<1x256xf32>
    %14 = arith.mulf %13, %12 : vector<1x256xf32>
    %c0_7 = arith.constant 0 : index
    %c0_8 = arith.constant 0 : index
    %15 = vector.load %arg4[%c0_7, %c0_8] : memref<1x256xf32, #tpu.memory_space<vmem>>, vector<1x256xf32>
    %16 = arith.mulf %4, %14 : vector<1x256xf32>
    %17 = arith.subf %15, %16 : vector<1x256xf32>
    %c0_9 = arith.constant 0 : index
    %c0_10 = arith.constant 0 : index
    %18 = vector.load %arg1[%c0_9, %c0_10] : memref<8x256xf32, #tpu.memory_space<vmem>>, vector<8x256xf32>
    %19 = vector.broadcast %14 : vector<1x256xf32> to vector<8x256xf32>
    %20 = arith.mulf %18, %19 : vector<8x256xf32>
    %21 = vector.broadcast %17 : vector<1x256xf32> to vector<8x256xf32>
    %22 = arith.addf %20, %21 : vector<8x256xf32>
    %cst_11 = arith.constant 2.000000e-01 : f32
    %23 = vector.broadcast %cst_11 : f32 to vector<8x256xf32>
    %24 = arith.mulf %23, %22 : vector<8x256xf32>
    %25 = arith.maximumf %22, %24 : vector<8x256xf32>
    %26 = arith.truncf %25 : vector<8x256xf32> to vector<8x256xbf16>
    %c0_12 = arith.constant 0 : index
    %c0_13 = arith.constant 0 : index
    %27 = vector.load %arg5[%c0_12, %c0_13] : memref<8x256xbf16, #tpu.memory_space<vmem>>, vector<8x256xbf16>
    tpu.vector_store %arg5[%c0_12, %c0_13], %26 {strides = array<i32>} : memref<8x256xbf16, #tpu.memory_space<vmem>>, vector<8x256xbf16>,
    return
  }
  func.func @transform_0(%arg0: i32) -> (i32, i32) {
    %c0_i32 = arith.constant 0 : i32
    %c0_i32_0 = arith.constant 0 : i32
    return %arg0, %c0_i32 : i32, i32
  }
  func.func @transform_1(%arg0: i32) -> (i32, i32, i32) {
    %c0_i32 = arith.constant 0 : i32
    %c0_i32_0 = arith.constant 0 : i32
    %c0_i32_1 = arith.constant 0 : i32
    %c0_i32_2 = arith.constant 0 : i32
    return %c0_i32, %c0_i32_0, %c0_i32_1 : i32, i32, i32
  }
  func.func @transform_2(%arg0: i32) -> (i32, i32) {
    %c0_i32 = arith.constant 0 : i32
    %c0_i32_0 = arith.constant 0 : i32
    %c0_i32_1 = arith.constant 0 : i32
    return %c0_i32, %c0_i32_0 : i32, i32
  }
  func.func @transform_3(%arg0: i32) -> (i32, i32) {
    %c0_i32 = arith.constant 0 : i32
    %c0_i32_0 = arith.constant 0 : i32
    %c0_i32_1 = arith.constant 0 : i32
    return %c0_i32, %c0_i32_0 : i32, i32
  }
  func.func @transform_4(%arg0: i32) -> (i32, i32) {
    %c0_i32 = arith.constant 0 : i32
    %c0_i32_0 = arith.constant 0 : i32
    return %arg0, %c0_i32 : i32, i32
  }
}

module attributes {stable_mosaic.version = 11 : i64} {
  func.func @_mm_stats_kernel(%arg0: i32, %arg1: i32, %arg2: memref<8x1024xbf16, #tpu.memory_space<vmem>>, %arg3: memref<1024x256xbf16, #tpu.memory_space<vmem>>, %arg4: memref<8x256xf32, #tpu.memory_space<vmem>>, %arg5: memref<1x2x256xf32, #tpu.memory_space<vmem>>, %arg6: memref<8x256xf32, #tpu.memory_space<vmem>>) attributes {dimension_semantics = [#tpu.dimension_semantics<parallel>, #tpu.dimension_semantics<arbitrary>], iteration_bounds = array<i64: 1, 2>, scalar_prefetch = 0 : i64, scratch_operands = 1 : i64, tpu.core_type = #tpu.core_type<tc>, window_params = [{transform_indices = @transform_0, window_bounds = array<i64: 8, 1024>}, {transform_indices = @transform_1, window_bounds = array<i64: 1024, 256>}, {transform_indices = @transform_2, window_bounds = array<i64: 8, 256>}, {transform_indices = @transform_3, window_bounds = array<i64: 1, 2, 256>}]} {
    %c0_i32 = arith.constant 0 : i32
    %0 = arith.cmpi eq, %arg1, %c0_i32 : i32
    %1 = arith.extui %0 : i1 to i32
    %c0_i32_0 = arith.constant 0 : i32
    %2 = arith.cmpi ne, %1, %c0_i32_0 : i32
    scf.if %2 {
      %cst_9 = arith.constant 0.000000e+00 : f32
      %12 = vector.broadcast %cst_9 : f32 to vector<8x256xf32>
      %c0_10 = arith.constant 0 : index
      %c0_11 = arith.constant 0 : index
      %13 = vector.load %arg6[%c0_10, %c0_11] : memref<8x256xf32, #tpu.memory_space<vmem>>, vector<8x256xf32>
      tpu.vector_store %arg6[%c0_10, %c0_11], %12 {strides = array<i32>} : memref<8x256xf32, #tpu.memory_space<vmem>>, vector<8x256xf32>,
    } else {
    }
    %c0 = arith.constant 0 : index
    %c0_1 = arith.constant 0 : index
    %3 = vector.load %arg6[%c0, %c0_1] : memref<8x256xf32, #tpu.memory_space<vmem>>, vector<8x256xf32>
    %c0_2 = arith.constant 0 : index
    %c0_3 = arith.constant 0 : index
    %4 = vector.load %arg2[%c0_2, %c0_3] : memref<8x1024xbf16, #tpu.memory_space<vmem>>, vector<8x1024xbf16>
    %c0_4 = arith.constant 0 : index
    %c0_5 = arith.constant 0 : index
    %5 = vector.load %arg3[%c0_4, %c0_5] : memref<1024x256xbf16, #tpu.memory_space<vmem>>, vector<1024x256xbf16>
    %cst = arith.constant dense<0.000000e+00> : vector<8x256xf32>
    %6 = tpu.matmul %4, %5, %cst {dimension_numbers = #tpu.dot_dimension_numbers<[1], [0], [0], [1], [0, 0, 1, 1], [], []>} : vector<8x1024xbf16>, vector<1024x256xbf16>, vector<8x256xf32> -> vector<8x256xf32>
    %7 = arith.addf %3, %6 : vector<8x256xf32>
    %c0_6 = arith.constant 0 : index
    %c0_7 = arith.constant 0 : index
    %8 = vector.load %arg6[%c0_6, %c0_7] : memref<8x256xf32, #tpu.memory_space<vmem>>, vector<8x256xf32>
    tpu.vector_store %arg6[%c0_6, %c0_7], %7 {strides = array<i32>} : memref<8x256xf32, #tpu.memory_space<vmem>>, vector<8x256xf32>,
    %c1_i32 = arith.constant 1 : i32
    %9 = arith.cmpi eq, %arg1, %c1_i32 : i32
    %10 = arith.extui %9 : i1 to i32
    %c0_i32_8 = arith.constant 0 : i32
    %11 = arith.cmpi ne, %10, %c0_i32_8 : i32
    scf.if %11 {
      %c0_9 = arith.constant 0 : index
      %c0_10 = arith.constant 0 : index
      %12 = vector.load %arg6[%c0_9, %c0_10] : memref<8x256xf32, #tpu.memory_space<vmem>>, vector<8x256xf32>
      %c0_11 = arith.constant 0 : index
      %c0_12 = arith.constant 0 : index
      %13 = vector.load %arg4[%c0_11, %c0_12] : memref<8x256xf32, #tpu.memory_space<vmem>>, vector<8x256xf32>
      tpu.vector_store %arg4[%c0_11, %c0_12], %12 {strides = array<i32>} : memref<8x256xf32, #tpu.memory_space<vmem>>, vector<8x256xf32>,
      %cst_13 = arith.constant dense<0.000000e+00> : vector<256xf32>
      %14 = vector.multi_reduction <add>, %12, %cst_13 [0] : vector<8x256xf32> to vector<256xf32>
      %15 = vector.shape_cast %14 : vector<256xf32> to vector<1x256xf32>
      %16 = arith.mulf %12, %12 : vector<8x256xf32>
      %cst_14 = arith.constant dense<0.000000e+00> : vector<256xf32>
      %17 = vector.multi_reduction <add>, %16, %cst_14 [0] : vector<8x256xf32> to vector<256xf32>
      %18 = vector.shape_cast %17 : vector<256xf32> to vector<1x256xf32>
      %19 = tpu.concatenate %15, %18 in 0 : vector<1x256xf32>, vector<1x256xf32> -> vector<2x256xf32>
      %20 = vector.shape_cast %19 : vector<2x256xf32> to vector<1x2x256xf32>
      %c0_15 = arith.constant 0 : index
      %c0_16 = arith.constant 0 : index
      %c0_17 = arith.constant 0 : index
      %21 = vector.load %arg5[%c0_15, %c0_16, %c0_17] : memref<1x2x256xf32, #tpu.memory_space<vmem>>, vector<1x2x256xf32>
      tpu.vector_store %arg5[%c0_15, %c0_16, %c0_17], %20 {strides = array<i32>} : memref<1x2x256xf32, #tpu.memory_space<vmem>>, vector<1x2x256xf32>,
    } else {
    }
    return
  }
  func.func @transform_0(%arg0: i32, %arg1: i32) -> (i32, i32) {
    %c0_i32 = arith.constant 0 : i32
    return %arg0, %arg1 : i32, i32
  }
  func.func @transform_1(%arg0: i32, %arg1: i32) -> (i32, i32) {
    %c0_i32 = arith.constant 0 : i32
    %c0_i32_0 = arith.constant 0 : i32
    return %arg1, %c0_i32 : i32, i32
  }
  func.func @transform_2(%arg0: i32, %arg1: i32) -> (i32, i32) {
    %c0_i32 = arith.constant 0 : i32
    %c0_i32_0 = arith.constant 0 : i32
    return %arg0, %c0_i32 : i32, i32
  }
  func.func @transform_3(%arg0: i32, %arg1: i32) -> (i32, i32, i32) {
    %c0_i32 = arith.constant 0 : i32
    %c0_i32_0 = arith.constant 0 : i32
    %c0_i32_1 = arith.constant 0 : i32
    return %arg0, %c0_i32, %c0_i32_0 : i32, i32, i32
  }
}

module attributes {stable_mosaic.version = 11 : i64} {
  func.func @_mm_stats_kernel(%arg0: i32, %arg1: i32, %arg2: memref<2x1024xbf16, #tpu.memory_space<vmem>>, %arg3: memref<1024x512xbf16, #tpu.memory_space<vmem>>, %arg4: memref<2x512xf32, #tpu.memory_space<vmem>>, %arg5: memref<1x2x512xf32, #tpu.memory_space<vmem>>, %arg6: memref<2x512xf32, #tpu.memory_space<vmem>>) attributes {dimension_semantics = [#tpu.dimension_semantics<parallel>, #tpu.dimension_semantics<arbitrary>], iteration_bounds = array<i64: 1, 4>, scalar_prefetch = 0 : i64, scratch_operands = 1 : i64, tpu.core_type = #tpu.core_type<tc>, window_params = [{transform_indices = @transform_0, window_bounds = array<i64: 2, 1024>}, {transform_indices = @transform_1, window_bounds = array<i64: 1024, 512>}, {transform_indices = @transform_2, window_bounds = array<i64: 2, 512>}, {transform_indices = @transform_3, window_bounds = array<i64: 1, 2, 512>}]} {
    %c0_i32 = arith.constant 0 : i32
    %0 = arith.cmpi eq, %arg1, %c0_i32 : i32
    %1 = arith.extui %0 : i1 to i32
    %c0_i32_0 = arith.constant 0 : i32
    %2 = arith.cmpi ne, %1, %c0_i32_0 : i32
    scf.if %2 {
      %cst_9 = arith.constant 0.000000e+00 : f32
      %12 = vector.broadcast %cst_9 : f32 to vector<2x512xf32>
      %c0_10 = arith.constant 0 : index
      %c0_11 = arith.constant 0 : index
      %13 = vector.load %arg6[%c0_10, %c0_11] : memref<2x512xf32, #tpu.memory_space<vmem>>, vector<2x512xf32>
      tpu.vector_store %arg6[%c0_10, %c0_11], %12 {strides = array<i32>} : memref<2x512xf32, #tpu.memory_space<vmem>>, vector<2x512xf32>,
    } else {
    }
    %c0 = arith.constant 0 : index
    %c0_1 = arith.constant 0 : index
    %3 = vector.load %arg6[%c0, %c0_1] : memref<2x512xf32, #tpu.memory_space<vmem>>, vector<2x512xf32>
    %c0_2 = arith.constant 0 : index
    %c0_3 = arith.constant 0 : index
    %4 = vector.load %arg2[%c0_2, %c0_3] : memref<2x1024xbf16, #tpu.memory_space<vmem>>, vector<2x1024xbf16>
    %c0_4 = arith.constant 0 : index
    %c0_5 = arith.constant 0 : index
    %5 = vector.load %arg3[%c0_4, %c0_5] : memref<1024x512xbf16, #tpu.memory_space<vmem>>, vector<1024x512xbf16>
    %cst = arith.constant dense<0.000000e+00> : vector<2x512xf32>
    %6 = tpu.matmul %4, %5, %cst {dimension_numbers = #tpu.dot_dimension_numbers<[1], [0], [0], [1], [0, 0, 1, 1], [], []>} : vector<2x1024xbf16>, vector<1024x512xbf16>, vector<2x512xf32> -> vector<2x512xf32>
    %7 = arith.addf %3, %6 : vector<2x512xf32>
    %c0_6 = arith.constant 0 : index
    %c0_7 = arith.constant 0 : index
    %8 = vector.load %arg6[%c0_6, %c0_7] : memref<2x512xf32, #tpu.memory_space<vmem>>, vector<2x512xf32>
    tpu.vector_store %arg6[%c0_6, %c0_7], %7 {strides = array<i32>} : memref<2x512xf32, #tpu.memory_space<vmem>>, vector<2x512xf32>,
    %c3_i32 = arith.constant 3 : i32
    %9 = arith.cmpi eq, %arg1, %c3_i32 : i32
    %10 = arith.extui %9 : i1 to i32
    %c0_i32_8 = arith.constant 0 : i32
    %11 = arith.cmpi ne, %10, %c0_i32_8 : i32
    scf.if %11 {
      %c0_9 = arith.constant 0 : index
      %c0_10 = arith.constant 0 : index
      %12 = vector.load %arg6[%c0_9, %c0_10] : memref<2x512xf32, #tpu.memory_space<vmem>>, vector<2x512xf32>
      %c0_11 = arith.constant 0 : index
      %c0_12 = arith.constant 0 : index
      %13 = vector.load %arg4[%c0_11, %c0_12] : memref<2x512xf32, #tpu.memory_space<vmem>>, vector<2x512xf32>
      tpu.vector_store %arg4[%c0_11, %c0_12], %12 {strides = array<i32>} : memref<2x512xf32, #tpu.memory_space<vmem>>, vector<2x512xf32>,
      %cst_13 = arith.constant dense<0.000000e+00> : vector<512xf32>
      %14 = vector.multi_reduction <add>, %12, %cst_13 [0] : vector<2x512xf32> to vector<512xf32>
      %15 = vector.shape_cast %14 : vector<512xf32> to vector<1x512xf32>
      %16 = arith.mulf %12, %12 : vector<2x512xf32>
      %cst_14 = arith.constant dense<0.000000e+00> : vector<512xf32>
      %17 = vector.multi_reduction <add>, %16, %cst_14 [0] : vector<2x512xf32> to vector<512xf32>
      %18 = vector.shape_cast %17 : vector<512xf32> to vector<1x512xf32>
      %19 = tpu.concatenate %15, %18 in 0 : vector<1x512xf32>, vector<1x512xf32> -> vector<2x512xf32>
      %20 = vector.shape_cast %19 : vector<2x512xf32> to vector<1x2x512xf32>
      %c0_15 = arith.constant 0 : index
      %c0_16 = arith.constant 0 : index
      %c0_17 = arith.constant 0 : index
      %21 = vector.load %arg5[%c0_15, %c0_16, %c0_17] : memref<1x2x512xf32, #tpu.memory_space<vmem>>, vector<1x2x512xf32>
      tpu.vector_store %arg5[%c0_15, %c0_16, %c0_17], %20 {strides = array<i32>} : memref<1x2x512xf32, #tpu.memory_space<vmem>>, vector<1x2x512xf32>,
    } else {
    }
    return
  }
  func.func @transform_0(%arg0: i32, %arg1: i32) -> (i32, i32) {
    %c0_i32 = arith.constant 0 : i32
    return %arg0, %arg1 : i32, i32
  }
  func.func @transform_1(%arg0: i32, %arg1: i32) -> (i32, i32) {
    %c0_i32 = arith.constant 0 : i32
    %c0_i32_0 = arith.constant 0 : i32
    return %arg1, %c0_i32 : i32, i32
  }
  func.func @transform_2(%arg0: i32, %arg1: i32) -> (i32, i32) {
    %c0_i32 = arith.constant 0 : i32
    %c0_i32_0 = arith.constant 0 : i32
    return %arg0, %c0_i32 : i32, i32
  }
  func.func @transform_3(%arg0: i32, %arg1: i32) -> (i32, i32, i32) {
    %c0_i32 = arith.constant 0 : i32
    %c0_i32_0 = arith.constant 0 : i32
    %c0_i32_1 = arith.constant 0 : i32
    return %arg0, %c0_i32, %c0_i32_0 : i32, i32, i32
  }
}

module attributes {stable_mosaic.version = 11 : i64} {
  func.func @_bn_act_kernel(%arg0: i32, %arg1: memref<2x512xf32, #tpu.memory_space<vmem>>, %arg2: memref<1x2x512xf32, #tpu.memory_space<vmem>>, %arg3: memref<1x512xf32, #tpu.memory_space<vmem>>, %arg4: memref<1x512xf32, #tpu.memory_space<vmem>>, %arg5: memref<512x128xbf16, #tpu.memory_space<vmem>>, %arg6: memref<1x128xf32, #tpu.memory_space<vmem>>, %arg7: memref<2x128xf32, #tpu.memory_space<vmem>>) attributes {dimension_semantics = [#tpu.dimension_semantics<parallel>], iteration_bounds = array<i64: 1>, scalar_prefetch = 0 : i64, scratch_operands = 0 : i64, tpu.core_type = #tpu.core_type<tc>, window_params = [{transform_indices = @transform_0, window_bounds = array<i64: 2, 512>}, {pipeline_mode = #tpu.pipeline_mode<synchronous>, transform_indices = @transform_1, window_bounds = array<i64: 1, 2, 512>}, {pipeline_mode = #tpu.pipeline_mode<synchronous>, transform_indices = @transform_2, window_bounds = array<i64: 1, 512>}, {pipeline_mode = #tpu.pipeline_mode<synchronous>, transform_indices = @transform_3, window_bounds = array<i64: 1, 512>}, {pipeline_mode = #tpu.pipeline_mode<synchronous>, transform_indices = @transform_4, window_bounds = array<i64: 512, 128>}, {pipeline_mode = #tpu.pipeline_mode<synchronous>, transform_indices = @transform_5, window_bounds = array<i64: 1, 128>}, {transform_indices = @transform_6, window_bounds = array<i64: 2, 128>}]} {
    %c0 = arith.constant 0 : index
    %c0_0 = arith.constant 0 : index
    %c0_1 = arith.constant 0 : index
    %0 = vector.load %arg2[%c0, %c0_0, %c0_1] : memref<1x2x512xf32, #tpu.memory_space<vmem>>, vector<1x2x512xf32>
    %cst = arith.constant dense<0.000000e+00> : vector<2x512xf32>
    %1 = vector.multi_reduction <add>, %0, %cst [0] : vector<1x2x512xf32> to vector<2x512xf32>
    %2 = vector.extract_strided_slice %1 {offsets = [0, 0], sizes = [1, 512], strides = [1, 1]} : vector<2x512xf32> to vector<1x512xf32>
    %cst_2 = arith.constant 5.000000e-01 : f32
    %3 = vector.broadcast %cst_2 : f32 to vector<1x512xf32>
    %4 = arith.mulf %2, %3 : vector<1x512xf32>
    %5 = vector.extract_strided_slice %1 {offsets = [1, 0], sizes = [1, 512], strides = [1, 1]} : vector<2x512xf32> to vector<1x512xf32>
    %cst_3 = arith.constant 5.000000e-01 : f32
    %6 = vector.broadcast %cst_3 : f32 to vector<1x512xf32>
    %7 = arith.mulf %5, %6 : vector<1x512xf32>
    %8 = arith.mulf %4, %4 : vector<1x512xf32>
    %9 = arith.subf %7, %8 : vector<1x512xf32>
    %cst_4 = arith.constant 9.99999974E-6 : f32
    %10 = vector.broadcast %cst_4 : f32 to vector<1x512xf32>
    %11 = arith.addf %9, %10 : vector<1x512xf32>
    %12 = math.rsqrt %11 : vector<1x512xf32>
    %c0_5 = arith.constant 0 : index
    %c0_6 = arith.constant 0 : index
    %13 = vector.load %arg3[%c0_5, %c0_6] : memref<1x512xf32, #tpu.memory_space<vmem>>, vector<1x512xf32>
    %14 = arith.mulf %13, %12 : vector<1x512xf32>
    %c0_7 = arith.constant 0 : index
    %c0_8 = arith.constant 0 : index
    %15 = vector.load %arg4[%c0_7, %c0_8] : memref<1x512xf32, #tpu.memory_space<vmem>>, vector<1x512xf32>
    %16 = arith.mulf %4, %14 : vector<1x512xf32>
    %17 = arith.subf %15, %16 : vector<1x512xf32>
    %c0_9 = arith.constant 0 : index
    %c0_10 = arith.constant 0 : index
    %18 = vector.load %arg1[%c0_9, %c0_10] : memref<2x512xf32, #tpu.memory_space<vmem>>, vector<2x512xf32>
    %19 = vector.broadcast %14 : vector<1x512xf32> to vector<2x512xf32>
    %20 = arith.mulf %18, %19 : vector<2x512xf32>
    %21 = vector.broadcast %17 : vector<1x512xf32> to vector<2x512xf32>
    %22 = arith.addf %20, %21 : vector<2x512xf32>
    %cst_11 = arith.constant 2.000000e-01 : f32
    %23 = vector.broadcast %cst_11 : f32 to vector<2x512xf32>
    %24 = arith.mulf %23, %22 : vector<2x512xf32>
    %25 = arith.maximumf %22, %24 : vector<2x512xf32>
    %26 = arith.truncf %25 : vector<2x512xf32> to vector<2x512xbf16>
    %c0_12 = arith.constant 0 : index
    %c0_13 = arith.constant 0 : index
    %27 = vector.load %arg5[%c0_12, %c0_13] : memref<512x128xbf16, #tpu.memory_space<vmem>>, vector<512x128xbf16>
    %cst_14 = arith.constant dense<0.000000e+00> : vector<2x128xf32>
    %28 = tpu.matmul %26, %27, %cst_14 {dimension_numbers = #tpu.dot_dimension_numbers<[1], [0], [0], [1], [0, 0, 1, 1], [], []>} : vector<2x512xbf16>, vector<512x128xbf16>, vector<2x128xf32> -> vector<2x128xf32>
    %c0_15 = arith.constant 0 : index
    %c0_16 = arith.constant 0 : index
    %29 = vector.load %arg6[%c0_15, %c0_16] : memref<1x128xf32, #tpu.memory_space<vmem>>, vector<1x128xf32>
    %30 = vector.broadcast %29 : vector<1x128xf32> to vector<2x128xf32>
    %31 = arith.addf %28, %30 : vector<2x128xf32>
    %c0_17 = arith.constant 0 : index
    %c0_18 = arith.constant 0 : index
    %32 = vector.load %arg7[%c0_17, %c0_18] : memref<2x128xf32, #tpu.memory_space<vmem>>, vector<2x128xf32>
    tpu.vector_store %arg7[%c0_17, %c0_18], %31 {strides = array<i32>} : memref<2x128xf32, #tpu.memory_space<vmem>>, vector<2x128xf32>,
    return
  }
  func.func @transform_0(%arg0: i32) -> (i32, i32) {
    %c0_i32 = arith.constant 0 : i32
    %c0_i32_0 = arith.constant 0 : i32
    return %arg0, %c0_i32 : i32, i32
  }
  func.func @transform_1(%arg0: i32) -> (i32, i32, i32) {
    %c0_i32 = arith.constant 0 : i32
    %c0_i32_0 = arith.constant 0 : i32
    %c0_i32_1 = arith.constant 0 : i32
    %c0_i32_2 = arith.constant 0 : i32
    return %c0_i32, %c0_i32_0, %c0_i32_1 : i32, i32, i32
  }
  func.func @transform_2(%arg0: i32) -> (i32, i32) {
    %c0_i32 = arith.constant 0 : i32
    %c0_i32_0 = arith.constant 0 : i32
    %c0_i32_1 = arith.constant 0 : i32
    return %c0_i32, %c0_i32_0 : i32, i32
  }
  func.func @transform_3(%arg0: i32) -> (i32, i32) {
    %c0_i32 = arith.constant 0 : i32
    %c0_i32_0 = arith.constant 0 : i32
    %c0_i32_1 = arith.constant 0 : i32
    return %c0_i32, %c0_i32_0 : i32, i32
  }
  func.func @transform_4(%arg0: i32) -> (i32, i32) {
    %c0_i32 = arith.constant 0 : i32
    %c0_i32_0 = arith.constant 0 : i32
    %c0_i32_1 = arith.constant 0 : i32
    return %c0_i32, %c0_i32_0 : i32, i32
  }
  func.func @transform_5(%arg0: i32) -> (i32, i32) {
    %c0_i32 = arith.constant 0 : i32
    %c0_i32_0 = arith.constant 0 : i32
    %c0_i32_1 = arith.constant 0 : i32
    return %c0_i32, %c0_i32_0 : i32, i32
  }
  func.func @transform_6(%arg0: i32) -> (i32, i32) {
    %c0_i32 = arith.constant 0 : i32
    %c0_i32_0 = arith.constant 0 : i32
    return %arg0, %c0_i32 : i32, i32
  }
}

</mosaic_0001>

<llo_original>
// kernel: patchgan_forward.7
$region0: #{patchgan_forward.7}
  #allocation0 [shape = 'u32[]', space=smem, size = 0x4, offset = 0x4, fixed_abs, tag = 'smem constant byte address 0x4 - core index']
  #allocation1 [shape = 'u32[144,128]{1,0:T(1,128)}', space=vmem, size = 0x12000, scoped, tag = 'internal scratch']
  #allocation2 [shape = 'f32[128,64]{1,0:T(8,128)}', space=vmem, size = 0x10000, scoped, tag = 'scratch operand']
  %s0 = inlined_call_operand.vmem [shape: bf16[128,128], index: 0, kind: input, shape index: {}]
  %s1 = inlined_call_operand.vmem [shape: bf16[128,64], index: 1, kind: input, shape index: {}]
  %s2 = inlined_call_operand.vmem [shape: f32[1,64], index: 2, kind: input, shape index: {}]
  %s3 = inlined_call_operand.vmem [shape: bf16[128,64], index: 3, kind: output, shape index: {}]
  %s4 = sld [smem:[#allocation0]]
  $region30: #{patchgan_forward.7} parent=0
    _
  %s6 = ssub.s32 1, %s4
  %s7 = scalar_select 0, %s6, %s4
  // Predicated region
  $region2: #{patchgan_forward.7} parent=0 // pred_check
    _
  $region3: #{patchgan_forward.7} parent=0 // pred_check_branch
    %9 = sbr.rel (0) target = $region5
  $region4: #{patchgan_forward.7} parent=0 // pred_region
    _
  $region5: #{patchgan_forward.7} parent=0 // pred_fallthru
    _
  // Predicated region
  $region6: #{patchgan_forward.7} parent=0 // pred_check
    _
  $region7: #{patchgan_forward.7} parent=0 // pred_check_branch
    %11 = sbr.rel (0) target = $region9
  $region8: #{patchgan_forward.7} parent=0 // pred_region
    _
  $region9: #{patchgan_forward.7} parent=0 // pred_fallthru
    _
  // Predicated region
  $region10: #{patchgan_forward.7} parent=0 // pred_check
    _
  $region11: #{patchgan_forward.7} parent=0 // pred_check_branch
    %13 = sbr.rel (0) target = $region13
  $region12: #{patchgan_forward.7} parent=0 // pred_region
    _
  $region13: #{patchgan_forward.7} parent=0 // pred_fallthru
    _
  %p15 = scmp.eq.s32.totalorder 0, 0
  // Predicated region
  $region14: #{patchgan_forward.7} parent=0 // pred_check
    %p16 = pneg %p15
  $region15: #{patchgan_forward.7} parent=0 // pred_check_branch
    %18 = sbr.rel (%p16) target = $region17
  $region16: #{patchgan_forward.7} parent=0 // pred_region
    %vm19 = vcmask 523264
    %20 = vst.msk [vmem:[#allocation2] sm:$0xff] %vm19, 0.0
    %21 = vst.msk [vmem:[#allocation2 + $0x8] sm:$0xff] %vm19, 0.0
    %22 = vst.msk [vmem:[#allocation2 + $0x10] sm:$0xff] %vm19, 0.0
    %23 = vst.msk [vmem:[#allocation2 + $0x18] sm:$0xff] %vm19, 0.0
    %24 = vst.msk [vmem:[#allocation2 + $0x20] sm:$0xff] %vm19, 0.0
    %25 = vst.msk [vmem:[#allocation2 + $0x28] sm:$0xff] %vm19, 0.0
    %26 = vst.msk [vmem:[#allocation2 + $0x30] sm:$0xff] %vm19, 0.0
    %27 = vst.msk [vmem:[#allocation2 + $0x38] sm:$0xff] %vm19, 0.0
    %28 = vst.msk [vmem:[#allocation2 + $0x40] sm:$0xff] %vm19, 0.0
    %29 = vst.msk [vmem:[#allocation2 + $0x48] sm:$0xff] %vm19, 0.0
    %30 = vst.msk [vmem:[#allocation2 + $0x50] sm:$0xff] %vm19, 0.0
    %31 = vst.msk [vmem:[#allocation2 + $0x58] sm:$0xff] %vm19, 0.0
    %32 = vst.msk [vmem:[#allocation2 + $0x60] sm:$0xff] %vm19, 0.0
    %33 = vst.msk [vmem:[#allocation2 + $0x68] sm:$0xff] %vm19, 0.0
    %34 = vst.msk [vmem:[#allocation2 + $0x70] sm:$0xff] %vm19, 0.0
    %35 = vst.msk [vmem:[#allocation2 + $0x78] sm:$0xff] %vm19, 0.0
  $region17: #{patchgan_forward.7} parent=0 // pred_fallthru
    _
  %v36 = vld [vmem:[#allocation2] sm:$0xff]
  %v37 = vld [vmem:[#allocation2 + $0x8] sm:$0xff]
  %v38 = vld [vmem:[#allocation2 + $0x10] sm:$0xff]
  %v39 = vld [vmem:[#allocation2 + $0x18] sm:$0xff]
  %v40 = vld [vmem:[#allocation2 + $0x20] sm:$0xff]
  %v41 = vld [vmem:[#allocation2 + $0x28] sm:$0xff]
  %v42 = vld [vmem:[#allocation2 + $0x30] sm:$0xff]
  %v43 = vld [vmem:[#allocation2 + $0x38] sm:$0xff]
  %v44 = vld [vmem:[#allocation2 + $0x40] sm:$0xff]
  %v45 = vld [vmem:[#allocation2 + $0x48] sm:$0xff]
  %v46 = vld [vmem:[#allocation2 + $0x50] sm:$0xff]
  %v47 = vld [vmem:[#allocation2 + $0x58] sm:$0xff]
  %v48 = vld [vmem:[#allocation2 + $0x60] sm:$0xff]
  %v49 = vld [vmem:[#allocation2 + $0x68] sm:$0xff]
  %v50 = vld [vmem:[#allocation2 + $0x70] sm:$0xff]
  %v51 = vld [vmem:[#allocation2 + $0x78] sm:$0xff]
  %v52 = vld [vmem:[%s0] sm:$0xf]
  %v53 = vld [vmem:[%s0 + $0x4] sm:$0xf]
  %v54 = vld [vmem:[%s0 + $0x8] sm:$0xf]
  %v55 = vld [vmem:[%s0 + $0xc] sm:$0xf]
  %v56 = vld [vmem:[%s0 + $0x10] sm:$0xf]
  %v57 = vld [vmem:[%s0 + $0x14] sm:$0xf]
  %v58 = vld [vmem:[%s0 + $0x18] sm:$0xf]
  %v59 = vld [vmem:[%s0 + $0x1c] sm:$0xf]
  %v60 = vld [vmem:[%s0 + $0x20] sm:$0xf]
  %v61 = vld [vmem:[%s0 + $0x24] sm:$0xf]
  %v62 = vld [vmem:[%s0 + $0x28] sm:$0xf]
  %v63 = vld [vmem:[%s0 + $0x2c] sm:$0xf]
  %v64 = vld [vmem:[%s0 + $0x30] sm:$0xf]
  %v65 = vld [vmem:[%s0 + $0x34] sm:$0xf]
  %v66 = vld [vmem:[%s0 + $0x38] sm:$0xf]
  %v67 = vld [vmem:[%s0 + $0x3c] sm:$0xf]
  %v68 = vld [vmem:[%s1] sm:$0xf]
  %v69 = vld [vmem:[%s1 + $0x4] sm:$0xf]
  %v70 = vld [vmem:[%s1 + $0x8] sm:$0xf]
  %v71 = vld [vmem:[%s1 + $0xc] sm:$0xf]
  %v72 = vld [vmem:[%s1 + $0x10] sm:$0xf]
  %v73 = vld [vmem:[%s1 + $0x14] sm:$0xf]
  %v74 = vld [vmem:[%s1 + $0x18] sm:$0xf]
  %v75 = vld [vmem:[%s1 + $0x1c] sm:$0xf]
  %v76 = vld [vmem:[%s1 + $0x20] sm:$0xf]
  %v77 = vld [vmem:[%s1 + $0x24] sm:$0xf]
  %v78 = vld [vmem:[%s1 + $0x28] sm:$0xf]
  %v79 = vld [vmem:[%s1 + $0x2c] sm:$0xf]
  %v80 = vld [vmem:[%s1 + $0x30] sm:$0xf]
  %v81 = vld [vmem:[%s1 + $0x34] sm:$0xf]
  %v82 = vld [vmem:[%s1 + $0x38] sm:$0xf]
  %v83 = vld [vmem:[%s1 + $0x3c] sm:$0xf]
  %v100 = vunpack.c.l.b16 %v52
  %v101 = vunpack.c.l.b16 %v53
  %v102 = vunpack.c.l.b16 %v54
  %v103 = vunpack.c.l.b16 %v55
  %v104 = vunpack.c.l.b16 %v56
  %v105 = vunpack.c.l.b16 %v57
  %v106 = vunpack.c.l.b16 %v58
  %v107 = vunpack.c.l.b16 %v59
  %v108 = vunpack.c.l.b16 %v60
  %v109 = vunpack.c.l.b16 %v61
  %v110 = vunpack.c.l.b16 %v62
  %v111 = vunpack.c.l.b16 %v63
  %v112 = vunpack.c.l.b16 %v64
  %v113 = vunpack.c.l.b16 %v65
  %v114 = vunpack.c.l.b16 %v66
  %v115 = vunpack.c.l.b16 %v67
  %v116 = vpack.c.b16 %v101, %v100
  %v117 = vpack.c.b16 %v103, %v102
  %v118 = vpack.c.b16 %v105, %v104
  %v119 = vpack.c.b16 %v107, %v106
  %v120 = vpack.c.b16 %v109, %v108
  %v121 = vpack.c.b16 %v111, %v110
  %v122 = vpack.c.b16 %v113, %v112
  %v123 = vpack.c.b16 %v115, %v114
  %v148 = vunpack.c.l.b16 %v68
  %v149 = vunpack.c.l.b16 %v69
  %v150 = vunpack.c.l.b16 %v70
  %v151 = vunpack.c.l.b16 %v71
  %v152 = vunpack.c.l.b16 %v72
  %v153 = vunpack.c.l.b16 %v73
  %v154 = vunpack.c.l.b16 %v74
  %v155 = vunpack.c.l.b16 %v75
  %v156 = vunpack.c.l.b16 %v76
  %v157 = vunpack.c.l.b16 %v77
  %v158 = vunpack.c.l.b16 %v78
  %v159 = vunpack.c.l.b16 %v79
  %v160 = vunpack.c.l.b16 %v80
  %v161 = vunpack.c.l.b16 %v81
  %v162 = vunpack.c.l.b16 %v82
  %v163 = vunpack.c.l.b16 %v83
  %v164 = vpack.c.b16 %v149, %v148
  %v165 = vpack.c.b16 %v151, %v150
  %v166 = vpack.c.b16 %v153, %v152
  %v167 = vpack.c.b16 %v155, %v154
  %v168 = vpack.c.b16 %v157, %v156
  %v169 = vpack.c.b16 %v159, %v158
  %v170 = vpack.c.b16 %v161, %v160
  %v171 = vpack.c.b16 %v163, %v162
  %180 = vmatprep.subr.bf16.mxu0 0
  %181 = vmatpush1.bf16.msra.mxu0 %v171
  %182 = vmatprep.subr.bf16.mxu0 0
  %183 = vmatpush1.bf16.msra.mxu0 %v170
  %184 = vmatprep.subr.bf16.mxu0 0
  %185 = vmatpush1.bf16.msra.mxu0 %v169
  %186 = vmatprep.subr.bf16.mxu0 0
  %187 = vmatpush1.bf16.msra.mxu0 %v168
  %188 = vmatprep.subr.bf16.mxu0 0
  %189 = vmatpush1.bf16.msra.mxu0 %v167
  %190 = vmatprep.subr.bf16.mxu0 0
  %191 = vmatpush1.bf16.msra.mxu0 %v166
  %192 = vmatprep.subr.bf16.mxu0 0
  %193 = vmatpush1.bf16.msra.mxu0 %v165
  %194 = vmatprep.subr.bf16.mxu0 0
  %195 = vmatpush1.bf16.msra.mxu0 %v164
  %196 = vmatprep.subr.bf16.mxu0 0
  %197 = vmatpush2.bf16.msra.mxu0 0
  %198 = vmatprep.subr.bf16.mxu0 0
  %199 = vmatpush2.bf16.msra.mxu0 0
  %200 = vmatprep.subr.bf16.mxu0 0
  %201 = vmatpush2.bf16.msra.mxu0 0
  %202 = vmatprep.subr.bf16.mxu0 0
  %203 = vmatpush2.bf16.msra.mxu0 0
  %204 = vmatprep.subr.bf16.mxu0 0
  %205 = vmatpush2.bf16.msra.mxu0 0
  %206 = vmatprep.subr.bf16.mxu0 0
  %207 = vmatpush2.bf16.msra.mxu0 0
  %208 = vmatprep.subr.bf16.mxu0 0
  %209 = vmatpush2.bf16.msra.mxu0 0
  %210 = vmatprep.subr.bf16.mxu0 0
  %211 = vmatpush2.bf16.msra.mxu0 0
  %212 = vmatprep.mubr.bf16.mxu0 0
  %213 = vmatmul.mubr.bf16.gmra.mxu0 %v116
  %v214 = vpop.f32.mrf.mxu0
  %v215 = vadd.f32 0.0, %v214
  %v216 = vpop.f32.mrf.mxu0
  %v217 = vpop.f32.mrf.mxu0
  %v218 = vadd.f32 0.0, %v217
  %v219 = vpop.f32.mrf.mxu0
  %220 = vmatprep.mubr.bf16.mxu0 0
  %221 = vmatmul.mubr.bf16.gmra.mxu0 %v117
  %v222 = vpop.f32.mrf.mxu0
  %v223 = vadd.f32 0.0, %v222
  %v224 = vpop.f32.mrf.mxu0
  %v225 = vpop.f32.mrf.mxu0
  %v226 = vadd.f32 0.0, %v225
  %v227 = vpop.f32.mrf.mxu0
  %228 = vmatprep.mubr.bf16.mxu0 0
  %229 = vmatmul.mubr.bf16.gmra.mxu0 %v118
  %v230 = vpop.f32.mrf.mxu0
  %v231 = vadd.f32 0.0, %v230
  %v232 = vpop.f32.mrf.mxu0
  %v233 = vpop.f32.mrf.mxu0
  %v234 = vadd.f32 0.0, %v233
  %v235 = vpop.f32.mrf.mxu0
  %236 = vmatprep.mubr.bf16.mxu0 0
  %237 = vmatmul.mubr.bf16.gmra.mxu0 %v119
  %v238 = vpop.f32.mrf.mxu0
  %v239 = vadd.f32 0.0, %v238
  %v240 = vpop.f32.mrf.mxu0
  %v241 = vpop.f32.mrf.mxu0
  %v242 = vadd.f32 0.0, %v241
  %v243 = vpop.f32.mrf.mxu0
  %244 = vmatprep.mubr.bf16.mxu0 0
  %245 = vmatmul.mubr.bf16.gmra.mxu0 %v120
  %v246 = vpop.f32.mrf.mxu0
  %v247 = vadd.f32 0.0, %v246
  %v248 = vpop.f32.mrf.mxu0
  %v249 = vpop.f32.mrf.mxu0
  %v250 = vadd.f32 0.0, %v249
  %v251 = vpop.f32.mrf.mxu0
  %252 = vmatprep.mubr.bf16.mxu0 0
  %253 = vmatmul.mubr.bf16.gmra.mxu0 %v121
  %v254 = vpop.f32.mrf.mxu0
  %v255 = vadd.f32 0.0, %v254
  %v256 = vpop.f32.mrf.mxu0
  %v257 = vpop.f32.mrf.mxu0
  %v258 = vadd.f32 0.0, %v257
  %v259 = vpop.f32.mrf.mxu0
  %260 = vmatprep.mubr.bf16.mxu0 0
  %261 = vmatmul.mubr.bf16.gmra.mxu0 %v122
  %v262 = vpop.f32.mrf.mxu0
  %v263 = vadd.f32 0.0, %v262
  %v264 = vpop.f32.mrf.mxu0
  %v265 = vpop.f32.mrf.mxu0
  %v266 = vadd.f32 0.0, %v265
  %v267 = vpop.f32.mrf.mxu0
  %268 = vmatprep.mubr.bf16.mxu0 0
  %269 = vmatmul.mubr.bf16.gmra.mxu0 %v123
  %v270 = vpop.f32.mrf.mxu0
  %v271 = vadd.f32 0.0, %v270
  %v272 = vpop.f32.mrf.mxu0
  %v273 = vpop.f32.mrf.mxu0
  %v274 = vadd.f32 0.0, %v273
  %v275 = vpop.f32.mrf.mxu0
  %276 = vdwg.mxu0
  %v277 = vadd.f32 %v36, %v215
  %v278 = vadd.f32 %v37, %v218
  %v279 = vadd.f32 %v38, %v223
  %v280 = vadd.f32 %v39, %v226
  %v281 = vadd.f32 %v40, %v231
  %v282 = vadd.f32 %v41, %v234
  %v283 = vadd.f32 %v42, %v239
  %v284 = vadd.f32 %v43, %v242
  %v285 = vadd.f32 %v44, %v247
  %v286 = vadd.f32 %v45, %v250
  %v287 = vadd.f32 %v46, %v255
  %v288 = vadd.f32 %v47, %v258
  %v289 = vadd.f32 %v48, %v263
  %v290 = vadd.f32 %v49, %v266
  %v291 = vadd.f32 %v50, %v271
  %v292 = vadd.f32 %v51, %v274
  %vm293 = vcmask 523264
  %294 = vst.msk [vmem:[#allocation2] sm:$0xff] %vm293, %v277
  %295 = vst.msk [vmem:[#allocation2 + $0x8] sm:$0xff] %vm293, %v278
  %296 = vst.msk [vmem:[#allocation2 + $0x10] sm:$0xff] %vm293, %v279
  %297 = vst.msk [vmem:[#allocation2 + $0x18] sm:$0xff] %vm293, %v280
  %298 = vst.msk [vmem:[#allocation2 + $0x20] sm:$0xff] %vm293, %v281
  %299 = vst.msk [vmem:[#allocation2 + $0x28] sm:$0xff] %vm293, %v282
  %300 = vst.msk [vmem:[#allocation2 + $0x30] sm:$0xff] %vm293, %v283
  %301 = vst.msk [vmem:[#allocation2 + $0x38] sm:$0xff] %vm293, %v284
  %302 = vst.msk [vmem:[#allocation2 + $0x40] sm:$0xff] %vm293, %v285
  %303 = vst.msk [vmem:[#allocation2 + $0x48] sm:$0xff] %vm293, %v286
  %304 = vst.msk [vmem:[#allocation2 + $0x50] sm:$0xff] %vm293, %v287
  %305 = vst.msk [vmem:[#allocation2 + $0x58] sm:$0xff] %vm293, %v288
  %306 = vst.msk [vmem:[#allocation2 + $0x60] sm:$0xff] %vm293, %v289
  %307 = vst.msk [vmem:[#allocation2 + $0x68] sm:$0xff] %vm293, %v290
  %308 = vst.msk [vmem:[#allocation2 + $0x70] sm:$0xff] %vm293, %v291
  %309 = vst.msk [vmem:[#allocation2 + $0x78] sm:$0xff] %vm293, %v292
  // Predicated region
  $region18: #{patchgan_forward.7} parent=0 // pred_check
    %p310 = pneg %p15
  $region19: #{patchgan_forward.7} parent=0 // pred_check_branch
    %312 = sbr.rel (%p310) target = $region21
  $region20: #{patchgan_forward.7} parent=0 // pred_region
    %v313 = vld [vmem:[#allocation2] sm:$0xff]
    %v314 = vld [vmem:[#allocation2 + $0x8] sm:$0xff]
    %v315 = vld [vmem:[#allocation2 + $0x10] sm:$0xff]
    %v316 = vld [vmem:[#allocation2 + $0x18] sm:$0xff]
    %v317 = vld [vmem:[#allocation2 + $0x20] sm:$0xff]
    %v318 = vld [vmem:[#allocation2 + $0x28] sm:$0xff]
    %v319 = vld [vmem:[#allocation2 + $0x30] sm:$0xff]
    %v320 = vld [vmem:[#allocation2 + $0x38] sm:$0xff]
    %v321 = vld [vmem:[#allocation2 + $0x40] sm:$0xff]
    %v322 = vld [vmem:[#allocation2 + $0x48] sm:$0xff]
    %v323 = vld [vmem:[#allocation2 + $0x50] sm:$0xff]
    %v324 = vld [vmem:[#allocation2 + $0x58] sm:$0xff]
    %v325 = vld [vmem:[#allocation2 + $0x60] sm:$0xff]
    %v326 = vld [vmem:[#allocation2 + $0x68] sm:$0xff]
    %v327 = vld [vmem:[#allocation2 + $0x70] sm:$0xff]
    %v328 = vld [vmem:[#allocation2 + $0x78] sm:$0xff]
    %v329 = vld [vmem:[%s2] sm:$0x1]
    %v331 = vlaneseq
    %v332 = vshrl.u32 %v331, 7
    %v333 = vsub.s32 0, %v332
    %v334 = vrot.slane %v329, %v333
    %v336 = vadd.f32 %v313, %v334
    %v337 = vadd.f32 %v314, %v334
    %v338 = vadd.f32 %v315, %v334
    %v339 = vadd.f32 %v316, %v334
    %v340 = vadd.f32 %v317, %v334
    %v341 = vadd.f32 %v318, %v334
    %v342 = vadd.f32 %v319, %v334
    %v343 = vadd.f32 %v320, %v334
    %v344 = vadd.f32 %v321, %v334
    %v345 = vadd.f32 %v322, %v334
    %v346 = vadd.f32 %v323, %v334
    %v347 = vadd.f32 %v324, %v334
    %v348 = vadd.f32 %v325, %v334
    %v349 = vadd.f32 %v326, %v334
    %v350 = vadd.f32 %v327, %v334
    %v351 = vadd.f32 %v328, %v334
    %v352 = vmul.f32 %v336, 0.2
    %v353 = vmul.f32 %v337, 0.2
    %v354 = vmul.f32 %v338, 0.2
    %v355 = vmul.f32 %v339, 0.2
    %v356 = vmul.f32 %v340, 0.2
    %v357 = vmul.f32 %v341, 0.2
    %v358 = vmul.f32 %v342, 0.2
    %v359 = vmul.f32 %v343, 0.2
    %v360 = vmul.f32 %v344, 0.2
    %v361 = vmul.f32 %v345, 0.2
    %v362 = vmul.f32 %v346, 0.2
    %v363 = vmul.f32 %v347, 0.2
    %v364 = vmul.f32 %v348, 0.2
    %v365 = vmul.f32 %v349, 0.2
    %v366 = vmul.f32 %v350, 0.2
    %v367 = vmul.f32 %v351, 0.2
    %v368 = vmax.f32 %v336, %v352
    %v369 = vmax.f32 %v337, %v353
    %v370 = vmax.f32 %v338, %v354
    %v371 = vmax.f32 %v339, %v355
    %v372 = vmax.f32 %v340, %v356
    %v373 = vmax.f32 %v341, %v357
    %v374 = vmax.f32 %v342, %v358
    %v375 = vmax.f32 %v343, %v359
    %v376 = vmax.f32 %v344, %v360
    %v377 = vmax.f32 %v345, %v361
    %v378 = vmax.f32 %v346, %v362
    %v379 = vmax.f32 %v347, %v363
    %v380 = vmax.f32 %v348, %v364
    %v381 = vmax.f32 %v349, %v365
    %v382 = vmax.f32 %v350, %v366
    %v383 = vmax.f32 %v351, %v367
    %v384 = vpack.c.bf16 %v369, %v368
    %v385 = vpack.c.bf16 %v371, %v370
    %v386 = vpack.c.bf16 %v373, %v372
    %v387 = vpack.c.bf16 %v375, %v374
    %v388 = vpack.c.bf16 %v377, %v376
    %v389 = vpack.c.bf16 %v379, %v378
    %v390 = vpack.c.bf16 %v381, %v380
    %v391 = vpack.c.bf16 %v383, %v382
    %v400 = vunpack.c.l.b16 %v384
    %v401 = vunpack.c.h.b16 %v384
    %v402 = vunpack.c.l.b16 %v385
    %v403 = vunpack.c.h.b16 %v385
    %v404 = vunpack.c.l.b16 %v386
    %v405 = vunpack.c.h.b16 %v386
    %v406 = vunpack.c.l.b16 %v387
    %v407 = vunpack.c.h.b16 %v387
    %v408 = vunpack.c.l.b16 %v388
    %v409 = vunpack.c.h.b16 %v388
    %v410 = vunpack.c.l.b16 %v389
    %v411 = vunpack.c.h.b16 %v389
    %v412 = vunpack.c.l.b16 %v390
    %v413 = vunpack.c.h.b16 %v390
    %v414 = vunpack.c.l.b16 %v391
    %v415 = vunpack.c.h.b16 %v391
    %v416 = vpack.c.b16 %v400, %v400
    %v417 = vpack.c.b16 %v401, %v401
    %v418 = vpack.c.b16 %v402, %v402
    %v419 = vpack.c.b16 %v403, %v403
    %v420 = vpack.c.b16 %v404, %v404
    %v421 = vpack.c.b16 %v405, %v405
    %v422 = vpack.c.b16 %v406, %v406
    %v423 = vpack.c.b16 %v407, %v407
    %v424 = vpack.c.b16 %v408, %v408
    %v425 = vpack.c.b16 %v409, %v409
    %v426 = vpack.c.b16 %v410, %v410
    %v427 = vpack.c.b16 %v411, %v411
    %v428 = vpack.c.b16 %v412, %v412
    %v429 = vpack.c.b16 %v413, %v413
    %v430 = vpack.c.b16 %v414, %v414
    %v431 = vpack.c.b16 %v415, %v415
    %vm448 = vcmask 519168
    %449 = vst.msk [vmem:[%s3] sm:$0xf] %vm448, %v416
    %450 = vst.msk [vmem:[%s3 + $0x4] sm:$0xf] %vm448, %v417
    %451 = vst.msk [vmem:[%s3 + $0x8] sm:$0xf] %vm448, %v418
    %452 = vst.msk [vmem:[%s3 + $0xc] sm:$0xf] %vm448, %v419
    %453 = vst.msk [vmem:[%s3 + $0x10] sm:$0xf] %vm448, %v420
    %454 = vst.msk [vmem:[%s3 + $0x14] sm:$0xf] %vm448, %v421
    %455 = vst.msk [vmem:[%s3 + $0x18] sm:$0xf] %vm448, %v422
    %456 = vst.msk [vmem:[%s3 + $0x1c] sm:$0xf] %vm448, %v423
    %457 = vst.msk [vmem:[%s3 + $0x20] sm:$0xf] %vm448, %v424
    %458 = vst.msk [vmem:[%s3 + $0x24] sm:$0xf] %vm448, %v425
    %459 = vst.msk [vmem:[%s3 + $0x28] sm:$0xf] %vm448, %v426
    %460 = vst.msk [vmem:[%s3 + $0x2c] sm:$0xf] %vm448, %v427
    %461 = vst.msk [vmem:[%s3 + $0x30] sm:$0xf] %vm448, %v428
    %462 = vst.msk [vmem:[%s3 + $0x34] sm:$0xf] %vm448, %v429
    %463 = vst.msk [vmem:[%s3 + $0x38] sm:$0xf] %vm448, %v430
    %464 = vst.msk [vmem:[%s3 + $0x3c] sm:$0xf] %vm448, %v431
  $region21: #{patchgan_forward.7} parent=0 // pred_fallthru
    _
  // Predicated region
  $region22: #{patchgan_forward.7} parent=0 // pred_check
    _
  $region23: #{patchgan_forward.7} parent=0 // pred_check_branch
    %466 = sbr.rel (0) target = $region25
  $region24: #{patchgan_forward.7} parent=0 // pred_region
    _
  $region25: #{patchgan_forward.7} parent=0 // pred_fallthru
    _
  // Predicated region
  $region26: #{patchgan_forward.7} parent=0 // pred_check
    _
  $region27: #{patchgan_forward.7} parent=0 // pred_check_branch
    %468 = sbr.rel (0) target = $region29
  $region28: #{patchgan_forward.7} parent=0 // pred_region
    _
  $region29: #{patchgan_forward.7} parent=0 // pred_fallthru
    _

// kernel: patchgan_forward.9
$region0: #{patchgan_forward.9}
  #allocation0 [shape = 'u32[]', space=smem, size = 0x4, offset = 0x4, fixed_abs, tag = 'smem constant byte address 0x4 - core index']
  #allocation1 [shape = 'u32[144,128]{1,0:T(1,128)}', space=vmem, size = 0x12000, scoped, tag = 'internal scratch']
  %s0 = inlined_call_operand.vmem [shape: f32[32,128], index: 0, kind: input, shape index: {}]
  %s1 = inlined_call_operand.vmem [shape: f32[1,2,128], index: 1, kind: input, shape index: {}]
  %s2 = inlined_call_operand.vmem [shape: f32[1,128], index: 2, kind: input, shape index: {}]
  %s3 = inlined_call_operand.vmem [shape: f32[1,128], index: 3, kind: input, shape index: {}]
  %s4 = inlined_call_operand.vmem [shape: bf16[32,128], index: 4, kind: output, shape index: {}]
  %s5 = sld [smem:[#allocation0]]
  $region26: #{patchgan_forward.9} parent=0
    _
  %s7 = ssub.s32 1, %s5
  %s8 = scalar_select 0, %s7, %s5
  // Predicated region
  $region2: #{patchgan_forward.9} parent=0 // pred_check
    _
  $region3: #{patchgan_forward.9} parent=0 // pred_check_branch
    %10 = sbr.rel (0) target = $region5
  $region4: #{patchgan_forward.9} parent=0 // pred_region
    _
  $region5: #{patchgan_forward.9} parent=0 // pred_fallthru
    _
  // Predicated region
  $region6: #{patchgan_forward.9} parent=0 // pred_check
    _
  $region7: #{patchgan_forward.9} parent=0 // pred_check_branch
    %12 = sbr.rel (0) target = $region9
  $region8: #{patchgan_forward.9} parent=0 // pred_region
    _
  $region9: #{patchgan_forward.9} parent=0 // pred_fallthru
    _
  // Predicated region
  $region10: #{patchgan_forward.9} parent=0 // pred_check
    _
  $region11: #{patchgan_forward.9} parent=0 // pred_check_branch
    %14 = sbr.rel (0) target = $region13
  $region12: #{patchgan_forward.9} parent=0 // pred_region
    _
  $region13: #{patchgan_forward.9} parent=0 // pred_fallthru
    _
  // Predicated region
  $region14: #{patchgan_forward.9} parent=0 // pred_check
    _
  $region15: #{patchgan_forward.9} parent=0 // pred_check_branch
    %16 = sbr.rel (0) target = $region17
  $region16: #{patchgan_forward.9} parent=0 // pred_region
    _
  $region17: #{patchgan_forward.9} parent=0 // pred_fallthru
    _
  %v17 = vld [vmem:[%s1] sm:$0x3]
  %v18 = vadd.f32 %v17, 0.0
  %v19 = vmul.f32 %v18, 0.03125
  %v20 = vmul.f32 %v19, %v19
  %v22 = vrot.slane %v20, 7
  %v24 = vsub.f32 %v19, %v22
  %v25 = vadd.f32 %v24, 1e-05
  %v26 = vrsqrt.pop %v25
  %v27 = vld [vmem:[%s2] sm:$0x1]
  %v30 = vunpack.c.l.s4 1966171168
  %v31 = vunpack.c.0.s8 %v30
  %v32 = vlaneseq
  %v33 = vshrl.u32 %v32, 7
  %v34 = vsub.s32 %v31, %v33
  %v35 = vrot.slane %v26, %v34
  %v36 = vcombine.high %v35, %v35
  %v38 = vunpack.c.l.s4 1966171168
  %v39 = vunpack.c.0.s8 %v38
  %v40 = vlaneseq
  %v41 = vshrl.u32 %v40, 7
  %v42 = vsub.s32 %v39, %v41
  %v43 = vrot.slane %v36, %v42
  %v45 = vmul.f32 %v27, %v43
  %v46 = vld [vmem:[%s3] sm:$0x1]
  %v47 = vmul.f32 %v19, %v45
  %v48 = vsub.f32 %v46, %v47
  %v49 = vld [vmem:[%s0] sm:$0xff]
  %v50 = vld [vmem:[%s0 + $0x8] sm:$0xff]
  %v51 = vld [vmem:[%s0 + $0x10] sm:$0xff]
  %v52 = vld [vmem:[%s0 + $0x18] sm:$0xff]
  %v54 = vlaneseq
  %v55 = vshrl.u32 %v54, 7
  %v56 = vsub.s32 0, %v55
  %v57 = vrot.slane %v45, %v56
  %v59 = vmul.f32 %v49, %v57
  %v60 = vmul.f32 %v50, %v57
  %v61 = vmul.f32 %v51, %v57
  %v62 = vmul.f32 %v52, %v57
  %v64 = vlaneseq
  %v65 = vshrl.u32 %v64, 7
  %v66 = vsub.s32 0, %v65
  %v67 = vrot.slane %v48, %v66
  %v69 = vadd.f32 %v59, %v67
  %v70 = vadd.f32 %v60, %v67
  %v71 = vadd.f32 %v61, %v67
  %v72 = vadd.f32 %v62, %v67
  %v73 = vmul.f32 %v69, 0.2
  %v74 = vmul.f32 %v70, 0.2
  %v75 = vmul.f32 %v71, 0.2
  %v76 = vmul.f32 %v72, 0.2
  %v77 = vmax.f32 %v69, %v73
  %v78 = vmax.f32 %v70, %v74
  %v79 = vmax.f32 %v71, %v75
  %v80 = vmax.f32 %v72, %v76
  %v81 = vpack.c.bf16 %v78, %v77
  %v82 = vpack.c.bf16 %v80, %v79
  %v85 = vunpack.c.l.b16 %v81
  %v86 = vunpack.c.h.b16 %v81
  %v87 = vunpack.c.l.b16 %v82
  %v88 = vunpack.c.h.b16 %v82
  %v89 = vpack.c.b16 %v85, %v85
  %v90 = vpack.c.b16 %v86, %v86
  %v91 = vpack.c.b16 %v87, %v87
  %v92 = vpack.c.b16 %v88, %v88
  %97 = vst [vmem:[%s4] sm:$0xf] %v89
  %98 = vst [vmem:[%s4 + $0x4] sm:$0xf] %v90
  %99 = vst [vmem:[%s4 + $0x8] sm:$0xf] %v91
  %100 = vst [vmem:[%s4 + $0xc] sm:$0xf] %v92
  // Predicated region
  $region18: #{patchgan_forward.9} parent=0 // pred_check
    _
  $region19: #{patchgan_forward.9} parent=0 // pred_check_branch
    %102 = sbr.rel (0) target = $region21
  $region20: #{patchgan_forward.9} parent=0 // pred_region
    _
  $region21: #{patchgan_forward.9} parent=0 // pred_fallthru
    _
  // Predicated region
  $region22: #{patchgan_forward.9} parent=0 // pred_check
    _
  $region23: #{patchgan_forward.9} parent=0 // pred_check_branch
    %104 = sbr.rel (0) target = $region25
  $region24: #{patchgan_forward.9} parent=0 // pred_region
    _
  $region25: #{patchgan_forward.9} parent=0 // pred_fallthru
    _

// kernel: patchgan_forward.8
$region0: #{patchgan_forward.8}
  #allocation0 [shape = 'u32[]', space=smem, size = 0x4, offset = 0x4, fixed_abs, tag = 'smem constant byte address 0x4 - core index']
  #allocation1 [shape = 'u32[144,128]{1,0:T(1,128)}', space=vmem, size = 0x12000, scoped, tag = 'internal scratch']
  #allocation2 [shape = 'f32[32,128]{1,0:T(8,128)}', space=vmem, size = 0x4000, scoped, tag = 'scratch operand']
  %s0 = inlined_call_operand.vmem [shape: bf16[32,1024], index: 0, kind: input, shape index: {}]
  %s1 = inlined_call_operand.vmem [shape: bf16[1024,128], index: 1, kind: input, shape index: {}]
  %s2 = inlined_call_operand.vmem [shape: f32[32,128], index: 2, kind: output, shape index: {0}]
  %s3 = inlined_call_operand.vmem [shape: f32[1,2,128], index: 3, kind: output, shape index: {1}]
  %4 = xla_tuple %s2, %s3
  %s5 = sld [smem:[#allocation0]]
  $region34: #{patchgan_forward.8} parent=0
    _
  %s7 = ssub.s32 1, %s5
  %s8 = scalar_select 0, %s7, %s5
  // Predicated region
  $region2: #{patchgan_forward.8} parent=0 // pred_check
    _
  $region3: #{patchgan_forward.8} parent=0 // pred_check_branch
    %10 = sbr.rel (0) target = $region5
  $region4: #{patchgan_forward.8} parent=0 // pred_region
    _
  $region5: #{patchgan_forward.8} parent=0 // pred_fallthru
    _
  // Predicated region
  $region6: #{patchgan_forward.8} parent=0 // pred_check
    _
  $region7: #{patchgan_forward.8} parent=0 // pred_check_branch
    %12 = sbr.rel (0) target = $region9
  $region8: #{patchgan_forward.8} parent=0 // pred_region
    _
  $region9: #{patchgan_forward.8} parent=0 // pred_fallthru
    _
  %p14 = scmp.eq.s32.totalorder 0, 0
  // Predicated region
  $region10: #{patchgan_forward.8} parent=0 // pred_check
    %p15 = pneg %p14
  $region11: #{patchgan_forward.8} parent=0 // pred_check_branch
    %17 = sbr.rel (%p15) target = $region13
  $region12: #{patchgan_forward.8} parent=0 // pred_region
    %18 = vst [vmem:[#allocation2] sm:$0xff] 0.0
    %19 = vst [vmem:[#allocation2 + $0x8] sm:$0xff] 0.0
    %20 = vst [vmem:[#allocation2 + $0x10] sm:$0xff] 0.0
    %21 = vst [vmem:[#allocation2 + $0x18] sm:$0xff] 0.0
  $region13: #{patchgan_forward.8} parent=0 // pred_fallthru
    _
  %v22 = vld [vmem:[#allocation2] sm:$0xff]
  %v23 = vld [vmem:[#allocation2 + $0x8] sm:$0xff]
  %v24 = vld [vmem:[#allocation2 + $0x10] sm:$0xff]
  %v25 = vld [vmem:[#allocation2 + $0x18] sm:$0xff]
  %v26 = vld [vmem:[%s0] sm:$0xff]
  %v27 = vld [vmem:[%s0 + $0x8] sm:$0xff]
  %v28 = vld [vmem:[%s0 + $0x10] sm:$0xff]
  %v29 = vld [vmem:[%s0 + $0x18] sm:$0xff]
  %v30 = vld [vmem:[%s0 + $0x20] sm:$0xff]
  %v31 = vld [vmem:[%s0 + $0x28] sm:$0xff]
  %v32 = vld [vmem:[%s0 + $0x30] sm:$0xff]
  %v33 = vld [vmem:[%s0 + $0x38] sm:$0xff]
  %v34 = vld [vmem:[%s0 + $0x40] sm:$0xff]
  %v35 = vld [vmem:[%s0 + $0x48] sm:$0xff]
  %v36 = vld [vmem:[%s0 + $0x50] sm:$0xff]
  %v37 = vld [vmem:[%s0 + $0x58] sm:$0xff]
  %v38 = vld [vmem:[%s0 + $0x60] sm:$0xff]
  %v39 = vld [vmem:[%s0 + $0x68] sm:$0xff]
  %v40 = vld [vmem:[%s0 + $0x70] sm:$0xff]
  %v41 = vld [vmem:[%s0 + $0x78] sm:$0xff]
  %v42 = vld [vmem:[%s1] sm:$0xf]
  %v43 = vld [vmem:[%s1 + $0x4] sm:$0xf]
  %v44 = vld [vmem:[%s1 + $0x8] sm:$0xf]
  %v45 = vld [vmem:[%s1 + $0xc] sm:$0xf]
  %v46 = vld [vmem:[%s1 + $0x10] sm:$0xf]
  %v47 = vld [vmem:[%s1 + $0x14] sm:$0xf]
  %v48 = vld [vmem:[%s1 + $0x18] sm:$0xf]
  %v49 = vld [vmem:[%s1 + $0x1c] sm:$0xf]
  %v50 = vld [vmem:[%s1 + $0x20] sm:$0xf]
  %v51 = vld [vmem:[%s1 + $0x24] sm:$0xf]
  %v52 = vld [vmem:[%s1 + $0x28] sm:$0xf]
  %v53 = vld [vmem:[%s1 + $0x2c] sm:$0xf]
  %v54 = vld [vmem:[%s1 + $0x30] sm:$0xf]
  %v55 = vld [vmem:[%s1 + $0x34] sm:$0xf]
  %v56 = vld [vmem:[%s1 + $0x38] sm:$0xf]
  %v57 = vld [vmem:[%s1 + $0x3c] sm:$0xf]
  %v58 = vld [vmem:[%s1 + $0x40] sm:$0xf]
  %v59 = vld [vmem:[%s1 + $0x44] sm:$0xf]
  %v60 = vld [vmem:[%s1 + $0x48] sm:$0xf]
  %v61 = vld [vmem:[%s1 + $0x4c] sm:$0xf]
  %v62 = vld [vmem:[%s1 + $0x50] sm:$0xf]
  %v63 = vld [vmem:[%s1 + $0x54] sm:$0xf]
  %v64 = vld [vmem:[%s1 + $0x58] sm:$0xf]
  %v65 = vld [vmem:[%s1 + $0x5c] sm:$0xf]
  %v66 = vld [vmem:[%s1 + $0x60] sm:$0xf]
  %v67 = vld [vmem:[%s1 + $0x64] sm:$0xf]
  %v68 = vld [vmem:[%s1 + $0x68] sm:$0xf]
  %v69 = vld [vmem:[%s1 + $0x6c] sm:$0xf]
  %v70 = vld [vmem:[%s1 + $0x70] sm:$0xf]
  %v71 = vld [vmem:[%s1 + $0x74] sm:$0xf]
  %v72 = vld [vmem:[%s1 + $0x78] sm:$0xf]
  %v73 = vld [vmem:[%s1 + $0x7c] sm:$0xf]
  %v74 = vld [vmem:[%s1 + $0x80] sm:$0xf]
  %v75 = vld [vmem:[%s1 + $0x84] sm:$0xf]
  %v76 = vld [vmem:[%s1 + $0x88] sm:$0xf]
  %v77 = vld [vmem:[%s1 + $0x8c] sm:$0xf]
  %v78 = vld [vmem:[%s1 + $0x90] sm:$0xf]
  %v79 = vld [vmem:[%s1 + $0x94] sm:$0xf]
  %v80 = vld [vmem:[%s1 + $0x98] sm:$0xf]
  %v81 = vld [vmem:[%s1 + $0x9c] sm:$0xf]
  %v82 = vld [vmem:[%s1 + $0xa0] sm:$0xf]
  %v83 = vld [vmem:[%s1 + $0xa4] sm:$0xf]
  %v84 = vld [vmem:[%s1 + $0xa8] sm:$0xf]
  %v85 = vld [vmem:[%s1 + $0xac] sm:$0xf]
  %v86 = vld [vmem:[%s1 + $0xb0] sm:$0xf]
  %v87 = vld [vmem:[%s1 + $0xb4] sm:$0xf]
  %v88 = vld [vmem:[%s1 + $0xb8] sm:$0xf]
  %v89 = vld [vmem:[%s1 + $0xbc] sm:$0xf]
  %v90 = vld [vmem:[%s1 + $0xc0] sm:$0xf]
  %v91 = vld [vmem:[%s1 + $0xc4] sm:$0xf]
  %v92 = vld [vmem:[%s1 + $0xc8] sm:$0xf]
  %v93 = vld [vmem:[%s1 + $0xcc] sm:$0xf]
  %v94 = vld [vmem:[%s1 + $0xd0] sm:$0xf]
  %v95 = vld [vmem:[%s1 + $0xd4] sm:$0xf]
  %v96 = vld [vmem:[%s1 + $0xd8] sm:$0xf]
  %v97 = vld [vmem:[%s1 + $0xdc] sm:$0xf]
  %v98 = vld [vmem:[%s1 + $0xe0] sm:$0xf]
  %v99 = vld [vmem:[%s1 + $0xe4] sm:$0xf]
  %v100 = vld [vmem:[%s1 + $0xe8] sm:$0xf]
  %v101 = vld [vmem:[%s1 + $0xec] sm:$0xf]
  %v102 = vld [vmem:[%s1 + $0xf0] sm:$0xf]
  %v103 = vld [vmem:[%s1 + $0xf4] sm:$0xf]
  %v104 = vld [vmem:[%s1 + $0xf8] sm:$0xf]
  %v105 = vld [vmem:[%s1 + $0xfc] sm:$0xf]
  %v106 = vld [vmem:[%s1 + $0x100] sm:$0xf]
  %v107 = vld [vmem:[%s1 + $0x104] sm:$0xf]
  %v108 = vld [vmem:[%s1 + $0x108] sm:$0xf]
  %v109 = vld [vmem:[%s1 + $0x10c] sm:$0xf]
  %v110 = vld [vmem:[%s1 + $0x110] sm:$0xf]
  %v111 = vld [vmem:[%s1 + $0x114] sm:$0xf]
  %v112 = vld [vmem:[%s1 + $0x118] sm:$0xf]
  %v113 = vld [vmem:[%s1 + $0x11c] sm:$0xf]
  %v114 = vld [vmem:[%s1 + $0x120] sm:$0xf]
  %v115 = vld [vmem:[%s1 + $0x124] sm:$0xf]
  %v116 = vld [vmem:[%s1 + $0x128] sm:$0xf]
  %v117 = vld [vmem:[%s1 + $0x12c] sm:$0xf]
  %v118 = vld [vmem:[%s1 + $0x130] sm:$0xf]
  %v119 = vld [vmem:[%s1 + $0x134] sm:$0xf]
  %v120 = vld [vmem:[%s1 + $0x138] sm:$0xf]
  %v121 = vld [vmem:[%s1 + $0x13c] sm:$0xf]
  %v122 = vld [vmem:[%s1 + $0x140] sm:$0xf]
  %v123 = vld [vmem:[%s1 + $0x144] sm:$0xf]
  %v124 = vld [vmem:[%s1 + $0x148] sm:$0xf]
  %v125 = vld [vmem:[%s1 + $0x14c] sm:$0xf]
  %v126 = vld [vmem:[%s1 + $0x150] sm:$0xf]
  %v127 = vld [vmem:[%s1 + $0x154] sm:$0xf]
  %v128 = vld [vmem:[%s1 + $0x158] sm:$0xf]
  %v129 = vld [vmem:[%s1 + $0x15c] sm:$0xf]
  %v130 = vld [vmem:[%s1 + $0x160] sm:$0xf]
  %v131 = vld [vmem:[%s1 + $0x164] sm:$0xf]
  %v132 = vld [vmem:[%s1 + $0x168] sm:$0xf]
  %v133 = vld [vmem:[%s1 + $0x16c] sm:$0xf]
  %v134 = vld [vmem:[%s1 + $0x170] sm:$0xf]
  %v135 = vld [vmem:[%s1 + $0x174] sm:$0xf]
  %v136 = vld [vmem:[%s1 + $0x178] sm:$0xf]
  %v137 = vld [vmem:[%s1 + $0x17c] sm:$0xf]
  %v138 = vld [vmem:[%s1 + $0x180] sm:$0xf]
  %v139 = vld [vmem:[%s1 + $0x184] sm:$0xf]
  %v140 = vld [vmem:[%s1 + $0x188] sm:$0xf]
  %v141 = vld [vmem:[%s1 + $0x18c] sm:$0xf]
  %v142 = vld [vmem:[%s1 + $0x190] sm:$0xf]
  %v143 = vld [vmem:[%s1 + $0x194] sm:$0xf]
  %v144 = vld [vmem:[%s1 + $0x198] sm:$0xf]
  %v145 = vld [vmem:[%s1 + $0x19c] sm:$0xf]
  %v146 = vld [vmem:[%s1 + $0x1a0] sm:$0xf]
  %v147 = vld [vmem:[%s1 + $0x1a4] sm:$0xf]
  %v148 = vld [vmem:[%s1 + $0x1a8] sm:$0xf]
  %v149 = vld [vmem:[%s1 + $0x1ac] sm:$0xf]
  %v150 = vld [vmem:[%s1 + $0x1b0] sm:$0xf]
  %v151 = vld [vmem:[%s1 + $0x1b4] sm:$0xf]
  %v152 = vld [vmem:[%s1 + $0x1b8] sm:$0xf]
  %v153 = vld [vmem:[%s1 + $0x1bc] sm:$0xf]
  %v154 = vld [vmem:[%s1 + $0x1c0] sm:$0xf]
  %v155 = vld [vmem:[%s1 + $0x1c4] sm:$0xf]
  %v156 = vld [vmem:[%s1 + $0x1c8] sm:$0xf]
  %v157 = vld [vmem:[%s1 + $0x1cc] sm:$0xf]
  %v158 = vld [vmem:[%s1 + $0x1d0] sm:$0xf]
  %v159 = vld [vmem:[%s1 + $0x1d4] sm:$0xf]
  %v160 = vld [vmem:[%s1 + $0x1d8] sm:$0xf]
  %v161 = vld [vmem:[%s1 + $0x1dc] sm:$0xf]
  %v162 = vld [vmem:[%s1 + $0x1e0] sm:$0xf]
  %v163 = vld [vmem:[%s1 + $0x1e4] sm:$0xf]
  %v164 = vld [vmem:[%s1 + $0x1e8] sm:$0xf]
  %v165 = vld [vmem:[%s1 + $0x1ec] sm:$0xf]
  %v166 = vld [vmem:[%s1 + $0x1f0] sm:$0xf]
  %v167 = vld [vmem:[%s1 + $0x1f4] sm:$0xf]
  %v168 = vld [vmem:[%s1 + $0x1f8] sm:$0xf]
  %v169 = vld [vmem:[%s1 + $0x1fc] sm:$0xf]
  %v186 = vunpack.c.l.b16 %v26
  %v187 = vunpack.c.h.b16 %v26
  %v188 = vunpack.c.l.b16 %v27
  %v189 = vunpack.c.h.b16 %v27
  %v190 = vunpack.c.l.b16 %v28
  %v191 = vunpack.c.h.b16 %v28
  %v192 = vunpack.c.l.b16 %v29
  %v193 = vunpack.c.h.b16 %v29
  %v194 = vunpack.c.l.b16 %v30
  %v195 = vunpack.c.h.b16 %v30
  %v196 = vunpack.c.l.b16 %v31
  %v197 = vunpack.c.h.b16 %v31
  %v198 = vunpack.c.l.b16 %v32
  %v199 = vunpack.c.h.b16 %v32
  %v200 = vunpack.c.l.b16 %v33
  %v201 = vunpack.c.h.b16 %v33
  %v202 = vunpack.c.l.b16 %v34
  %v203 = vunpack.c.h.b16 %v34
  %v204 = vunpack.c.l.b16 %v35
  %v205 = vunpack.c.h.b16 %v35
  %v206 = vunpack.c.l.b16 %v36
  %v207 = vunpack.c.h.b16 %v36
  %v208 = vunpack.c.l.b16 %v37
  %v209 = vunpack.c.h.b16 %v37
  %v210 = vunpack.c.l.b16 %v38
  %v211 = vunpack.c.h.b16 %v38
  %v212 = vunpack.c.l.b16 %v39
  %v213 = vunpack.c.h.b16 %v39
  %v214 = vunpack.c.l.b16 %v40
  %v215 = vunpack.c.h.b16 %v40
  %v216 = vunpack.c.l.b16 %v41
  %v217 = vunpack.c.h.b16 %v41
  %v218 = vpack.c.b16 %v194, %v186
  %v219 = vpack.c.b16 %v195, %v187
  %v220 = vpack.c.b16 %v196, %v188
  %v221 = vpack.c.b16 %v197, %v189
  %v222 = vpack.c.b16 %v198, %v190
  %v223 = vpack.c.b16 %v199, %v191
  %v224 = vpack.c.b16 %v200, %v192
  %v225 = vpack.c.b16 %v201, %v193
  %v226 = vpack.c.b16 %v210, %v202
  %v227 = vpack.c.b16 %v211, %v203
  %v228 = vpack.c.b16 %v212, %v204
  %v229 = vpack.c.b16 %v213, %v205
  %v230 = vpack.c.b16 %v214, %v206
  %v231 = vpack.c.b16 %v215, %v207
  %v232 = vpack.c.b16 %v216, %v208
  %v233 = vpack.c.b16 %v217, %v209
  %v378 = vunpack.c.l.b16 %v42
  %v379 = vunpack.c.l.b16 %v43
  %v380 = vunpack.c.l.b16 %v44
  %v381 = vunpack.c.l.b16 %v45
  %v382 = vunpack.c.l.b16 %v46
  %v383 = vunpack.c.l.b16 %v47
  %v384 = vunpack.c.l.b16 %v48
  %v385 = vunpack.c.l.b16 %v49
  %v386 = vunpack.c.l.b16 %v50
  %v387 = vunpack.c.l.b16 %v51
  %v388 = vunpack.c.l.b16 %v52
  %v389 = vunpack.c.l.b16 %v53
  %v390 = vunpack.c.l.b16 %v54
  %v391 = vunpack.c.l.b16 %v55
  %v392 = vunpack.c.l.b16 %v56
  %v393 = vunpack.c.l.b16 %v57
  %v394 = vunpack.c.l.b16 %v58
  %v395 = vunpack.c.l.b16 %v59
  %v396 = vunpack.c.l.b16 %v60
  %v397 = vunpack.c.l.b16 %v61
  %v398 = vunpack.c.l.b16 %v62
  %v399 = vunpack.c.l.b16 %v63
  %v400 = vunpack.c.l.b16 %v64
  %v401 = vunpack.c.l.b16 %v65
  %v402 = vunpack.c.l.b16 %v66
  %v403 = vunpack.c.l.b16 %v67
  %v404 = vunpack.c.l.b16 %v68
  %v405 = vunpack.c.l.b16 %v69
  %v406 = vunpack.c.l.b16 %v70
  %v407 = vunpack.c.l.b16 %v71
  %v408 = vunpack.c.l.b16 %v72
  %v409 = vunpack.c.l.b16 %v73
  %v410 = vunpack.c.l.b16 %v74
  %v411 = vunpack.c.l.b16 %v75
  %v412 = vunpack.c.l.b16 %v76
  %v413 = vunpack.c.l.b16 %v77
  %v414 = vunpack.c.l.b16 %v78
  %v415 = vunpack.c.l.b16 %v79
  %v416 = vunpack.c.l.b16 %v80
  %v417 = vunpack.c.l.b16 %v81
  %v418 = vunpack.c.l.b16 %v82
  %v419 = vunpack.c.l.b16 %v83
  %v420 = vunpack.c.l.b16 %v84
  %v421 = vunpack.c.l.b16 %v85
  %v422 = vunpack.c.l.b16 %v86
  %v423 = vunpack.c.l.b16 %v87
  %v424 = vunpack.c.l.b16 %v88
  %v425 = vunpack.c.l.b16 %v89
  %v426 = vunpack.c.l.b16 %v90
  %v427 = vunpack.c.l.b16 %v91
  %v428 = vunpack.c.l.b16 %v92
  %v429 = vunpack.c.l.b16 %v93
  %v430 = vunpack.c.l.b16 %v94
  %v431 = vunpack.c.l.b16 %v95
  %v432 = vunpack.c.l.b16 %v96
  %v433 = vunpack.c.l.b16 %v97
  %v434 = vunpack.c.l.b16 %v98
  %v435 = vunpack.c.l.b16 %v99
  %v436 = vunpack.c.l.b16 %v100
  %v437 = vunpack.c.l.b16 %v101
  %v438 = vunpack.c.l.b16 %v102
  %v439 = vunpack.c.l.b16 %v103
  %v440 = vunpack.c.l.b16 %v104
  %v441 = vunpack.c.l.b16 %v105
  %v442 = vunpack.c.l.b16 %v106
  %v443 = vunpack.c.l.b16 %v107
  %v444 = vunpack.c.l.b16 %v108
  %v445 = vunpack.c.l.b16 %v109
  %v446 = vunpack.c.l.b16 %v110
  %v447 = vunpack.c.l.b16 %v111
  %v448 = vunpack.c.l.b16 %v112
  %v449 = vunpack.c.l.b16 %v113
  %v450 = vunpack.c.l.b16 %v114
  %v451 = vunpack.c.l.b16 %v115
  %v452 = vunpack.c.l.b16 %v116
  %v453 = vunpack.c.l.b16 %v117
  %v454 = vunpack.c.l.b16 %v118
  %v455 = vunpack.c.l.b16 %v119
  %v456 = vunpack.c.l.b16 %v120
  %v457 = vunpack.c.l.b16 %v121
  %v458 = vunpack.c.l.b16 %v122
  %v459 = vunpack.c.l.b16 %v123
  %v460 = vunpack.c.l.b16 %v124
  %v461 = vunpack.c.l.b16 %v125
  %v462 = vunpack.c.l.b16 %v126
  %v463 = vunpack.c.l.b16 %v127
  %v464 = vunpack.c.l.b16 %v128
  %v465 = vunpack.c.l.b16 %v129
  %v466 = vunpack.c.l.b16 %v130
  %v467 = vunpack.c.l.b16 %v131
  %v468 = vunpack.c.l.b16 %v132
  %v469 = vunpack.c.l.b16 %v133
  %v470 = vunpack.c.l.b16 %v134
  %v471 = vunpack.c.l.b16 %v135
  %v472 = vunpack.c.l.b16 %v136
  %v473 = vunpack.c.l.b16 %v137
  %v474 = vunpack.c.l.b16 %v138
  %v475 = vunpack.c.l.b16 %v139
  %v476 = vunpack.c.l.b16 %v140
  %v477 = vunpack.c.l.b16 %v141
  %v478 = vunpack.c.l.b16 %v142
  %v479 = vunpack.c.l.b16 %v143
  %v480 = vunpack.c.l.b16 %v144
  %v481 = vunpack.c.l.b16 %v145
  %v482 = vunpack.c.l.b16 %v146
  %v483 = vunpack.c.l.b16 %v147
  %v484 = vunpack.c.l.b16 %v148
  %v485 = vunpack.c.l.b16 %v149
  %v486 = vunpack.c.l.b16 %v150
  %v487 = vunpack.c.l.b16 %v151
  %v488 = vunpack.c.l.b16 %v152
  %v489 = vunpack.c.l.b16 %v153
  %v490 = vunpack.c.l.b16 %v154
  %v491 = vunpack.c.l.b16 %v155
  %v492 = vunpack.c.l.b16 %v156
  %v493 = vunpack.c.l.b16 %v157
  %v494 = vunpack.c.l.b16 %v158
  %v495 = vunpack.c.l.b16 %v159
  %v496 = vunpack.c.l.b16 %v160
  %v497 = vunpack.c.l.b16 %v161
  %v498 = vunpack.c.l.b16 %v162
  %v499 = vunpack.c.l.b16 %v163
  %v500 = vunpack.c.l.b16 %v164
  %v501 = vunpack.c.l.b16 %v165
  %v502 = vunpack.c.l.b16 %v166
  %v503 = vunpack.c.l.b16 %v167
  %v504 = vunpack.c.l.b16 %v168
  %v505 = vunpack.c.l.b16 %v169
  %v506 = vpack.c.b16 %v379, %v378
  %v507 = vpack.c.b16 %v381, %v380
  %v508 = vpack.c.b16 %v383, %v382
  %v509 = vpack.c.b16 %v385, %v384
  %v510 = vpack.c.b16 %v387, %v386
  %v511 = vpack.c.b16 %v389, %v388
  %v512 = vpack.c.b16 %v391, %v390
  %v513 = vpack.c.b16 %v393, %v392
  %v514 = vpack.c.b16 %v395, %v394
  %v515 = vpack.c.b16 %v397, %v396
  %v516 = vpack.c.b16 %v399, %v398
  %v517 = vpack.c.b16 %v401, %v400
  %v518 = vpack.c.b16 %v403, %v402
  %v519 = vpack.c.b16 %v405, %v404
  %v520 = vpack.c.b16 %v407, %v406
  %v521 = vpack.c.b16 %v409, %v408
  %v522 = vpack.c.b16 %v411, %v410
  %v523 = vpack.c.b16 %v413, %v412
  %v524 = vpack.c.b16 %v415, %v414
  %v525 = vpack.c.b16 %v417, %v416
  %v526 = vpack.c.b16 %v419, %v418
  %v527 = vpack.c.b16 %v421, %v420
  %v528 = vpack.c.b16 %v423, %v422
  %v529 = vpack.c.b16 %v425, %v424
  %v530 = vpack.c.b16 %v427, %v426
  %v531 = vpack.c.b16 %v429, %v428
  %v532 = vpack.c.b16 %v431, %v430
  %v533 = vpack.c.b16 %v433, %v432
  %v534 = vpack.c.b16 %v435, %v434
  %v535 = vpack.c.b16 %v437, %v436
  %v536 = vpack.c.b16 %v439, %v438
  %v537 = vpack.c.b16 %v441, %v440
  %v538 = vpack.c.b16 %v443, %v442
  %v539 = vpack.c.b16 %v445, %v444
  %v540 = vpack.c.b16 %v447, %v446
  %v541 = vpack.c.b16 %v449, %v448
  %v542 = vpack.c.b16 %v451, %v450
  %v543 = vpack.c.b16 %v453, %v452
  %v544 = vpack.c.b16 %v455, %v454
  %v545 = vpack.c.b16 %v457, %v456
  %v546 = vpack.c.b16 %v459, %v458
  %v547 = vpack.c.b16 %v461, %v460
  %v548 = vpack.c.b16 %v463, %v462
  %v549 = vpack.c.b16 %v465, %v464
  %v550 = vpack.c.b16 %v467, %v466
  %v551 = vpack.c.b16 %v469, %v468
  %v552 = vpack.c.b16 %v471, %v470
  %v553 = vpack.c.b16 %v473, %v472
  %v554 = vpack.c.b16 %v475, %v474
  %v555 = vpack.c.b16 %v477, %v476
  %v556 = vpack.c.b16 %v479, %v478
  %v557 = vpack.c.b16 %v481, %v480
  %v558 = vpack.c.b16 %v483, %v482
  %v559 = vpack.c.b16 %v485, %v484
  %v560 = vpack.c.b16 %v487, %v486
  %v561 = vpack.c.b16 %v489, %v488
  %v562 = vpack.c.b16 %v491, %v490
  %v563 = vpack.c.b16 %v493, %v492
  %v564 = vpack.c.b16 %v495, %v494
  %v565 = vpack.c.b16 %v497, %v496
  %v566 = vpack.c.b16 %v499, %v498
  %v567 = vpack.c.b16 %v501, %v500
  %v568 = vpack.c.b16 %v503, %v502
  %v569 = vpack.c.b16 %v505, %v504
  %634 = vmatprep.subr.bf16.mxu0 0
  %635 = vmatpush1.bf16.msra.mxu0 %v513
  %636 = vmatprep.subr.bf16.mxu0 0
  %637 = vmatpush1.bf16.msra.mxu0 %v512
  %638 = vmatprep.subr.bf16.mxu0 0
  %639 = vmatpush1.bf16.msra.mxu0 %v511
  %640 = vmatprep.subr.bf16.mxu0 0
  %641 = vmatpush1.bf16.msra.mxu0 %v510
  %642 = vmatprep.subr.bf16.mxu0 0
  %643 = vmatpush1.bf16.msra.mxu0 %v509
  %644 = vmatprep.subr.bf16.mxu0 0
  %645 = vmatpush1.bf16.msra.mxu0 %v508
  %646 = vmatprep.subr.bf16.mxu0 0
  %647 = vmatpush1.bf16.msra.mxu0 %v507
  %648 = vmatprep.subr.bf16.mxu0 0
  %649 = vmatpush1.bf16.msra.mxu0 %v506
  %650 = vmatprep.subr.bf16.mxu0 0
  %651 = vmatpush2.bf16.msra.mxu0 %v521
  %652 = vmatprep.subr.bf16.mxu0 0
  %653 = vmatpush2.bf16.msra.mxu0 %v520
  %654 = vmatprep.subr.bf16.mxu0 0
  %655 = vmatpush2.bf16.msra.mxu0 %v519
  %656 = vmatprep.subr.bf16.mxu0 0
  %657 = vmatpush2.bf16.msra.mxu0 %v518
  %658 = vmatprep.subr.bf16.mxu0 0
  %659 = vmatpush2.bf16.msra.mxu0 %v517
  %660 = vmatprep.subr.bf16.mxu0 0
  %661 = vmatpush2.bf16.msra.mxu0 %v516
  %662 = vmatprep.subr.bf16.mxu0 0
  %663 = vmatpush2.bf16.msra.mxu0 %v515
  %664 = vmatprep.subr.bf16.mxu0 0
  %665 = vmatpush2.bf16.msra.mxu0 %v514
  %666 = vmatprep.mubr.bf16.mxu0 %v219
  %667 = vmatmul.mubr.bf16.gmra.mxu0 %v218
  %v668 = vpop.f32.mrf.mxu0
  %v669 = vadd.f32 0.0, %v668
  %v670 = vpop.f32.mrf.mxu0
  %v671 = vpop.f32.mrf.mxu0
  %v672 = vadd.f32 0.0, %v671
  %v673 = vpop.f32.mrf.mxu0
  %674 = vmatprep.mubr.bf16.mxu0 %v227
  %675 = vmatmul.mubr.bf16.gmra.mxu0 %v226
  %v676 = vpop.f32.mrf.mxu0
  %v677 = vadd.f32 0.0, %v676
  %v678 = vpop.f32.mrf.mxu0
  %v679 = vpop.f32.mrf.mxu0
  %v680 = vadd.f32 0.0, %v679
  %v681 = vpop.f32.mrf.mxu0
  %682 = vdwg.mxu0
  %683 = vmatprep.subr.bf16.mxu0 0
  %684 = vmatpush1.bf16.msra.mxu0 %v529
  %685 = vmatprep.subr.bf16.mxu0 0
  %686 = vmatpush1.bf16.msra.mxu0 %v528
  %687 = vmatprep.subr.bf16.mxu0 0
  %688 = vmatpush1.bf16.msra.mxu0 %v527
  %689 = vmatprep.subr.bf16.mxu0 0
  %690 = vmatpush1.bf16.msra.mxu0 %v526
  %691 = vmatprep.subr.bf16.mxu0 0
  %692 = vmatpush1.bf16.msra.mxu0 %v525
  %693 = vmatprep.subr.bf16.mxu0 0
  %694 = vmatpush1.bf16.msra.mxu0 %v524
  %695 = vmatprep.subr.bf16.mxu0 0
  %696 = vmatpush1.bf16.msra.mxu0 %v523
  %697 = vmatprep.subr.bf16.mxu0 0
  %698 = vmatpush1.bf16.msra.mxu0 %v522
  %699 = vmatprep.subr.bf16.mxu0 0
  %700 = vmatpush2.bf16.msra.mxu0 %v537
  %701 = vmatprep.subr.bf16.mxu0 0
  %702 = vmatpush2.bf16.msra.mxu0 %v536
  %703 = vmatprep.subr.bf16.mxu0 0
  %704 = vmatpush2.bf16.msra.mxu0 %v535
  %705 = vmatprep.subr.bf16.mxu0 0
  %706 = vmatpush2.bf16.msra.mxu0 %v534
  %707 = vmatprep.subr.bf16.mxu0 0
  %708 = vmatpush2.bf16.msra.mxu0 %v533
  %709 = vmatprep.subr.bf16.mxu0 0
  %710 = vmatpush2.bf16.msra.mxu0 %v532
  %711 = vmatprep.subr.bf16.mxu0 0
  %712 = vmatpush2.bf16.msra.mxu0 %v531
  %713 = vmatprep.subr.bf16.mxu0 0
  %714 = vmatpush2.bf16.msra.mxu0 %v530
  %715 = vmatprep.mubr.bf16.mxu0 %v221
  %716 = vmatmul.mubr.bf16.gmra.mxu0 %v220
  %v717 = vpop.f32.mrf.mxu0
  %v718 = vadd.f32 %v669, %v717
  %v719 = vpop.f32.mrf.mxu0
  %v720 = vpop.f32.mrf.mxu0
  %v721 = vadd.f32 %v672, %v720
  %v722 = vpop.f32.mrf.mxu0
  %723 = vmatprep.mubr.bf16.mxu0 %v229
  %724 = vmatmul.mubr.bf16.gmra.mxu0 %v228
  %v725 = vpop.f32.mrf.mxu0
  %v726 = vadd.f32 %v677, %v725
  %v727 = vpop.f32.mrf.mxu0
  %v728 = vpop.f32.mrf.mxu0
  %v729 = vadd.f32 %v680, %v728
  %v730 = vpop.f32.mrf.mxu0
  %731 = vdwg.mxu0
  %732 = vmatprep.subr.bf16.mxu0 0
  %733 = vmatpush1.bf16.msra.mxu0 %v545
  %734 = vmatprep.subr.bf16.mxu0 0
  %735 = vmatpush1.bf16.msra.mxu0 %v544
  %736 = vmatprep.subr.bf16.mxu0 0
  %737 = vmatpush1.bf16.msra.mxu0 %v543
  %738 = vmatprep.subr.bf16.mxu0 0
  %739 = vmatpush1.bf16.msra.mxu0 %v542
  %740 = vmatprep.subr.bf16.mxu0 0
  %741 = vmatpush1.bf16.msra.mxu0 %v541
  %742 = vmatprep.subr.bf16.mxu0 0
  %743 = vmatpush1.bf16.msra.mxu0 %v540
  %744 = vmatprep.subr.bf16.mxu0 0
  %745 = vmatpush1.bf16.msra.mxu0 %v539
  %746 = vmatprep.subr.bf16.mxu0 0
  %747 = vmatpush1.bf16.msra.mxu0 %v538
  %748 = vmatprep.subr.bf16.mxu0 0
  %749 = vmatpush2.bf16.msra.mxu0 %v553
  %750 = vmatprep.subr.bf16.mxu0 0
  %751 = vmatpush2.bf16.msra.mxu0 %v552
  %752 = vmatprep.subr.bf16.mxu0 0
  %753 = vmatpush2.bf16.msra.mxu0 %v551
  %754 = vmatprep.subr.bf16.mxu0 0
  %755 = vmatpush2.bf16.msra.mxu0 %v550
  %756 = vmatprep.subr.bf16.mxu0 0
  %757 = vmatpush2.bf16.msra.mxu0 %v549
  %758 = vmatprep.subr.bf16.mxu0 0
  %759 = vmatpush2.bf16.msra.mxu0 %v548
  %760 = vmatprep.subr.bf16.mxu0 0
  %761 = vmatpush2.bf16.msra.mxu0 %v547
  %762 = vmatprep.subr.bf16.mxu0 0
  %763 = vmatpush2.bf16.msra.mxu0 %v546
  %764 = vmatprep.mubr.bf16.mxu0 %v223
  %765 = vmatmul.mubr.bf16.gmra.mxu0 %v222
  %v766 = vpop.f32.mrf.mxu0
  %v767 = vadd.f32 %v718, %v766
  %v768 = vpop.f32.mrf.mxu0
  %v769 = vpop.f32.mrf.mxu0
  %v770 = vadd.f32 %v721, %v769
  %v771 = vpop.f32.mrf.mxu0
  %772 = vmatprep.mubr.bf16.mxu0 %v231
  %773 = vmatmul.mubr.bf16.gmra.mxu0 %v230
  %v774 = vpop.f32.mrf.mxu0
  %v775 = vadd.f32 %v726, %v774
  %v776 = vpop.f32.mrf.mxu0
  %v777 = vpop.f32.mrf.mxu0
  %v778 = vadd.f32 %v729, %v777
  %v779 = vpop.f32.mrf.mxu0
  %780 = vdwg.mxu0
  %781 = vmatprep.subr.bf16.mxu0 0
  %782 = vmatpush1.bf16.msra.mxu0 %v561
  %783 = vmatprep.subr.bf16.mxu0 0
  %784 = vmatpush1.bf16.msra.mxu0 %v560
  %785 = vmatprep.subr.bf16.mxu0 0
  %786 = vmatpush1.bf16.msra.mxu0 %v559
  %787 = vmatprep.subr.bf16.mxu0 0
  %788 = vmatpush1.bf16.msra.mxu0 %v558
  %789 = vmatprep.subr.bf16.mxu0 0
  %790 = vmatpush1.bf16.msra.mxu0 %v557
  %791 = vmatprep.subr.bf16.mxu0 0
  %792 = vmatpush1.bf16.msra.mxu0 %v556
  %793 = vmatprep.subr.bf16.mxu0 0
  %794 = vmatpush1.bf16.msra.mxu0 %v555
  %795 = vmatprep.subr.bf16.mxu0 0
  %796 = vmatpush1.bf16.msra.mxu0 %v554
  %797 = vmatprep.subr.bf16.mxu0 0
  %798 = vmatpush2.bf16.msra.mxu0 %v569
  %799 = vmatprep.subr.bf16.mxu0 0
  %800 = vmatpush2.bf16.msra.mxu0 %v568
  %801 = vmatprep.subr.bf16.mxu0 0
  %802 = vmatpush2.bf16.msra.mxu0 %v567
  %803 = vmatprep.subr.bf16.mxu0 0
  %804 = vmatpush2.bf16.msra.mxu0 %v566
  %805 = vmatprep.subr.bf16.mxu0 0
  %806 = vmatpush2.bf16.msra.mxu0 %v565
  %807 = vmatprep.subr.bf16.mxu0 0
  %808 = vmatpush2.bf16.msra.mxu0 %v564
  %809 = vmatprep.subr.bf16.mxu0 0
  %810 = vmatpush2.bf16.msra.mxu0 %v563
  %811 = vmatprep.subr.bf16.mxu0 0
  %812 = vmatpush2.bf16.msra.mxu0 %v562
  %813 = vmatprep.mubr.bf16.mxu0 %v225
  %814 = vmatmul.mubr.bf16.gmra.mxu0 %v224
  %v815 = vpop.f32.mrf.mxu0
  %v816 = vadd.f32 %v767, %v815
  %v817 = vpop.f32.mrf.mxu0
  %v818 = vpop.f32.mrf.mxu0
  %v819 = vadd.f32 %v770, %v818
  %v820 = vpop.f32.mrf.mxu0
  %821 = vmatprep.mubr.bf16.mxu0 %v233
  %822 = vmatmul.mubr.bf16.gmra.mxu0 %v232
  %v823 = vpop.f32.mrf.mxu0
  %v824 = vadd.f32 %v775, %v823
  %v825 = vpop.f32.mrf.mxu0
  %v826 = vpop.f32.mrf.mxu0
  %v827 = vadd.f32 %v778, %v826
  %v828 = vpop.f32.mrf.mxu0
  %829 = vdwg.mxu0
  %v830 = vadd.f32 %v22, %v816
  %v831 = vadd.f32 %v23, %v819
  %v832 = vadd.f32 %v24, %v824
  %v833 = vadd.f32 %v25, %v827
  %834 = vst [vmem:[#allocation2] sm:$0xff] %v830
  %835 = vst [vmem:[#allocation2 + $0x8] sm:$0xff] %v831
  %836 = vst [vmem:[#allocation2 + $0x10] sm:$0xff] %v832
  %837 = vst [vmem:[#allocation2 + $0x18] sm:$0xff] %v833
  // Predicated region
  $region14: #{patchgan_forward.8} parent=0 // pred_check
    %p838 = pneg %p14
  $region15: #{patchgan_forward.8} parent=0 // pred_check_branch
    %840 = sbr.rel (%p838) target = $region17
  $region16: #{patchgan_forward.8} parent=0 // pred_region
    %v841 = vld [vmem:[#allocation2] sm:$0xff]
    %v842 = vld [vmem:[#allocation2 + $0x8] sm:$0xff]
    %v843 = vld [vmem:[#allocation2 + $0x10] sm:$0xff]
    %v844 = vld [vmem:[#allocation2 + $0x18] sm:$0xff]
    %845 = vst [vmem:[%s2] sm:$0xff] %v841
    %846 = vst [vmem:[%s2 + $0x8] sm:$0xff] %v842
    %847 = vst [vmem:[%s2 + $0x10] sm:$0xff] %v843
    %848 = vst [vmem:[%s2 + $0x18] sm:$0xff] %v844
    %v849 = vadd.f32 %v841, %v842
    %v850 = vadd.f32 %v849, %v843
    %v851 = vadd.f32 %v850, %v844
    %v852 = vrot.slane %v851, 4
    %v853 = vadd.f32 %v851, %v852
    %v854 = vrot.slane %v853, 2
    %v855 = vadd.f32 %v853, %v854
    %v856 = vrot.slane %v855, 1
    %v857 = vadd.f32 %v855, %v856
    %v858 = vmul.f32 %v841, %v841
    %v859 = vmul.f32 %v842, %v842
    %v860 = vmul.f32 %v843, %v843
    %v861 = vmul.f32 %v844, %v844
    %v862 = vadd.f32 %v858, %v859
    %v863 = vadd.f32 %v862, %v860
    %v864 = vadd.f32 %v863, %v861
    %v865 = vrot.slane %v864, 4
    %v866 = vadd.f32 %v864, %v865
    %v867 = vrot.slane %v866, 2
    %v868 = vadd.f32 %v866, %v867
    %v869 = vrot.slane %v868, 1
    %v870 = vadd.f32 %v868, %v869
    %vm871 = vcmask 1040384
    %v872 = vsel %vm871, %v857, %v870
    %873 = vst [vmem:[%s3] sm:$0x3] %v872
  $region17: #{patchgan_forward.8} parent=0 // pred_fallthru
    _
  // Predicated region
  $region18: #{patchgan_forward.8} parent=0 // pred_check
    _
  $region19: #{patchgan_forward.8} parent=0 // pred_check_branch
    %875 = sbr.rel (0) target = $region21
  $region20: #{patchgan_forward.8} parent=0 // pred_region
    _
  $region21: #{patchgan_forward.8} parent=0 // pred_fallthru
    _
  // Predicated region
  $region22: #{patchgan_forward.8} parent=0 // pred_check
    _
  $region23: #{patchgan_forward.8} parent=0 // pred_check_branch
    %877 = sbr.rel (0) target = $region25
  $region24: #{patchgan_forward.8} parent=0 // pred_region
    _
  $region25: #{patchgan_forward.8} parent=0 // pred_fallthru
    _
  // Predicated region
  $region26: #{patchgan_forward.8} parent=0 // pred_check
    _
  $region27: #{patchgan_forward.8} parent=0 // pred_check_branch
    %879 = sbr.rel (0) target = $region29
  $region28: #{patchgan_forward.8} parent=0 // pred_region
    _
  $region29: #{patchgan_forward.8} parent=0 // pred_fallthru
    _
  // Predicated region
  $region30: #{patchgan_forward.8} parent=0 // pred_check
    _
  $region31: #{patchgan_forward.8} parent=0 // pred_check_branch
    %881 = sbr.rel (0) target = $region33
  $region32: #{patchgan_forward.8} parent=0 // pred_region
    _
  $region33: #{patchgan_forward.8} parent=0 // pred_fallthru
    _

// kernel: patchgan_forward.11
$region0: #{patchgan_forward.11}
  #allocation0 [shape = 'u32[]', space=smem, size = 0x4, offset = 0x4, fixed_abs, tag = 'smem constant byte address 0x4 - core index']
  #allocation1 [shape = 'u32[144,128]{1,0:T(1,128)}', space=vmem, size = 0x12000, scoped, tag = 'internal scratch']
  %s0 = inlined_call_operand.vmem [shape: f32[8,256], index: 0, kind: input, shape index: {}]
  %s1 = inlined_call_operand.vmem [shape: f32[1,2,256], index: 1, kind: input, shape index: {}]
  %s2 = inlined_call_operand.vmem [shape: f32[1,256], index: 2, kind: input, shape index: {}]
  %s3 = inlined_call_operand.vmem [shape: f32[1,256], index: 3, kind: input, shape index: {}]
  %s4 = inlined_call_operand.vmem [shape: bf16[8,256], index: 4, kind: output, shape index: {}]
  %s5 = sld [smem:[#allocation0]]
  $region26: #{patchgan_forward.11} parent=0
    _
  %s7 = ssub.s32 1, %s5
  %s8 = scalar_select 0, %s7, %s5
  // Predicated region
  $region2: #{patchgan_forward.11} parent=0 // pred_check
    _
  $region3: #{patchgan_forward.11} parent=0 // pred_check_branch
    %10 = sbr.rel (0) target = $region5
  $region4: #{patchgan_forward.11} parent=0 // pred_region
    _
  $region5: #{patchgan_forward.11} parent=0 // pred_fallthru
    _
  // Predicated region
  $region6: #{patchgan_forward.11} parent=0 // pred_check
    _
  $region7: #{patchgan_forward.11} parent=0 // pred_check_branch
    %12 = sbr.rel (0) target = $region9
  $region8: #{patchgan_forward.11} parent=0 // pred_region
    _
  $region9: #{patchgan_forward.11} parent=0 // pred_fallthru
    _
  // Predicated region
  $region10: #{patchgan_forward.11} parent=0 // pred_check
    _
  $region11: #{patchgan_forward.11} parent=0 // pred_check_branch
    %14 = sbr.rel (0) target = $region13
  $region12: #{patchgan_forward.11} parent=0 // pred_region
    _
  $region13: #{patchgan_forward.11} parent=0 // pred_fallthru
    _
  // Predicated region
  $region14: #{patchgan_forward.11} parent=0 // pred_check
    _
  $region15: #{patchgan_forward.11} parent=0 // pred_check_branch
    %16 = sbr.rel (0) target = $region17
  $region16: #{patchgan_forward.11} parent=0 // pred_region
    _
  $region17: #{patchgan_forward.11} parent=0 // pred_fallthru
    _
  %v17 = vld [vmem:[%s1] sm:$0xf]
  %v18 = vadd.f32 %v17, 0.0
  %v19 = vmul.f32 %v18, 0.125
  %v20 = vmul.f32 %v19, %v19
  %v22 = vrot.slane %v20, 7
  %v24 = vsub.f32 %v19, %v22
  %v25 = vadd.f32 %v24, 1e-05
  %v26 = vrsqrt.pop %v25
  %v27 = vld [vmem:[%s2] sm:$0x3]
  %v30 = vunpack.c.l.s4 1966171168
  %v31 = vunpack.c.0.s8 %v30
  %v32 = vlaneseq
  %v33 = vshrl.u32 %v32, 7
  %v34 = vsub.s32 %v31, %v33
  %v35 = vrot.slane %v26, %v34
  %v36 = vcombine.high %v35, %v35
  %v38 = vmul.f32 %v27, %v36
  %v39 = vld [vmem:[%s3] sm:$0x3]
  %v42 = vunpack.c.l.s4 857870592
  %v43 = vunpack.c.0.s8 %v42
  %v44 = vlaneseq
  %v45 = vshrl.u32 %v44, 7
  %v46 = vsub.s32 %v43, %v45
  %v47 = vrot.slane %v38, %v46
  %v49 = vmul.f32 %v19, %v47
  %v52 = vunpack.c.l.s4 1966171168
  %v53 = vunpack.c.0.s8 %v52
  %v54 = vlaneseq
  %v55 = vshrl.u32 %v54, 7
  %v56 = vsub.s32 %v53, %v55
  %v57 = vrot.slane %v49, %v56
  %v59 = vsub.f32 %v39, %v57
  %v60 = vld [vmem:[%s0] sm:$0xff]
  %v61 = vld [vmem:[%s0 + $0x8] sm:$0xff]
  %v62 = vlaneseq
  %v63 = vshrl.u32 %v62, 7
  %v64 = vsub.s32 0, %v63
  %v65 = vrot.slane %v38, %v64
  %v66 = vlaneseq
  %v67 = vshrl.u32 %v66, 7
  %v68 = vsub.s32 1, %v67
  %v69 = vrot.slane %v38, %v68
  %v72 = vmul.f32 %v60, %v65
  %v73 = vmul.f32 %v61, %v69
  %v75 = vlaneseq
  %v76 = vshrl.u32 %v75, 7
  %v77 = vsub.s32 0, %v76
  %v78 = vrot.slane %v59, %v77
  %v79 = vlaneseq
  %v80 = vshrl.u32 %v79, 7
  %v81 = vsub.s32 1, %v80
  %v82 = vrot.slane %v59, %v81
  %v85 = vadd.f32 %v72, %v78
  %v86 = vadd.f32 %v73, %v82
  %v87 = vmul.f32 %v85, 0.2
  %v88 = vmul.f32 %v86, 0.2
  %v89 = vmax.f32 %v85, %v87
  %v90 = vmax.f32 %v86, %v88
  %v91 = vpack.c.bf16 %v89, %v89
  %v92 = vpack.c.bf16 %v90, %v90
  %v95 = vunpack.c.l.b16 %v91
  %v96 = vunpack.c.l.b16 %v92
  %v97 = vpack.c.b16 %v96, %v95
  %99 = vst [vmem:[%s4] sm:$0xff] %v97
  // Predicated region
  $region18: #{patchgan_forward.11} parent=0 // pred_check
    _
  $region19: #{patchgan_forward.11} parent=0 // pred_check_branch
    %101 = sbr.rel (0) target = $region21
  $region20: #{patchgan_forward.11} parent=0 // pred_region
    _
  $region21: #{patchgan_forward.11} parent=0 // pred_fallthru
    _
  // Predicated region
  $region22: #{patchgan_forward.11} parent=0 // pred_check
    _
  $region23: #{patchgan_forward.11} parent=0 // pred_check_branch
    %103 = sbr.rel (0) target = $region25
  $region24: #{patchgan_forward.11} parent=0 // pred_region
    _
  $region25: #{patchgan_forward.11} parent=0 // pred_fallthru
    _

// kernel: patchgan_forward.10
$region0: #{patchgan_forward.10}
  #allocation0 [shape = 'u32[]', space=smem, size = 0x4, offset = 0x4, fixed_abs, tag = 'smem constant byte address 0x4 - core index']
  #allocation1 [shape = 'u32[144,128]{1,0:T(1,128)}', space=vmem, size = 0x12000, scoped, tag = 'internal scratch']
  #allocation2 [shape = 'f32[8,256]{1,0:T(8,128)}', space=vmem, size = 0x2000, scoped, tag = 'scratch operand']
  %s0 = inlined_call_operand.vmem [shape: bf16[8,2048], index: 0, kind: input, shape index: {}]
  %s1 = inlined_call_operand.vmem [shape: bf16[2048,256], index: 1, kind: input, shape index: {}]
  %s2 = inlined_call_operand.vmem [shape: f32[8,256], index: 2, kind: output, shape index: {0}]
  %s3 = inlined_call_operand.vmem [shape: f32[1,2,256], index: 3, kind: output, shape index: {1}]
  %4 = xla_tuple %s2, %s3
  %s5 = sld [smem:[#allocation0]]
  $region57: #{patchgan_forward.10} parent=0
    _
  %s7 = ssub.s32 1, %s5
  %s8 = scalar_select 0, %s7, %s5
  loop: start=0, step=1, limit=4
  $region2: #{patchgan_forward.10} parent=0 // loop_pre_header
    _
  $region3: #{patchgan_forward.10} parent=0 // loop_header
    %s10 = sphi 0, %s14
    %p11 = scmp.ge.s32.totalorder %s10, 4
    %s17 = sphi 0, %s29
    %s18 = sphi 0, %s25
    %s19 = sphi 0, %s17
    %s20 = sphi 0, %s18
    %s21 = sphi 0, %s19
    %s22 = sphi 0, %s20
    %s34 = sphi 0, %s36
    %s37 = sphi 0, %s34
    %s38 = sphi 0, %s37
    %s54 = sphi 0, %s38
    %s60 = sphi 0, %s62
    %s63 = sphi 0, %s60
    %s64 = sphi 0, %s63
    %s80 = sphi 0, %s64
    %s86 = sphi 0, %s88
    %s89 = sphi 0, %s86
    %s90 = sphi 0, %s89
    %s106 = sphi 0, %s90
    %s112 = sphi 0, %s114
    %s115 = sphi 0, %s112
    %s116 = sphi 0, %s115
    %s132 = sphi 0, %s116
  $region4: #{patchgan_forward.10} parent=0 // loop_header_branch
    %13 = sbr.rel (%p11) target = $region8
  $region5: #{patchgan_forward.10} parent=0 // loop_body
    %s15 = ssub.s32 %s10, 1
    %s16 = ssub.s32 %s10, 2
    %s23 = sadd.s32 1, %s18
    %p24 = scmp.ge.s32.totalorder %s23, 2
    %s25 = scalar_select %p24, 0, %s23
    %s26 = sadd.s32 1, %s17
    %s27 = scalar_select %p24, %s26, %s17
    %p28 = scmp.ge.s32.totalorder %s27, 1
    %s29 = scalar_select %p28, 0, %s27
    %s30 = ssub.s32 %s17, %s29
    %s31 = ssub.s32 %s18, %s25
    %s32 = sor.u32 %s30, %s31
    %p33 = scmp.eq.s32.totalorder %s32, 0
    %s35 = sadd.s32 %s34, 1
    %s36 = scalar_select %p33, %s34, %s35
    %p39 = pneg %p33
    %p40 = scmp.eq.s32.totalorder %s10, 1
    %p41 = por %p39, %p40
    %p42 = scmp.ne.s32.totalorder %s34, %s37
    %p43 = scmp.eq.s32.totalorder %s10, 0
    %p44 = por %p42, %p43
    %p45 = scmp.ne.s32.totalorder %s34, %s37
    %p46 = scmp.eq.s32.totalorder %s15, 1
    %p47 = por %p45, %p46
    %p48 = scmp.ne.s32.totalorder %s37, %s38
    %p49 = scmp.eq.s32.totalorder %s15, 0
    %p50 = por %p48, %p49
    %p51 = scmp.ne.s32.totalorder %s37, %s38
    %p52 = scmp.eq.s32.totalorder %s16, 1
    %p53 = por %p51, %p52
    %p55 = scmp.ne.s32.totalorder %s38, %s54
    %p56 = scmp.eq.s32.totalorder %s16, 0
    %p57 = por %p55, %p56
    %s58 = ssub.s32 %s18, %s25
    %p59 = scmp.eq.s32.totalorder %s58, 0
    %s61 = sadd.s32 %s60, 1
    %s62 = scalar_select %p59, %s60, %s61
    %p65 = pneg %p59
    %p66 = scmp.eq.s32.totalorder %s10, 1
    %p67 = por %p65, %p66
    %p68 = scmp.ne.s32.totalorder %s60, %s63
    %p69 = scmp.eq.s32.totalorder %s10, 0
    %p70 = por %p68, %p69
    %p71 = scmp.ne.s32.totalorder %s60, %s63
    %p72 = scmp.eq.s32.totalorder %s15, 1
    %p73 = por %p71, %p72
    %p74 = scmp.ne.s32.totalorder %s63, %s64
    %p75 = scmp.eq.s32.totalorder %s15, 0
    %p76 = por %p74, %p75
    %p77 = scmp.ne.s32.totalorder %s63, %s64
    %p78 = scmp.eq.s32.totalorder %s16, 1
    %p79 = por %p77, %p78
    %p81 = scmp.ne.s32.totalorder %s64, %s80
    %p82 = scmp.eq.s32.totalorder %s16, 0
    %p83 = por %p81, %p82
    %s84 = ssub.s32 %s17, %s29
    %p85 = scmp.eq.s32.totalorder %s84, 0
    %s87 = sadd.s32 %s86, 1
    %s88 = scalar_select %p85, %s86, %s87
    %p91 = pneg %p85
    %p92 = scmp.eq.s32.totalorder %s10, 1
    %p93 = por %p91, %p92
    %p94 = scmp.ne.s32.totalorder %s86, %s89
    %p95 = scmp.eq.s32.totalorder %s10, 0
    %p96 = por %p94, %p95
    %p97 = scmp.ne.s32.totalorder %s86, %s89
    %p98 = scmp.eq.s32.totalorder %s15, 1
    %p99 = por %p97, %p98
    %p100 = scmp.ne.s32.totalorder %s89, %s90
    %p101 = scmp.eq.s32.totalorder %s15, 0
    %p102 = por %p100, %p101
    %p103 = scmp.ne.s32.totalorder %s89, %s90
    %p104 = scmp.eq.s32.totalorder %s16, 1
    %p105 = por %p103, %p104
    %p107 = scmp.ne.s32.totalorder %s90, %s106
    %p108 = scmp.eq.s32.totalorder %s16, 0
    %p109 = por %p107, %p108
    %s110 = ssub.s32 %s17, %s29
    %p111 = scmp.eq.s32.totalorder %s110, 0
    %s113 = sadd.s32 %s112, 1
    %s114 = scalar_select %p111, %s112, %s113
    %p117 = pneg %p111
    %p118 = scmp.eq.s32.totalorder %s10, 1
    %p119 = por %p117, %p118
    %p120 = scmp.ne.s32.totalorder %s112, %s115
    %p121 = scmp.eq.s32.totalorder %s10, 0
    %p122 = por %p120, %p121
    %p123 = scmp.ne.s32.totalorder %s112, %s115
    %p124 = scmp.eq.s32.totalorder %s15, 1
    %p125 = por %p123, %p124
    %p126 = scmp.ne.s32.totalorder %s115, %s116
    %p127 = scmp.eq.s32.totalorder %s15, 0
    %p128 = por %p126, %p127
    %p129 = scmp.ne.s32.totalorder %s115, %s116
    %p130 = scmp.eq.s32.totalorder %s16, 1
    %p131 = por %p129, %p130
    %p133 = scmp.ne.s32.totalorder %s116, %s132
    %p134 = scmp.eq.s32.totalorder %s16, 0
    %p135 = por %p133, %p134
    %p136 = scmp.le.s32.totalorder 1, %s10
    %p137 = scmp.lt.s32.totalorder %s10, 3
    %p138 = pnand %p136, %p137
    %p139 = pneg %p138
    // Predicated region
    $region9: #{patchgan_forward.10} parent=5 // pred_check
      _
    $region10: #{patchgan_forward.10} parent=5 // pred_check_branch
      %141 = sbr.rel (%p138) target = $region12
    $region11: #{patchgan_forward.10} parent=5 // pred_region
      %s142 = ssub.s32 %s10, 1
    $region12: #{patchgan_forward.10} parent=5 // pred_fallthru
      _
    %p143 = scmp.lt.s32.totalorder %s10, 2
    // Predicated region
    $region13: #{patchgan_forward.10} parent=5 // pred_check
      %p144 = pneg %p143
    $region14: #{patchgan_forward.10} parent=5 // pred_check_branch
      %146 = sbr.rel (%p144) target = $region16
    $region15: #{patchgan_forward.10} parent=5 // pred_region
      // Predicated region
      $region17: #{patchgan_forward.10} parent=15 // pred_check
        %p147 = pneg %p44
      $region18: #{patchgan_forward.10} parent=15 // pred_check_branch
        %149 = sbr.rel (%p147) target = $region20
      $region19: #{patchgan_forward.10} parent=15 // pred_region
        %s150 = smul.u32 8, %s18
        %p151 = scmp.lt.s32.totalorder %s17, 0
        %s152 = scalar_select %p151, %s17, 0
        %p153 = scmp.lt.s32.totalorder %s150, 15
        %s154 = scalar_select %p153, %s150, 15
        %s155 = smul.addr %s152, 16
        %s156 = sadd.s32 %s154, %s155
        %s157 = smul.addr %s156, 4
        %s158 = scalar_lea.vmem %s0, %s157
        %s159 = smul.u32 8, %s18
      $region20: #{patchgan_forward.10} parent=15 // pred_fallthru
        _
      // Predicated region
      $region21: #{patchgan_forward.10} parent=15 // pred_check
        %p160 = pneg %p70
      $region22: #{patchgan_forward.10} parent=15 // pred_check_branch
        %162 = sbr.rel (%p160) target = $region24
      $region23: #{patchgan_forward.10} parent=15 // pred_region
        %s163 = smul.u32 128, %s18
        %p164 = scmp.lt.s32.totalorder %s163, 255
        %s165 = scalar_select %p164, %s163, 255
        %s166 = smul.addr %s165, 2
        %s167 = smul.addr %s166, 4
        %s168 = scalar_lea.vmem %s1, %s167
        %s169 = smul.u32 128, %s18
      $region24: #{patchgan_forward.10} parent=15 // pred_fallthru
        _
    $region16: #{patchgan_forward.10} parent=5 // pred_fallthru
      _
    %p170 = scmp.le.s32.totalorder 1, %s10
    %p171 = scmp.lt.s32.totalorder %s10, 3
    %p172 = pnand %p170, %p171
    %p173 = pneg %p172
    // Predicated region
    $region25: #{patchgan_forward.10} parent=5 // pred_check
      _
    $region26: #{patchgan_forward.10} parent=5 // pred_check_branch
      %175 = sbr.rel (%p172) target = $region28
    $region27: #{patchgan_forward.10} parent=5 // pred_region
      %s176 = ssub.s32 %s10, 1
      %s177 = smul.u32 8, %s20
      %p178 = scmp.lt.s32.totalorder %s19, 0
      %s179 = scalar_select %p178, %s19, 0
      %p180 = scmp.lt.s32.totalorder %s177, 15
      %s181 = scalar_select %p180, %s177, 15
      %s182 = smul.addr %s179, 16
      %s183 = sadd.s32 %s181, %s182
      %s184 = smul.addr %s183, 4
      %s185 = scalar_lea.vmem %s0, %s184
      %p186 = pneg %p50
      %p187 = pneg %p47
      %s188 = smul.u32 128, %s20
      %p189 = scmp.lt.s32.totalorder %s188, 255
      %s190 = scalar_select %p189, %s188, 255
      %s191 = smul.addr %s190, 2
      %s192 = smul.addr %s191, 4
      %s193 = scalar_lea.vmem %s1, %s192
      %p194 = pneg %p76
      %p195 = pneg %p73
      %p196 = pneg %p102
      %p197 = pneg %p99
      %p198 = scmp.lt.s32.totalorder %s19, 0
      %s199 = scalar_select %p198, %s19, 0
      %s200 = smul.addr %s199, 2
      %s201 = smul.addr %s200, 8
      %s202 = scalar_lea.vmem %s2, %s201
      %p203 = pneg %p128
      %p204 = pneg %p125
      %p205 = scmp.lt.s32.totalorder %s19, 0
      %s206 = scalar_select %p205, %s19, 0
      %s207 = smul.addr %s206, 2
      %s208 = smul.addr %s207, 2
      %s209 = scalar_lea.vmem %s3, %s208
      %s210 = smul.u32 8, %s20
      %p211 = scmp.lt.s32.totalorder %s19, 0
      %s212 = scalar_select %p211, %s19, 0
      %p213 = scmp.lt.s32.totalorder %s210, 15
      %s214 = scalar_select %p213, %s210, 15
      %s215 = smul.addr %s212, 16
      %s216 = sadd.s32 %s214, %s215
      %s217 = smul.addr %s216, 4
      %s218 = scalar_lea.vmem %s0, %s217
      %s219 = smul.u32 8, %s20
      %s220 = smul.u32 128, %s20
      %p221 = scmp.lt.s32.totalorder %s220, 255
      %s222 = scalar_select %p221, %s220, 255
      %s223 = smul.addr %s222, 2
      %s224 = smul.addr %s223, 4
      %s225 = scalar_lea.vmem %s1, %s224
      %s226 = smul.u32 128, %s20
      %p227 = scmp.lt.s32.totalorder %s19, 0
      %s228 = scalar_select %p227, %s19, 0
      %s229 = smul.addr %s228, 2
      %s230 = smul.addr %s229, 8
      %s231 = scalar_lea.vmem %s2, %s230
      %p232 = scmp.lt.s32.totalorder %s19, 0
      %s233 = scalar_select %p232, %s19, 0
      %s234 = smul.addr %s233, 2
      %s235 = smul.addr %s234, 2
      %s236 = scalar_lea.vmem %s3, %s235
      %p237 = scmp.eq.s32.totalorder %s20, 0
      // Predicated region
      $region29: #{patchgan_forward.10} parent=27 // pred_check
        %p238 = pneg %p237
      $region30: #{patchgan_forward.10} parent=27 // pred_check_branch
        %240 = sbr.rel (%p238) target = $region32
      $region31: #{patchgan_forward.10} parent=27 // pred_region
        %241 = vst [vmem:[#allocation2] sm:$0xff] 0.0
        %242 = vst [vmem:[#allocation2 + $0x8] sm:$0xff] 0.0
      $region32: #{patchgan_forward.10} parent=27 // pred_fallthru
        _
      %v243 = vld [vmem:[#allocation2] sm:$0xff]
      %v244 = vld [vmem:[#allocation2 + $0x8] sm:$0xff]
      %v245 = vld [vmem:[%s218] sm:$0xff]
      %v246 = vld [vmem:[%s218 + $0x8] sm:$0xff]
      %v247 = vld [vmem:[%s218 + $0x10] sm:$0xff]
      %v248 = vld [vmem:[%s218 + $0x18] sm:$0xff]
      %v249 = vld [vmem:[%s225] sm:$0xff]
      %v250 = vld [vmem:[%s225 + $0x8] sm:$0xff]
      %v251 = vld [vmem:[%s225 + $0x10] sm:$0xff]
      %v252 = vld [vmem:[%s225 + $0x18] sm:$0xff]
      %v253 = vld [vmem:[%s225 + $0x20] sm:$0xff]
      %v254 = vld [vmem:[%s225 + $0x28] sm:$0xff]
      %v255 = vld [vmem:[%s225 + $0x30] sm:$0xff]
      %v256 = vld [vmem:[%s225 + $0x38] sm:$0xff]
      %v257 = vld [vmem:[%s225 + $0x40] sm:$0xff]
      %v258 = vld [vmem:[%s225 + $0x48] sm:$0xff]
      %v259 = vld [vmem:[%s225 + $0x50] sm:$0xff]
      %v260 = vld [vmem:[%s225 + $0x58] sm:$0xff]
      %v261 = vld [vmem:[%s225 + $0x60] sm:$0xff]
      %v262 = vld [vmem:[%s225 + $0x68] sm:$0xff]
      %v263 = vld [vmem:[%s225 + $0x70] sm:$0xff]
      %v264 = vld [vmem:[%s225 + $0x78] sm:$0xff]
      %v265 = vld [vmem:[%s225 + $0x80] sm:$0xff]
      %v266 = vld [vmem:[%s225 + $0x88] sm:$0xff]
      %v267 = vld [vmem:[%s225 + $0x90] sm:$0xff]
      %v268 = vld [vmem:[%s225 + $0x98] sm:$0xff]
      %v269 = vld [vmem:[%s225 + $0xa0] sm:$0xff]
      %v270 = vld [vmem:[%s225 + $0xa8] sm:$0xff]
      %v271 = vld [vmem:[%s225 + $0xb0] sm:$0xff]
      %v272 = vld [vmem:[%s225 + $0xb8] sm:$0xff]
      %v273 = vld [vmem:[%s225 + $0xc0] sm:$0xff]
      %v274 = vld [vmem:[%s225 + $0xc8] sm:$0xff]
      %v275 = vld [vmem:[%s225 + $0xd0] sm:$0xff]
      %v276 = vld [vmem:[%s225 + $0xd8] sm:$0xff]
      %v277 = vld [vmem:[%s225 + $0xe0] sm:$0xff]
      %v278 = vld [vmem:[%s225 + $0xe8] sm:$0xff]
      %v279 = vld [vmem:[%s225 + $0xf0] sm:$0xff]
      %v280 = vld [vmem:[%s225 + $0xf8] sm:$0xff]
      %v281 = vld [vmem:[%s225 + $0x100] sm:$0xff]
      %v282 = vld [vmem:[%s225 + $0x108] sm:$0xff]
      %v283 = vld [vmem:[%s225 + $0x110] sm:$0xff]
      %v284 = vld [vmem:[%s225 + $0x118] sm:$0xff]
      %v285 = vld [vmem:[%s225 + $0x120] sm:$0xff]
      %v286 = vld [vmem:[%s225 + $0x128] sm:$0xff]
      %v287 = vld [vmem:[%s225 + $0x130] sm:$0xff]
      %v288 = vld [vmem:[%s225 + $0x138] sm:$0xff]
      %v289 = vld [vmem:[%s225 + $0x140] sm:$0xff]
      %v290 = vld [vmem:[%s225 + $0x148] sm:$0xff]
      %v291 = vld [vmem:[%s225 + $0x150] sm:$0xff]
      %v292 = vld [vmem:[%s225 + $0x158] sm:$0xff]
      %v293 = vld [vmem:[%s225 + $0x160] sm:$0xff]
      %v294 = vld [vmem:[%s225 + $0x168] sm:$0xff]
      %v295 = vld [vmem:[%s225 + $0x170] sm:$0xff]
      %v296 = vld [vmem:[%s225 + $0x178] sm:$0xff]
      %v297 = vld [vmem:[%s225 + $0x180] sm:$0xff]
      %v298 = vld [vmem:[%s225 + $0x188] sm:$0xff]
      %v299 = vld [vmem:[%s225 + $0x190] sm:$0xff]
      %v300 = vld [vmem:[%s225 + $0x198] sm:$0xff]
      %v301 = vld [vmem:[%s225 + $0x1a0] sm:$0xff]
      %v302 = vld [vmem:[%s225 + $0x1a8] sm:$0xff]
      %v303 = vld [vmem:[%s225 + $0x1b0] sm:$0xff]
      %v304 = vld [vmem:[%s225 + $0x1b8] sm:$0xff]
      %v305 = vld [vmem:[%s225 + $0x1c0] sm:$0xff]
      %v306 = vld [vmem:[%s225 + $0x1c8] sm:$0xff]
      %v307 = vld [vmem:[%s225 + $0x1d0] sm:$0xff]
      %v308 = vld [vmem:[%s225 + $0x1d8] sm:$0xff]
      %v309 = vld [vmem:[%s225 + $0x1e0] sm:$0xff]
      %v310 = vld [vmem:[%s225 + $0x1e8] sm:$0xff]
      %v311 = vld [vmem:[%s225 + $0x1f0] sm:$0xff]
      %v312 = vld [vmem:[%s225 + $0x1f8] sm:$0xff]
      %v313 = vld [vmem:[%s225 + $0x200] sm:$0xff]
      %v314 = vld [vmem:[%s225 + $0x208] sm:$0xff]
      %v315 = vld [vmem:[%s225 + $0x210] sm:$0xff]
      %v316 = vld [vmem:[%s225 + $0x218] sm:$0xff]
      %v317 = vld [vmem:[%s225 + $0x220] sm:$0xff]
      %v318 = vld [vmem:[%s225 + $0x228] sm:$0xff]
      %v319 = vld [vmem:[%s225 + $0x230] sm:$0xff]
      %v320 = vld [vmem:[%s225 + $0x238] sm:$0xff]
      %v321 = vld [vmem:[%s225 + $0x240] sm:$0xff]
      %v322 = vld [vmem:[%s225 + $0x248] sm:$0xff]
      %v323 = vld [vmem:[%s225 + $0x250] sm:$0xff]
      %v324 = vld [vmem:[%s225 + $0x258] sm:$0xff]
      %v325 = vld [vmem:[%s225 + $0x260] sm:$0xff]
      %v326 = vld [vmem:[%s225 + $0x268] sm:$0xff]
      %v327 = vld [vmem:[%s225 + $0x270] sm:$0xff]
      %v328 = vld [vmem:[%s225 + $0x278] sm:$0xff]
      %v329 = vld [vmem:[%s225 + $0x280] sm:$0xff]
      %v330 = vld [vmem:[%s225 + $0x288] sm:$0xff]
      %v331 = vld [vmem:[%s225 + $0x290] sm:$0xff]
      %v332 = vld [vmem:[%s225 + $0x298] sm:$0xff]
      %v333 = vld [vmem:[%s225 + $0x2a0] sm:$0xff]
      %v334 = vld [vmem:[%s225 + $0x2a8] sm:$0xff]
      %v335 = vld [vmem:[%s225 + $0x2b0] sm:$0xff]
      %v336 = vld [vmem:[%s225 + $0x2b8] sm:$0xff]
      %v337 = vld [vmem:[%s225 + $0x2c0] sm:$0xff]
      %v338 = vld [vmem:[%s225 + $0x2c8] sm:$0xff]
      %v339 = vld [vmem:[%s225 + $0x2d0] sm:$0xff]
      %v340 = vld [vmem:[%s225 + $0x2d8] sm:$0xff]
      %v341 = vld [vmem:[%s225 + $0x2e0] sm:$0xff]
      %v342 = vld [vmem:[%s225 + $0x2e8] sm:$0xff]
      %v343 = vld [vmem:[%s225 + $0x2f0] sm:$0xff]
      %v344 = vld [vmem:[%s225 + $0x2f8] sm:$0xff]
      %v345 = vld [vmem:[%s225 + $0x300] sm:$0xff]
      %v346 = vld [vmem:[%s225 + $0x308] sm:$0xff]
      %v347 = vld [vmem:[%s225 + $0x310] sm:$0xff]
      %v348 = vld [vmem:[%s225 + $0x318] sm:$0xff]
      %v349 = vld [vmem:[%s225 + $0x320] sm:$0xff]
      %v350 = vld [vmem:[%s225 + $0x328] sm:$0xff]
      %v351 = vld [vmem:[%s225 + $0x330] sm:$0xff]
      %v352 = vld [vmem:[%s225 + $0x338] sm:$0xff]
      %v353 = vld [vmem:[%s225 + $0x340] sm:$0xff]
      %v354 = vld [vmem:[%s225 + $0x348] sm:$0xff]
      %v355 = vld [vmem:[%s225 + $0x350] sm:$0xff]
      %v356 = vld [vmem:[%s225 + $0x358] sm:$0xff]
      %v357 = vld [vmem:[%s225 + $0x360] sm:$0xff]
      %v358 = vld [vmem:[%s225 + $0x368] sm:$0xff]
      %v359 = vld [vmem:[%s225 + $0x370] sm:$0xff]
      %v360 = vld [vmem:[%s225 + $0x378] sm:$0xff]
      %v361 = vld [vmem:[%s225 + $0x380] sm:$0xff]
      %v362 = vld [vmem:[%s225 + $0x388] sm:$0xff]
      %v363 = vld [vmem:[%s225 + $0x390] sm:$0xff]
      %v364 = vld [vmem:[%s225 + $0x398] sm:$0xff]
      %v365 = vld [vmem:[%s225 + $0x3a0] sm:$0xff]
      %v366 = vld [vmem:[%s225 + $0x3a8] sm:$0xff]
      %v367 = vld [vmem:[%s225 + $0x3b0] sm:$0xff]
      %v368 = vld [vmem:[%s225 + $0x3b8] sm:$0xff]
      %v369 = vld [vmem:[%s225 + $0x3c0] sm:$0xff]
      %v370 = vld [vmem:[%s225 + $0x3c8] sm:$0xff]
      %v371 = vld [vmem:[%s225 + $0x3d0] sm:$0xff]
      %v372 = vld [vmem:[%s225 + $0x3d8] sm:$0xff]
      %v373 = vld [vmem:[%s225 + $0x3e0] sm:$0xff]
      %v374 = vld [vmem:[%s225 + $0x3e8] sm:$0xff]
      %v375 = vld [vmem:[%s225 + $0x3f0] sm:$0xff]
      %v376 = vld [vmem:[%s225 + $0x3f8] sm:$0xff]
      %v381 = vunpack.c.l.b16 %v245
      %v382 = vunpack.c.h.b16 %v245
      %v383 = vunpack.c.l.b16 %v246
      %v384 = vunpack.c.h.b16 %v246
      %v385 = vunpack.c.l.b16 %v247
      %v386 = vunpack.c.h.b16 %v247
      %v387 = vunpack.c.l.b16 %v248
      %v388 = vunpack.c.h.b16 %v248
      %v389 = vpack.c.b16 %v381, %v381
      %v390 = vpack.c.b16 %v382, %v382
      %v391 = vpack.c.b16 %v383, %v383
      %v392 = vpack.c.b16 %v384, %v384
      %v393 = vpack.c.b16 %v385, %v385
      %v394 = vpack.c.b16 %v386, %v386
      %v395 = vpack.c.b16 %v387, %v387
      %v396 = vpack.c.b16 %v388, %v388
      %v533 = vunpack.c.l.b16 %v249
      %v534 = vunpack.c.h.b16 %v249
      %v535 = vunpack.c.l.b16 %v250
      %v536 = vunpack.c.h.b16 %v250
      %v537 = vunpack.c.l.b16 %v251
      %v538 = vunpack.c.h.b16 %v251
      %v539 = vunpack.c.l.b16 %v252
      %v540 = vunpack.c.h.b16 %v252
      %v541 = vunpack.c.l.b16 %v253
      %v542 = vunpack.c.h.b16 %v253
      %v543 = vunpack.c.l.b16 %v254
      %v544 = vunpack.c.h.b16 %v254
      %v545 = vunpack.c.l.b16 %v255
      %v546 = vunpack.c.h.b16 %v255
      %v547 = vunpack.c.l.b16 %v256
      %v548 = vunpack.c.h.b16 %v256
      %v549 = vunpack.c.l.b16 %v257
      %v550 = vunpack.c.h.b16 %v257
      %v551 = vunpack.c.l.b16 %v258
      %v552 = vunpack.c.h.b16 %v258
      %v553 = vunpack.c.l.b16 %v259
      %v554 = vunpack.c.h.b16 %v259
      %v555 = vunpack.c.l.b16 %v260
      %v556 = vunpack.c.h.b16 %v260
      %v557 = vunpack.c.l.b16 %v261
      %v558 = vunpack.c.h.b16 %v261
      %v559 = vunpack.c.l.b16 %v262
      %v560 = vunpack.c.h.b16 %v262
      %v561 = vunpack.c.l.b16 %v263
      %v562 = vunpack.c.h.b16 %v263
      %v563 = vunpack.c.l.b16 %v264
      %v564 = vunpack.c.h.b16 %v264
      %v565 = vunpack.c.l.b16 %v265
      %v566 = vunpack.c.h.b16 %v265
      %v567 = vunpack.c.l.b16 %v266
      %v568 = vunpack.c.h.b16 %v266
      %v569 = vunpack.c.l.b16 %v267
      %v570 = vunpack.c.h.b16 %v267
      %v571 = vunpack.c.l.b16 %v268
      %v572 = vunpack.c.h.b16 %v268
      %v573 = vunpack.c.l.b16 %v269
      %v574 = vunpack.c.h.b16 %v269
      %v575 = vunpack.c.l.b16 %v270
      %v576 = vunpack.c.h.b16 %v270
      %v577 = vunpack.c.l.b16 %v271
      %v578 = vunpack.c.h.b16 %v271
      %v579 = vunpack.c.l.b16 %v272
      %v580 = vunpack.c.h.b16 %v272
      %v581 = vunpack.c.l.b16 %v273
      %v582 = vunpack.c.h.b16 %v273
      %v583 = vunpack.c.l.b16 %v274
      %v584 = vunpack.c.h.b16 %v274
      %v585 = vunpack.c.l.b16 %v275
      %v586 = vunpack.c.h.b16 %v275
      %v587 = vunpack.c.l.b16 %v276
      %v588 = vunpack.c.h.b16 %v276
      %v589 = vunpack.c.l.b16 %v277
      %v590 = vunpack.c.h.b16 %v277
      %v591 = vunpack.c.l.b16 %v278
      %v592 = vunpack.c.h.b16 %v278
      %v593 = vunpack.c.l.b16 %v279
      %v594 = vunpack.c.h.b16 %v279
      %v595 = vunpack.c.l.b16 %v280
      %v596 = vunpack.c.h.b16 %v280
      %v597 = vunpack.c.l.b16 %v281
      %v598 = vunpack.c.h.b16 %v281
      %v599 = vunpack.c.l.b16 %v282
      %v600 = vunpack.c.h.b16 %v282
      %v601 = vunpack.c.l.b16 %v283
      %v602 = vunpack.c.h.b16 %v283
      %v603 = vunpack.c.l.b16 %v284
      %v604 = vunpack.c.h.b16 %v284
      %v605 = vunpack.c.l.b16 %v285
      %v606 = vunpack.c.h.b16 %v285
      %v607 = vunpack.c.l.b16 %v286
      %v608 = vunpack.c.h.b16 %v286
      %v609 = vunpack.c.l.b16 %v287
      %v610 = vunpack.c.h.b16 %v287
      %v611 = vunpack.c.l.b16 %v288
      %v612 = vunpack.c.h.b16 %v288
      %v613 = vunpack.c.l.b16 %v289
      %v614 = vunpack.c.h.b16 %v289
      %v615 = vunpack.c.l.b16 %v290
      %v616 = vunpack.c.h.b16 %v290
      %v617 = vunpack.c.l.b16 %v291
      %v618 = vunpack.c.h.b16 %v291
      %v619 = vunpack.c.l.b16 %v292
      %v620 = vunpack.c.h.b16 %v292
      %v621 = vunpack.c.l.b16 %v293
      %v622 = vunpack.c.h.b16 %v293
      %v623 = vunpack.c.l.b16 %v294
      %v624 = vunpack.c.h.b16 %v294
      %v625 = vunpack.c.l.b16 %v295
      %v626 = vunpack.c.h.b16 %v295
      %v627 = vunpack.c.l.b16 %v296
      %v628 = vunpack.c.h.b16 %v296
      %v629 = vunpack.c.l.b16 %v297
      %v630 = vunpack.c.h.b16 %v297
      %v631 = vunpack.c.l.b16 %v298
      %v632 = vunpack.c.h.b16 %v298
      %v633 = vunpack.c.l.b16 %v299
      %v634 = vunpack.c.h.b16 %v299
      %v635 = vunpack.c.l.b16 %v300
      %v636 = vunpack.c.h.b16 %v300
      %v637 = vunpack.c.l.b16 %v301
      %v638 = vunpack.c.h.b16 %v301
      %v639 = vunpack.c.l.b16 %v302
      %v640 = vunpack.c.h.b16 %v302
      %v641 = vunpack.c.l.b16 %v303
      %v642 = vunpack.c.h.b16 %v303
      %v643 = vunpack.c.l.b16 %v304
      %v644 = vunpack.c.h.b16 %v304
      %v645 = vunpack.c.l.b16 %v305
      %v646 = vunpack.c.h.b16 %v305
      %v647 = vunpack.c.l.b16 %v306
      %v648 = vunpack.c.h.b16 %v306
      %v649 = vunpack.c.l.b16 %v307
      %v650 = vunpack.c.h.b16 %v307
      %v651 = vunpack.c.l.b16 %v308
      %v652 = vunpack.c.h.b16 %v308
      %v653 = vunpack.c.l.b16 %v309
      %v654 = vunpack.c.h.b16 %v309
      %v655 = vunpack.c.l.b16 %v310
      %v656 = vunpack.c.h.b16 %v310
      %v657 = vunpack.c.l.b16 %v311
      %v658 = vunpack.c.h.b16 %v311
      %v659 = vunpack.c.l.b16 %v312
      %v660 = vunpack.c.h.b16 %v312
      %v661 = vunpack.c.l.b16 %v313
      %v662 = vunpack.c.h.b16 %v313
      %v663 = vunpack.c.l.b16 %v314
      %v664 = vunpack.c.h.b16 %v314
      %v665 = vunpack.c.l.b16 %v315
      %v666 = vunpack.c.h.b16 %v315
      %v667 = vunpack.c.l.b16 %v316
      %v668 = vunpack.c.h.b16 %v316
      %v669 = vunpack.c.l.b16 %v317
      %v670 = vunpack.c.h.b16 %v317
      %v671 = vunpack.c.l.b16 %v318
      %v672 = vunpack.c.h.b16 %v318
      %v673 = vunpack.c.l.b16 %v319
      %v674 = vunpack.c.h.b16 %v319
      %v675 = vunpack.c.l.b16 %v320
      %v676 = vunpack.c.h.b16 %v320
      %v677 = vunpack.c.l.b16 %v321
      %v678 = vunpack.c.h.b16 %v321
      %v679 = vunpack.c.l.b16 %v322
      %v680 = vunpack.c.h.b16 %v322
      %v681 = vunpack.c.l.b16 %v323
      %v682 = vunpack.c.h.b16 %v323
      %v683 = vunpack.c.l.b16 %v324
      %v684 = vunpack.c.h.b16 %v324
      %v685 = vunpack.c.l.b16 %v325
      %v686 = vunpack.c.h.b16 %v325
      %v687 = vunpack.c.l.b16 %v326
      %v688 = vunpack.c.h.b16 %v326
      %v689 = vunpack.c.l.b16 %v327
      %v690 = vunpack.c.h.b16 %v327
      %v691 = vunpack.c.l.b16 %v328
      %v692 = vunpack.c.h.b16 %v328
      %v693 = vunpack.c.l.b16 %v329
      %v694 = vunpack.c.h.b16 %v329
      %v695 = vunpack.c.l.b16 %v330
      %v696 = vunpack.c.h.b16 %v330
      %v697 = vunpack.c.l.b16 %v331
      %v698 = vunpack.c.h.b16 %v331
      %v699 = vunpack.c.l.b16 %v332
      %v700 = vunpack.c.h.b16 %v332
      %v701 = vunpack.c.l.b16 %v333
      %v702 = vunpack.c.h.b16 %v333
      %v703 = vunpack.c.l.b16 %v334
      %v704 = vunpack.c.h.b16 %v334
      %v705 = vunpack.c.l.b16 %v335
      %v706 = vunpack.c.h.b16 %v335
      %v707 = vunpack.c.l.b16 %v336
      %v708 = vunpack.c.h.b16 %v336
      %v709 = vunpack.c.l.b16 %v337
      %v710 = vunpack.c.h.b16 %v337
      %v711 = vunpack.c.l.b16 %v338
      %v712 = vunpack.c.h.b16 %v338
      %v713 = vunpack.c.l.b16 %v339
      %v714 = vunpack.c.h.b16 %v339
      %v715 = vunpack.c.l.b16 %v340
      %v716 = vunpack.c.h.b16 %v340
      %v717 = vunpack.c.l.b16 %v341
      %v718 = vunpack.c.h.b16 %v341
      %v719 = vunpack.c.l.b16 %v342
      %v720 = vunpack.c.h.b16 %v342
      %v721 = vunpack.c.l.b16 %v343
      %v722 = vunpack.c.h.b16 %v343
      %v723 = vunpack.c.l.b16 %v344
      %v724 = vunpack.c.h.b16 %v344
      %v725 = vunpack.c.l.b16 %v345
      %v726 = vunpack.c.h.b16 %v345
      %v727 = vunpack.c.l.b16 %v346
      %v728 = vunpack.c.h.b16 %v346
      %v729 = vunpack.c.l.b16 %v347
      %v730 = vunpack.c.h.b16 %v347
      %v731 = vunpack.c.l.b16 %v348
      %v732 = vunpack.c.h.b16 %v348
      %v733 = vunpack.c.l.b16 %v349
      %v734 = vunpack.c.h.b16 %v349
      %v735 = vunpack.c.l.b16 %v350
      %v736 = vunpack.c.h.b16 %v350
      %v737 = vunpack.c.l.b16 %v351
      %v738 = vunpack.c.h.b16 %v351
      %v739 = vunpack.c.l.b16 %v352
      %v740 = vunpack.c.h.b16 %v352
      %v741 = vunpack.c.l.b16 %v353
      %v742 = vunpack.c.h.b16 %v353
      %v743 = vunpack.c.l.b16 %v354
      %v744 = vunpack.c.h.b16 %v354
      %v745 = vunpack.c.l.b16 %v355
      %v746 = vunpack.c.h.b16 %v355
      %v747 = vunpack.c.l.b16 %v356
      %v748 = vunpack.c.h.b16 %v356
      %v749 = vunpack.c.l.b16 %v357
      %v750 = vunpack.c.h.b16 %v357
      %v751 = vunpack.c.l.b16 %v358
      %v752 = vunpack.c.h.b16 %v358
      %v753 = vunpack.c.l.b16 %v359
      %v754 = vunpack.c.h.b16 %v359
      %v755 = vunpack.c.l.b16 %v360
      %v756 = vunpack.c.h.b16 %v360
      %v757 = vunpack.c.l.b16 %v361
      %v758 = vunpack.c.h.b16 %v361
      %v759 = vunpack.c.l.b16 %v362
      %v760 = vunpack.c.h.b16 %v362
      %v761 = vunpack.c.l.b16 %v363
      %v762 = vunpack.c.h.b16 %v363
      %v763 = vunpack.c.l.b16 %v364
      %v764 = vunpack.c.h.b16 %v364
      %v765 = vunpack.c.l.b16 %v365
      %v766 = vunpack.c.h.b16 %v365
      %v767 = vunpack.c.l.b16 %v366
      %v768 = vunpack.c.h.b16 %v366
      %v769 = vunpack.c.l.b16 %v367
      %v770 = vunpack.c.h.b16 %v367
      %v771 = vunpack.c.l.b16 %v368
      %v772 = vunpack.c.h.b16 %v368
      %v773 = vunpack.c.l.b16 %v369
      %v774 = vunpack.c.h.b16 %v369
      %v775 = vunpack.c.l.b16 %v370
      %v776 = vunpack.c.h.b16 %v370
      %v777 = vunpack.c.l.b16 %v371
      %v778 = vunpack.c.h.b16 %v371
      %v779 = vunpack.c.l.b16 %v372
      %v780 = vunpack.c.h.b16 %v372
      %v781 = vunpack.c.l.b16 %v373
      %v782 = vunpack.c.h.b16 %v373
      %v783 = vunpack.c.l.b16 %v374
      %v784 = vunpack.c.h.b16 %v374
      %v785 = vunpack.c.l.b16 %v375
      %v786 = vunpack.c.h.b16 %v375
      %v787 = vunpack.c.l.b16 %v376
      %v788 = vunpack.c.h.b16 %v376
      %v789 = vpack.c.b16 %v535, %v533
      %v790 = vpack.c.b16 %v536, %v534
      %v791 = vpack.c.b16 %v539, %v537
      %v792 = vpack.c.b16 %v540, %v538
      %v793 = vpack.c.b16 %v543, %v541
      %v794 = vpack.c.b16 %v544, %v542
      %v795 = vpack.c.b16 %v547, %v545
      %v796 = vpack.c.b16 %v548, %v546
      %v797 = vpack.c.b16 %v551, %v549
      %v798 = vpack.c.b16 %v552, %v550
      %v799 = vpack.c.b16 %v555, %v553
      %v800 = vpack.c.b16 %v556, %v554
      %v801 = vpack.c.b16 %v559, %v557
      %v802 = vpack.c.b16 %v560, %v558
      %v803 = vpack.c.b16 %v563, %v561
      %v804 = vpack.c.b16 %v564, %v562
      %v805 = vpack.c.b16 %v567, %v565
      %v806 = vpack.c.b16 %v568, %v566
      %v807 = vpack.c.b16 %v571, %v569
      %v808 = vpack.c.b16 %v572, %v570
      %v809 = vpack.c.b16 %v575, %v573
      %v810 = vpack.c.b16 %v576, %v574
      %v811 = vpack.c.b16 %v579, %v577
      %v812 = vpack.c.b16 %v580, %v578
      %v813 = vpack.c.b16 %v583, %v581
      %v814 = vpack.c.b16 %v584, %v582
      %v815 = vpack.c.b16 %v587, %v585
      %v816 = vpack.c.b16 %v588, %v586
      %v817 = vpack.c.b16 %v591, %v589
      %v818 = vpack.c.b16 %v592, %v590
      %v819 = vpack.c.b16 %v595, %v593
      %v820 = vpack.c.b16 %v596, %v594
      %v821 = vpack.c.b16 %v599, %v597
      %v822 = vpack.c.b16 %v600, %v598
      %v823 = vpack.c.b16 %v603, %v601
      %v824 = vpack.c.b16 %v604, %v602
      %v825 = vpack.c.b16 %v607, %v605
      %v826 = vpack.c.b16 %v608, %v606
      %v827 = vpack.c.b16 %v611, %v609
      %v828 = vpack.c.b16 %v612, %v610
      %v829 = vpack.c.b16 %v615, %v613
      %v830 = vpack.c.b16 %v616, %v614
      %v831 = vpack.c.b16 %v619, %v617
      %v832 = vpack.c.b16 %v620, %v618
      %v833 = vpack.c.b16 %v623, %v621
      %v834 = vpack.c.b16 %v624, %v622
      %v835 = vpack.c.b16 %v627, %v625
      %v836 = vpack.c.b16 %v628, %v626
      %v837 = vpack.c.b16 %v631, %v629
      %v838 = vpack.c.b16 %v632, %v630
      %v839 = vpack.c.b16 %v635, %v633
      %v840 = vpack.c.b16 %v636, %v634
      %v841 = vpack.c.b16 %v639, %v637
      %v842 = vpack.c.b16 %v640, %v638
      %v843 = vpack.c.b16 %v643, %v641
      %v844 = vpack.c.b16 %v644, %v642
      %v845 = vpack.c.b16 %v647, %v645
      %v846 = vpack.c.b16 %v648, %v646
      %v847 = vpack.c.b16 %v651, %v649
      %v848 = vpack.c.b16 %v652, %v650
      %v849 = vpack.c.b16 %v655, %v653
      %v850 = vpack.c.b16 %v656, %v654
      %v851 = vpack.c.b16 %v659, %v657
      %v852 = vpack.c.b16 %v660, %v658
      %v853 = vpack.c.b16 %v663, %v661
      %v854 = vpack.c.b16 %v664, %v662
      %v855 = vpack.c.b16 %v667, %v665
      %v856 = vpack.c.b16 %v668, %v666
      %v857 = vpack.c.b16 %v671, %v669
      %v858 = vpack.c.b16 %v672, %v670
      %v859 = vpack.c.b16 %v675, %v673
      %v860 = vpack.c.b16 %v676, %v674
      %v861 = vpack.c.b16 %v679, %v677
      %v862 = vpack.c.b16 %v680, %v678
      %v863 = vpack.c.b16 %v683, %v681
      %v864 = vpack.c.b16 %v684, %v682
      %v865 = vpack.c.b16 %v687, %v685
      %v866 = vpack.c.b16 %v688, %v686
      %v867 = vpack.c.b16 %v691, %v689
      %v868 = vpack.c.b16 %v692, %v690
      %v869 = vpack.c.b16 %v695, %v693
      %v870 = vpack.c.b16 %v696, %v694
      %v871 = vpack.c.b16 %v699, %v697
      %v872 = vpack.c.b16 %v700, %v698
      %v873 = vpack.c.b16 %v703, %v701
      %v874 = vpack.c.b16 %v704, %v702
      %v875 = vpack.c.b16 %v707, %v705
      %v876 = vpack.c.b16 %v708, %v706
      %v877 = vpack.c.b16 %v711, %v709
      %v878 = vpack.c.b16 %v712, %v710
      %v879 = vpack.c.b16 %v715, %v713
      %v880 = vpack.c.b16 %v716, %v714
      %v881 = vpack.c.b16 %v719, %v717
      %v882 = vpack.c.b16 %v720, %v718
      %v883 = vpack.c.b16 %v723, %v721
      %v884 = vpack.c.b16 %v724, %v722
      %v885 = vpack.c.b16 %v727, %v725
      %v886 = vpack.c.b16 %v728, %v726
      %v887 = vpack.c.b16 %v731, %v729
      %v888 = vpack.c.b16 %v732, %v730
      %v889 = vpack.c.b16 %v735, %v733
      %v890 = vpack.c.b16 %v736, %v734
      %v891 = vpack.c.b16 %v739, %v737
      %v892 = vpack.c.b16 %v740, %v738
      %v893 = vpack.c.b16 %v743, %v741
      %v894 = vpack.c.b16 %v744, %v742
      %v895 = vpack.c.b16 %v747, %v745
      %v896 = vpack.c.b16 %v748, %v746
      %v897 = vpack.c.b16 %v751, %v749
      %v898 = vpack.c.b16 %v752, %v750
      %v899 = vpack.c.b16 %v755, %v753
      %v900 = vpack.c.b16 %v756, %v754
      %v901 = vpack.c.b16 %v759, %v757
      %v902 = vpack.c.b16 %v760, %v758
      %v903 = vpack.c.b16 %v763, %v761
      %v904 = vpack.c.b16 %v764, %v762
      %v905 = vpack.c.b16 %v767, %v765
      %v906 = vpack.c.b16 %v768, %v766
      %v907 = vpack.c.b16 %v771, %v769
      %v908 = vpack.c.b16 %v772, %v770
      %v909 = vpack.c.b16 %v775, %v773
      %v910 = vpack.c.b16 %v776, %v774
      %v911 = vpack.c.b16 %v779, %v777
      %v912 = vpack.c.b16 %v780, %v778
      %v913 = vpack.c.b16 %v783, %v781
      %v914 = vpack.c.b16 %v784, %v782
      %v915 = vpack.c.b16 %v787, %v785
      %v916 = vpack.c.b16 %v788, %v786
      %1045 = vmatprep.subr.bf16.mxu0 %v804
      %1046 = vmatpush1.bf16.msra.mxu0 %v803
      %1047 = vmatprep.subr.bf16.mxu0 %v802
      %1048 = vmatpush1.bf16.msra.mxu0 %v801
      %1049 = vmatprep.subr.bf16.mxu0 %v800
      %1050 = vmatpush1.bf16.msra.mxu0 %v799
      %1051 = vmatprep.subr.bf16.mxu0 %v798
      %1052 = vmatpush1.bf16.msra.mxu0 %v797
      %1053 = vmatprep.subr.bf16.mxu0 %v796
      %1054 = vmatpush1.bf16.msra.mxu0 %v795
      %1055 = vmatprep.subr.bf16.mxu0 %v794
      %1056 = vmatpush1.bf16.msra.mxu0 %v793
      %1057 = vmatprep.subr.bf16.mxu0 %v792
      %1058 = vmatpush1.bf16.msra.mxu0 %v791
      %1059 = vmatprep.subr.bf16.mxu0 %v790
      %1060 = vmatpush1.bf16.msra.mxu0 %v789
      %1061 = vmatprep.subr.bf16.mxu0 %v820
      %1062 = vmatpush2.bf16.msra.mxu0 %v819
      %1063 = vmatprep.subr.bf16.mxu0 %v818
      %1064 = vmatpush2.bf16.msra.mxu0 %v817
      %1065 = vmatprep.subr.bf16.mxu0 %v816
      %1066 = vmatpush2.bf16.msra.mxu0 %v815
      %1067 = vmatprep.subr.bf16.mxu0 %v814
      %1068 = vmatpush2.bf16.msra.mxu0 %v813
      %1069 = vmatprep.subr.bf16.mxu0 %v812
      %1070 = vmatpush2.bf16.msra.mxu0 %v811
      %1071 = vmatprep.subr.bf16.mxu0 %v810
      %1072 = vmatpush2.bf16.msra.mxu0 %v809
      %1073 = vmatprep.subr.bf16.mxu0 %v808
      %1074 = vmatpush2.bf16.msra.mxu0 %v807
      %1075 = vmatprep.subr.bf16.mxu0 %v806
      %1076 = vmatpush2.bf16.msra.mxu0 %v805
      %1077 = vmatprep.mubr.bf16.mxu0 %v390
      %1078 = vmatmul.mubr.bf16.gmra.mxu0 %v389
      %v1079 = vpop.f32.mrf.mxu0
      %v1080 = vadd.f32 0.0, %v1079
      %v1081 = vpop.f32.mrf.mxu0
      %v1082 = vadd.f32 0.0, %v1081
      %v1083 = vpop.f32.mrf.mxu0
      %v1084 = vpop.f32.mrf.mxu0
      %1085 = vdwg.mxu0
      %1086 = vmatprep.subr.bf16.mxu0 %v836
      %1087 = vmatpush1.bf16.msra.mxu0 %v835
      %1088 = vmatprep.subr.bf16.mxu0 %v834
      %1089 = vmatpush1.bf16.msra.mxu0 %v833
      %1090 = vmatprep.subr.bf16.mxu0 %v832
      %1091 = vmatpush1.bf16.msra.mxu0 %v831
      %1092 = vmatprep.subr.bf16.mxu0 %v830
      %1093 = vmatpush1.bf16.msra.mxu0 %v829
      %1094 = vmatprep.subr.bf16.mxu0 %v828
      %1095 = vmatpush1.bf16.msra.mxu0 %v827
      %1096 = vmatprep.subr.bf16.mxu0 %v826
      %1097 = vmatpush1.bf16.msra.mxu0 %v825
      %1098 = vmatprep.subr.bf16.mxu0 %v824
      %1099 = vmatpush1.bf16.msra.mxu0 %v823
      %1100 = vmatprep.subr.bf16.mxu0 %v822
      %1101 = vmatpush1.bf16.msra.mxu0 %v821
      %1102 = vmatprep.subr.bf16.mxu0 %v852
      %1103 = vmatpush2.bf16.msra.mxu0 %v851
      %1104 = vmatprep.subr.bf16.mxu0 %v850
      %1105 = vmatpush2.bf16.msra.mxu0 %v849
      %1106 = vmatprep.subr.bf16.mxu0 %v848
      %1107 = vmatpush2.bf16.msra.mxu0 %v847
      %1108 = vmatprep.subr.bf16.mxu0 %v846
      %1109 = vmatpush2.bf16.msra.mxu0 %v845
      %1110 = vmatprep.subr.bf16.mxu0 %v844
      %1111 = vmatpush2.bf16.msra.mxu0 %v843
      %1112 = vmatprep.subr.bf16.mxu0 %v842
      %1113 = vmatpush2.bf16.msra.mxu0 %v841
      %1114 = vmatprep.subr.bf16.mxu0 %v840
      %1115 = vmatpush2.bf16.msra.mxu0 %v839
      %1116 = vmatprep.subr.bf16.mxu0 %v838
      %1117 = vmatpush2.bf16.msra.mxu0 %v837
      %1118 = vmatprep.mubr.bf16.mxu0 %v392
      %1119 = vmatmul.mubr.bf16.gmra.mxu0 %v391
      %v1120 = vpop.f32.mrf.mxu0
      %v1121 = vadd.f32 %v1080, %v1120
      %v1122 = vpop.f32.mrf.mxu0
      %v1123 = vadd.f32 %v1082, %v1122
      %v1124 = vpop.f32.mrf.mxu0
      %v1125 = vpop.f32.mrf.mxu0
      %1126 = vdwg.mxu0
      %1127 = vmatprep.subr.bf16.mxu0 %v868
      %1128 = vmatpush1.bf16.msra.mxu0 %v867
      %1129 = vmatprep.subr.bf16.mxu0 %v866
      %1130 = vmatpush1.bf16.msra.mxu0 %v865
      %1131 = vmatprep.subr.bf16.mxu0 %v864
      %1132 = vmatpush1.bf16.msra.mxu0 %v863
      %1133 = vmatprep.subr.bf16.mxu0 %v862
      %1134 = vmatpush1.bf16.msra.mxu0 %v861
      %1135 = vmatprep.subr.bf16.mxu0 %v860
      %1136 = vmatpush1.bf16.msra.mxu0 %v859
      %1137 = vmatprep.subr.bf16.mxu0 %v858
      %1138 = vmatpush1.bf16.msra.mxu0 %v857
      %1139 = vmatprep.subr.bf16.mxu0 %v856
      %1140 = vmatpush1.bf16.msra.mxu0 %v855
      %1141 = vmatprep.subr.bf16.mxu0 %v854
      %1142 = vmatpush1.bf16.msra.mxu0 %v853
      %1143 = vmatprep.subr.bf16.mxu0 %v884
      %1144 = vmatpush2.bf16.msra.mxu0 %v883
      %1145 = vmatprep.subr.bf16.mxu0 %v882
      %1146 = vmatpush2.bf16.msra.mxu0 %v881
      %1147 = vmatprep.subr.bf16.mxu0 %v880
      %1148 = vmatpush2.bf16.msra.mxu0 %v879
      %1149 = vmatprep.subr.bf16.mxu0 %v878
      %1150 = vmatpush2.bf16.msra.mxu0 %v877
      %1151 = vmatprep.subr.bf16.mxu0 %v876
      %1152 = vmatpush2.bf16.msra.mxu0 %v875
      %1153 = vmatprep.subr.bf16.mxu0 %v874
      %1154 = vmatpush2.bf16.msra.mxu0 %v873
      %1155 = vmatprep.subr.bf16.mxu0 %v872
      %1156 = vmatpush2.bf16.msra.mxu0 %v871
      %1157 = vmatprep.subr.bf16.mxu0 %v870
      %1158 = vmatpush2.bf16.msra.mxu0 %v869
      %1159 = vmatprep.mubr.bf16.mxu0 %v394
      %1160 = vmatmul.mubr.bf16.gmra.mxu0 %v393
      %v1161 = vpop.f32.mrf.mxu0
      %v1162 = vadd.f32 %v1121, %v1161
      %v1163 = vpop.f32.mrf.mxu0
      %v1164 = vadd.f32 %v1123, %v1163
      %v1165 = vpop.f32.mrf.mxu0
      %v1166 = vpop.f32.mrf.mxu0
      %1167 = vdwg.mxu0
      %1168 = vmatprep.subr.bf16.mxu0 %v900
      %1169 = vmatpush1.bf16.msra.mxu0 %v899
      %1170 = vmatprep.subr.bf16.mxu0 %v898
      %1171 = vmatpush1.bf16.msra.mxu0 %v897
      %1172 = vmatprep.subr.bf16.mxu0 %v896
      %1173 = vmatpush1.bf16.msra.mxu0 %v895
      %1174 = vmatprep.subr.bf16.mxu0 %v894
      %1175 = vmatpush1.bf16.msra.mxu0 %v893
      %1176 = vmatprep.subr.bf16.mxu0 %v892
      %1177 = vmatpush1.bf16.msra.mxu0 %v891
      %1178 = vmatprep.subr.bf16.mxu0 %v890
      %1179 = vmatpush1.bf16.msra.mxu0 %v889
      %1180 = vmatprep.subr.bf16.mxu0 %v888
      %1181 = vmatpush1.bf16.msra.mxu0 %v887
      %1182 = vmatprep.subr.bf16.mxu0 %v886
      %1183 = vmatpush1.bf16.msra.mxu0 %v885
      %1184 = vmatprep.subr.bf16.mxu0 %v916
      %1185 = vmatpush2.bf16.msra.mxu0 %v915
      %1186 = vmatprep.subr.bf16.mxu0 %v914
      %1187 = vmatpush2.bf16.msra.mxu0 %v913
      %1188 = vmatprep.subr.bf16.mxu0 %v912
      %1189 = vmatpush2.bf16.msra.mxu0 %v911
      %1190 = vmatprep.subr.bf16.mxu0 %v910
      %1191 = vmatpush2.bf16.msra.mxu0 %v909
      %1192 = vmatprep.subr.bf16.mxu0 %v908
      %1193 = vmatpush2.bf16.msra.mxu0 %v907
      %1194 = vmatprep.subr.bf16.mxu0 %v906
      %1195 = vmatpush2.bf16.msra.mxu0 %v905
      %1196 = vmatprep.subr.bf16.mxu0 %v904
      %1197 = vmatpush2.bf16.msra.mxu0 %v903
      %1198 = vmatprep.subr.bf16.mxu0 %v902
      %1199 = vmatpush2.bf16.msra.mxu0 %v901
      %1200 = vmatprep.mubr.bf16.mxu0 %v396
      %1201 = vmatmul.mubr.bf16.gmra.mxu0 %v395
      %v1202 = vpop.f32.mrf.mxu0
      %v1203 = vadd.f32 %v1162, %v1202
      %v1204 = vpop.f32.mrf.mxu0
      %v1205 = vadd.f32 %v1164, %v1204
      %v1206 = vpop.f32.mrf.mxu0
      %v1207 = vpop.f32.mrf.mxu0
      %1208 = vdwg.mxu0
      %v1209 = vadd.f32 %v243, %v1203
      %v1210 = vadd.f32 %v244, %v1205
      %1211 = vst [vmem:[#allocation2] sm:$0xff] %v1209
      %1212 = vst [vmem:[#allocation2 + $0x8] sm:$0xff] %v1210
      %p1213 = scmp.eq.s32.totalorder %s20, 1
      // Predicated region
      $region33: #{patchgan_forward.10} parent=27 // pred_check
        %p1214 = pneg %p1213
      $region34: #{patchgan_forward.10} parent=27 // pred_check_branch
        %1216 = sbr.rel (%p1214) target = $region36
      $region35: #{patchgan_forward.10} parent=27 // pred_region
        %v1217 = vld [vmem:[#allocation2] sm:$0xff]
        %v1218 = vld [vmem:[#allocation2 + $0x8] sm:$0xff]
        %1219 = vst [vmem:[%s231] sm:$0xff] %v1217
        %1220 = vst [vmem:[%s231 + $0x8] sm:$0xff] %v1218
        %v1221 = vrot.slane %v1217, 4
        %v1222 = vadd.f32 %v1217, %v1221
        %v1223 = vrot.slane %v1222, 2
        %v1224 = vadd.f32 %v1222, %v1223
        %v1225 = vrot.slane %v1224, 1
        %v1226 = vadd.f32 %v1224, %v1225
        %v1227 = vrot.slane %v1218, 4
        %v1228 = vadd.f32 %v1218, %v1227
        %v1229 = vrot.slane %v1228, 2
        %v1230 = vadd.f32 %v1228, %v1229
        %v1231 = vrot.slane %v1230, 1
        %v1232 = vadd.f32 %v1230, %v1231
        %v1233 = vmul.f32 %v1217, %v1217
        %v1234 = vmul.f32 %v1218, %v1218
        %v1235 = vrot.slane %v1233, 4
        %v1236 = vadd.f32 %v1233, %v1235
        %v1237 = vrot.slane %v1236, 2
        %v1238 = vadd.f32 %v1236, %v1237
        %v1239 = vrot.slane %v1238, 1
        %v1240 = vadd.f32 %v1238, %v1239
        %v1241 = vrot.slane %v1234, 4
        %v1242 = vadd.f32 %v1234, %v1241
        %v1243 = vrot.slane %v1242, 2
        %v1244 = vadd.f32 %v1242, %v1243
        %v1245 = vrot.slane %v1244, 1
        %v1246 = vadd.f32 %v1244, %v1245
        %vm1247 = vcmask 1040384
        %v1248 = vsel %vm1247, %v1226, %v1240
        %v1249 = vsel %vm1247, %v1232, %v1246
        %v1252 = vcombine.low %v1248, %v1249
        %v1254 = vunpack.c.l.s4 1983009808
        %v1255 = vunpack.c.0.s8 %v1254
        %v1256 = vlaneseq
        %v1257 = vshrl.u32 %v1256, 7
        %v1258 = vsub.s32 %v1255, %v1257
        %v1259 = vrot.slane %v1252, %v1258
        %1261 = vst [vmem:[%s236] sm:$0xf] %v1259
      $region36: #{patchgan_forward.10} parent=27 // pred_fallthru
        _
      %p1262 = scmp.lt.s32.totalorder %s19, 0
      %s1263 = scalar_select %p1262, %s19, 0
      %s1264 = smul.addr %s1263, 2
      %s1265 = smul.addr %s1264, 8
      %s1266 = scalar_lea.vmem %s2, %s1265
      %p1267 = scmp.lt.s32.totalorder %s19, 0
      %s1268 = scalar_select %p1267, %s19, 0
      %s1269 = smul.addr %s1268, 2
      %s1270 = smul.addr %s1269, 2
      %s1271 = scalar_lea.vmem %s3, %s1270
      // Predicated region
      $region37: #{patchgan_forward.10} parent=27 // pred_check
        %p1272 = pneg %p99
      $region38: #{patchgan_forward.10} parent=27 // pred_check_branch
        %1274 = sbr.rel (%p1272) target = $region40
      $region39: #{patchgan_forward.10} parent=27 // pred_region
        _
      $region40: #{patchgan_forward.10} parent=27 // pred_fallthru
        _
      // Predicated region
      $region41: #{patchgan_forward.10} parent=27 // pred_check
        %p1275 = pneg %p125
      $region42: #{patchgan_forward.10} parent=27 // pred_check_branch
        %1277 = sbr.rel (%p1275) target = $region44
      $region43: #{patchgan_forward.10} parent=27 // pred_region
        _
      $region44: #{patchgan_forward.10} parent=27 // pred_fallthru
        _
      // Predicated region
      $region45: #{patchgan_forward.10} parent=27 // pred_check
        %p1278 = pneg %p99
      $region46: #{patchgan_forward.10} parent=27 // pred_check_branch
        %1280 = sbr.rel (%p1278) target = $region48
      $region47: #{patchgan_forward.10} parent=27 // pred_region
        %p1281 = scmp.lt.s32.totalorder %s19, 0
        %s1282 = scalar_select %p1281, %s19, 0
        %s1283 = smul.addr %s1282, 2
        %s1284 = smul.addr %s1283, 8
        %s1285 = scalar_lea.vmem %s2, %s1284
      $region48: #{patchgan_forward.10} parent=27 // pred_fallthru
        _
      // Predicated region
      $region49: #{patchgan_forward.10} parent=27 // pred_check
        %p1286 = pneg %p125
      $region50: #{patchgan_forward.10} parent=27 // pred_check_branch
        %1288 = sbr.rel (%p1286) target = $region52
      $region51: #{patchgan_forward.10} parent=27 // pred_region
        %p1289 = scmp.lt.s32.totalorder %s19, 0
        %s1290 = scalar_select %p1289, %s19, 0
        %s1291 = smul.addr %s1290, 2
        %s1292 = smul.addr %s1291, 2
        %s1293 = scalar_lea.vmem %s3, %s1292
      $region52: #{patchgan_forward.10} parent=27 // pred_fallthru
        _
    $region28: #{patchgan_forward.10} parent=5 // pred_fallthru
      _
    %p1294 = scmp.le.s32.totalorder 2, %s10
    // Predicated region
    $region53: #{patchgan_forward.10} parent=5 // pred_check
      %p1295 = pneg %p1294
    $region54: #{patchgan_forward.10} parent=5 // pred_check_branch
      %1297 = sbr.rel (%p1295) target = $region56
    $region55: #{patchgan_forward.10} parent=5 // pred_region
      %s1298 = ssub.s32 %s10, 2
    $region56: #{patchgan_forward.10} parent=5 // pred_fallthru
      _
  $region6: #{patchgan_forward.10} parent=0 // loop_footer
    %s14 = sadd.s32 1, %s10
  $region7: #{patchgan_forward.10} parent=0 // loop_footer_branch
    %9 = sbr.rel target = $region3
  $region8: #{patchgan_forward.10} parent=0 // loop_exit
    _

// kernel: patchgan_forward.12
$region0: #{patchgan_forward.12}
  #allocation0 [shape = 'u32[]', space=smem, size = 0x4, offset = 0x4, fixed_abs, tag = 'smem constant byte address 0x4 - core index']
  #allocation1 [shape = 'u32[144,128]{1,0:T(1,128)}', space=vmem, size = 0x12000, scoped, tag = 'internal scratch']
  #allocation2 [shape = 'f32[2,512]{1,0:T(2,128)}', space=vmem, size = 0x1000, scoped, tag = 'scratch operand']
  %s0 = inlined_call_operand.vmem [shape: bf16[2,4096], index: 0, kind: input, shape index: {}]
  %s1 = inlined_call_operand.vmem [shape: bf16[4096,512], index: 1, kind: input, shape index: {}]
  %s2 = inlined_call_operand.vmem [shape: f32[2,512], index: 2, kind: output, shape index: {0}]
  %s3 = inlined_call_operand.vmem [shape: f32[1,2,512], index: 3, kind: output, shape index: {1}]
  %4 = xla_tuple %s2, %s3
  %s5 = sld [smem:[#allocation0]]
  $region57: #{patchgan_forward.12} parent=0
    _
  %s7 = ssub.s32 1, %s5
  %s8 = scalar_select 0, %s7, %s5
  loop: start=0, step=1, limit=6
  $region2: #{patchgan_forward.12} parent=0 // loop_pre_header
    _
  $region3: #{patchgan_forward.12} parent=0 // loop_header
    %s10 = sphi 0, %s14
    %p11 = scmp.ge.s32.totalorder %s10, 6
    %s17 = sphi 0, %s29
    %s18 = sphi 0, %s25
    %s19 = sphi 0, %s17
    %s20 = sphi 0, %s18
    %s21 = sphi 0, %s19
    %s22 = sphi 0, %s20
    %s34 = sphi 0, %s36
    %s37 = sphi 0, %s34
    %s38 = sphi 0, %s37
    %s54 = sphi 0, %s38
    %s60 = sphi 0, %s62
    %s63 = sphi 0, %s60
    %s64 = sphi 0, %s63
    %s80 = sphi 0, %s64
    %s86 = sphi 0, %s88
    %s89 = sphi 0, %s86
    %s90 = sphi 0, %s89
    %s106 = sphi 0, %s90
    %s112 = sphi 0, %s114
    %s115 = sphi 0, %s112
    %s116 = sphi 0, %s115
    %s132 = sphi 0, %s116
  $region4: #{patchgan_forward.12} parent=0 // loop_header_branch
    %13 = sbr.rel (%p11) target = $region8
  $region5: #{patchgan_forward.12} parent=0 // loop_body
    %s15 = ssub.s32 %s10, 1
    %s16 = ssub.s32 %s10, 2
    %s23 = sadd.s32 1, %s18
    %p24 = scmp.ge.s32.totalorder %s23, 4
    %s25 = scalar_select %p24, 0, %s23
    %s26 = sadd.s32 1, %s17
    %s27 = scalar_select %p24, %s26, %s17
    %p28 = scmp.ge.s32.totalorder %s27, 1
    %s29 = scalar_select %p28, 0, %s27
    %s30 = ssub.s32 %s17, %s29
    %s31 = ssub.s32 %s18, %s25
    %s32 = sor.u32 %s30, %s31
    %p33 = scmp.eq.s32.totalorder %s32, 0
    %s35 = sadd.s32 %s34, 1
    %s36 = scalar_select %p33, %s34, %s35
    %p39 = pneg %p33
    %p40 = scmp.eq.s32.totalorder %s10, 3
    %p41 = por %p39, %p40
    %p42 = scmp.ne.s32.totalorder %s34, %s37
    %p43 = scmp.eq.s32.totalorder %s10, 0
    %p44 = por %p42, %p43
    %p45 = scmp.ne.s32.totalorder %s34, %s37
    %p46 = scmp.eq.s32.totalorder %s15, 3
    %p47 = por %p45, %p46
    %p48 = scmp.ne.s32.totalorder %s37, %s38
    %p49 = scmp.eq.s32.totalorder %s15, 0
    %p50 = por %p48, %p49
    %p51 = scmp.ne.s32.totalorder %s37, %s38
    %p52 = scmp.eq.s32.totalorder %s16, 3
    %p53 = por %p51, %p52
    %p55 = scmp.ne.s32.totalorder %s38, %s54
    %p56 = scmp.eq.s32.totalorder %s16, 0
    %p57 = por %p55, %p56
    %s58 = ssub.s32 %s18, %s25
    %p59 = scmp.eq.s32.totalorder %s58, 0
    %s61 = sadd.s32 %s60, 1
    %s62 = scalar_select %p59, %s60, %s61
    %p65 = pneg %p59
    %p66 = scmp.eq.s32.totalorder %s10, 3
    %p67 = por %p65, %p66
    %p68 = scmp.ne.s32.totalorder %s60, %s63
    %p69 = scmp.eq.s32.totalorder %s10, 0
    %p70 = por %p68, %p69
    %p71 = scmp.ne.s32.totalorder %s60, %s63
    %p72 = scmp.eq.s32.totalorder %s15, 3
    %p73 = por %p71, %p72
    %p74 = scmp.ne.s32.totalorder %s63, %s64
    %p75 = scmp.eq.s32.totalorder %s15, 0
    %p76 = por %p74, %p75
    %p77 = scmp.ne.s32.totalorder %s63, %s64
    %p78 = scmp.eq.s32.totalorder %s16, 3
    %p79 = por %p77, %p78
    %p81 = scmp.ne.s32.totalorder %s64, %s80
    %p82 = scmp.eq.s32.totalorder %s16, 0
    %p83 = por %p81, %p82
    %s84 = ssub.s32 %s17, %s29
    %p85 = scmp.eq.s32.totalorder %s84, 0
    %s87 = sadd.s32 %s86, 1
    %s88 = scalar_select %p85, %s86, %s87
    %p91 = pneg %p85
    %p92 = scmp.eq.s32.totalorder %s10, 3
    %p93 = por %p91, %p92
    %p94 = scmp.ne.s32.totalorder %s86, %s89
    %p95 = scmp.eq.s32.totalorder %s10, 0
    %p96 = por %p94, %p95
    %p97 = scmp.ne.s32.totalorder %s86, %s89
    %p98 = scmp.eq.s32.totalorder %s15, 3
    %p99 = por %p97, %p98
    %p100 = scmp.ne.s32.totalorder %s89, %s90
    %p101 = scmp.eq.s32.totalorder %s15, 0
    %p102 = por %p100, %p101
    %p103 = scmp.ne.s32.totalorder %s89, %s90
    %p104 = scmp.eq.s32.totalorder %s16, 3
    %p105 = por %p103, %p104
    %p107 = scmp.ne.s32.totalorder %s90, %s106
    %p108 = scmp.eq.s32.totalorder %s16, 0
    %p109 = por %p107, %p108
    %s110 = ssub.s32 %s17, %s29
    %p111 = scmp.eq.s32.totalorder %s110, 0
    %s113 = sadd.s32 %s112, 1
    %s114 = scalar_select %p111, %s112, %s113
    %p117 = pneg %p111
    %p118 = scmp.eq.s32.totalorder %s10, 3
    %p119 = por %p117, %p118
    %p120 = scmp.ne.s32.totalorder %s112, %s115
    %p121 = scmp.eq.s32.totalorder %s10, 0
    %p122 = por %p120, %p121
    %p123 = scmp.ne.s32.totalorder %s112, %s115
    %p124 = scmp.eq.s32.totalorder %s15, 3
    %p125 = por %p123, %p124
    %p126 = scmp.ne.s32.totalorder %s115, %s116
    %p127 = scmp.eq.s32.totalorder %s15, 0
    %p128 = por %p126, %p127
    %p129 = scmp.ne.s32.totalorder %s115, %s116
    %p130 = scmp.eq.s32.totalorder %s16, 3
    %p131 = por %p129, %p130
    %p133 = scmp.ne.s32.totalorder %s116, %s132
    %p134 = scmp.eq.s32.totalorder %s16, 0
    %p135 = por %p133, %p134
    %p136 = scmp.le.s32.totalorder 1, %s10
    %p137 = scmp.lt.s32.totalorder %s10, 5
    %p138 = pnand %p136, %p137
    %p139 = pneg %p138
    // Predicated region
    $region9: #{patchgan_forward.12} parent=5 // pred_check
      _
    $region10: #{patchgan_forward.12} parent=5 // pred_check_branch
      %141 = sbr.rel (%p138) target = $region12
    $region11: #{patchgan_forward.12} parent=5 // pred_region
      %s142 = ssub.s32 %s10, 1
    $region12: #{patchgan_forward.12} parent=5 // pred_fallthru
      _
    %p143 = scmp.lt.s32.totalorder %s10, 4
    // Predicated region
    $region13: #{patchgan_forward.12} parent=5 // pred_check
      %p144 = pneg %p143
    $region14: #{patchgan_forward.12} parent=5 // pred_check_branch
      %146 = sbr.rel (%p144) target = $region16
    $region15: #{patchgan_forward.12} parent=5 // pred_region
      // Predicated region
      $region17: #{patchgan_forward.12} parent=15 // pred_check
        %p147 = pneg %p44
      $region18: #{patchgan_forward.12} parent=15 // pred_check_branch
        %149 = sbr.rel (%p147) target = $region20
      $region19: #{patchgan_forward.12} parent=15 // pred_region
        %s150 = smul.u32 8, %s18
        %p151 = scmp.lt.s32.totalorder %s17, 0
        %s152 = scalar_select %p151, %s17, 0
        %p153 = scmp.lt.s32.totalorder %s150, 31
        %s154 = scalar_select %p153, %s150, 31
        %s155 = smul.addr %s152, 32
        %s156 = sadd.s32 %s154, %s155
        %s157 = scalar_lea.vmem %s0, %s156
        %s158 = smul.u32 8, %s18
      $region20: #{patchgan_forward.12} parent=15 // pred_fallthru
        _
      // Predicated region
      $region21: #{patchgan_forward.12} parent=15 // pred_check
        %p159 = pneg %p70
      $region22: #{patchgan_forward.12} parent=15 // pred_check_branch
        %161 = sbr.rel (%p159) target = $region24
      $region23: #{patchgan_forward.12} parent=15 // pred_region
        %s162 = smul.u32 128, %s18
        %p163 = scmp.lt.s32.totalorder %s162, 511
        %s164 = scalar_select %p163, %s162, 511
        %s165 = smul.addr %s164, 4
        %s166 = smul.addr %s165, 4
        %s167 = scalar_lea.vmem %s1, %s166
        %s168 = smul.u32 128, %s18
      $region24: #{patchgan_forward.12} parent=15 // pred_fallthru
        _
    $region16: #{patchgan_forward.12} parent=5 // pred_fallthru
      _
    %p169 = scmp.le.s32.totalorder 1, %s10
    %p170 = scmp.lt.s32.totalorder %s10, 5
    %p171 = pnand %p169, %p170
    %p172 = pneg %p171
    // Predicated region
    $region25: #{patchgan_forward.12} parent=5 // pred_check
      _
    $region26: #{patchgan_forward.12} parent=5 // pred_check_branch
      %174 = sbr.rel (%p171) target = $region28
    $region27: #{patchgan_forward.12} parent=5 // pred_region
      %s175 = ssub.s32 %s10, 1
      %s176 = smul.u32 8, %s20
      %p177 = scmp.lt.s32.totalorder %s19, 0
      %s178 = scalar_select %p177, %s19, 0
      %p179 = scmp.lt.s32.totalorder %s176, 31
      %s180 = scalar_select %p179, %s176, 31
      %s181 = smul.addr %s178, 32
      %s182 = sadd.s32 %s180, %s181
      %s183 = scalar_lea.vmem %s0, %s182
      %p184 = pneg %p50
      %p185 = pneg %p47
      %s186 = smul.u32 128, %s20
      %p187 = scmp.lt.s32.totalorder %s186, 511
      %s188 = scalar_select %p187, %s186, 511
      %s189 = smul.addr %s188, 4
      %s190 = smul.addr %s189, 4
      %s191 = scalar_lea.vmem %s1, %s190
      %p192 = pneg %p76
      %p193 = pneg %p73
      %p194 = pneg %p102
      %p195 = pneg %p99
      %p196 = scmp.lt.s32.totalorder %s19, 0
      %s197 = scalar_select %p196, %s19, 0
      %s198 = smul.addr %s197, 4
      %s199 = smul.addr %s198, 2
      %s200 = scalar_lea.vmem %s2, %s199
      %p201 = pneg %p128
      %p202 = pneg %p125
      %p203 = scmp.lt.s32.totalorder %s19, 0
      %s204 = scalar_select %p203, %s19, 0
      %s205 = smul.addr %s204, 4
      %s206 = smul.addr %s205, 2
      %s207 = scalar_lea.vmem %s3, %s206
      %s208 = smul.u32 8, %s20
      %p209 = scmp.lt.s32.totalorder %s19, 0
      %s210 = scalar_select %p209, %s19, 0
      %p211 = scmp.lt.s32.totalorder %s208, 31
      %s212 = scalar_select %p211, %s208, 31
      %s213 = smul.addr %s210, 32
      %s214 = sadd.s32 %s212, %s213
      %s215 = scalar_lea.vmem %s0, %s214
      %s216 = smul.u32 8, %s20
      %s217 = smul.u32 128, %s20
      %p218 = scmp.lt.s32.totalorder %s217, 511
      %s219 = scalar_select %p218, %s217, 511
      %s220 = smul.addr %s219, 4
      %s221 = smul.addr %s220, 4
      %s222 = scalar_lea.vmem %s1, %s221
      %s223 = smul.u32 128, %s20
      %p224 = scmp.lt.s32.totalorder %s19, 0
      %s225 = scalar_select %p224, %s19, 0
      %s226 = smul.addr %s225, 4
      %s227 = smul.addr %s226, 2
      %s228 = scalar_lea.vmem %s2, %s227
      %p229 = scmp.lt.s32.totalorder %s19, 0
      %s230 = scalar_select %p229, %s19, 0
      %s231 = smul.addr %s230, 4
      %s232 = smul.addr %s231, 2
      %s233 = scalar_lea.vmem %s3, %s232
      %p234 = scmp.eq.s32.totalorder %s20, 0
      // Predicated region
      $region29: #{patchgan_forward.12} parent=27 // pred_check
        %p235 = pneg %p234
      $region30: #{patchgan_forward.12} parent=27 // pred_check_branch
        %237 = sbr.rel (%p235) target = $region32
      $region31: #{patchgan_forward.12} parent=27 // pred_region
        %238 = vst [vmem:[#allocation2] sm:$0xff] 0.0
      $region32: #{patchgan_forward.12} parent=27 // pred_fallthru
        _
      %v239 = vld [vmem:[#allocation2] sm:$0xff]
      %v240 = vld [vmem:[%s215] sm:$0xff]
      %v241 = vld [vmem:[%s222] sm:$0xff]
      %v242 = vld [vmem:[%s222 + $0x8] sm:$0xff]
      %v243 = vld [vmem:[%s222 + $0x10] sm:$0xff]
      %v244 = vld [vmem:[%s222 + $0x18] sm:$0xff]
      %v245 = vld [vmem:[%s222 + $0x20] sm:$0xff]
      %v246 = vld [vmem:[%s222 + $0x28] sm:$0xff]
      %v247 = vld [vmem:[%s222 + $0x30] sm:$0xff]
      %v248 = vld [vmem:[%s222 + $0x38] sm:$0xff]
      %v249 = vld [vmem:[%s222 + $0x40] sm:$0xff]
      %v250 = vld [vmem:[%s222 + $0x48] sm:$0xff]
      %v251 = vld [vmem:[%s222 + $0x50] sm:$0xff]
      %v252 = vld [vmem:[%s222 + $0x58] sm:$0xff]
      %v253 = vld [vmem:[%s222 + $0x60] sm:$0xff]
      %v254 = vld [vmem:[%s222 + $0x68] sm:$0xff]
      %v255 = vld [vmem:[%s222 + $0x70] sm:$0xff]
      %v256 = vld [vmem:[%s222 + $0x78] sm:$0xff]
      %v257 = vld [vmem:[%s222 + $0x80] sm:$0xff]
      %v258 = vld [vmem:[%s222 + $0x88] sm:$0xff]
      %v259 = vld [vmem:[%s222 + $0x90] sm:$0xff]
      %v260 = vld [vmem:[%s222 + $0x98] sm:$0xff]
      %v261 = vld [vmem:[%s222 + $0xa0] sm:$0xff]
      %v262 = vld [vmem:[%s222 + $0xa8] sm:$0xff]
      %v263 = vld [vmem:[%s222 + $0xb0] sm:$0xff]
      %v264 = vld [vmem:[%s222 + $0xb8] sm:$0xff]
      %v265 = vld [vmem:[%s222 + $0xc0] sm:$0xff]
      %v266 = vld [vmem:[%s222 + $0xc8] sm:$0xff]
      %v267 = vld [vmem:[%s222 + $0xd0] sm:$0xff]
      %v268 = vld [vmem:[%s222 + $0xd8] sm:$0xff]
      %v269 = vld [vmem:[%s222 + $0xe0] sm:$0xff]
      %v270 = vld [vmem:[%s222 + $0xe8] sm:$0xff]
      %v271 = vld [vmem:[%s222 + $0xf0] sm:$0xff]
      %v272 = vld [vmem:[%s222 + $0xf8] sm:$0xff]
      %v273 = vld [vmem:[%s222 + $0x100] sm:$0xff]
      %v274 = vld [vmem:[%s222 + $0x108] sm:$0xff]
      %v275 = vld [vmem:[%s222 + $0x110] sm:$0xff]
      %v276 = vld [vmem:[%s222 + $0x118] sm:$0xff]
      %v277 = vld [vmem:[%s222 + $0x120] sm:$0xff]
      %v278 = vld [vmem:[%s222 + $0x128] sm:$0xff]
      %v279 = vld [vmem:[%s222 + $0x130] sm:$0xff]
      %v280 = vld [vmem:[%s222 + $0x138] sm:$0xff]
      %v281 = vld [vmem:[%s222 + $0x140] sm:$0xff]
      %v282 = vld [vmem:[%s222 + $0x148] sm:$0xff]
      %v283 = vld [vmem:[%s222 + $0x150] sm:$0xff]
      %v284 = vld [vmem:[%s222 + $0x158] sm:$0xff]
      %v285 = vld [vmem:[%s222 + $0x160] sm:$0xff]
      %v286 = vld [vmem:[%s222 + $0x168] sm:$0xff]
      %v287 = vld [vmem:[%s222 + $0x170] sm:$0xff]
      %v288 = vld [vmem:[%s222 + $0x178] sm:$0xff]
      %v289 = vld [vmem:[%s222 + $0x180] sm:$0xff]
      %v290 = vld [vmem:[%s222 + $0x188] sm:$0xff]
      %v291 = vld [vmem:[%s222 + $0x190] sm:$0xff]
      %v292 = vld [vmem:[%s222 + $0x198] sm:$0xff]
      %v293 = vld [vmem:[%s222 + $0x1a0] sm:$0xff]
      %v294 = vld [vmem:[%s222 + $0x1a8] sm:$0xff]
      %v295 = vld [vmem:[%s222 + $0x1b0] sm:$0xff]
      %v296 = vld [vmem:[%s222 + $0x1b8] sm:$0xff]
      %v297 = vld [vmem:[%s222 + $0x1c0] sm:$0xff]
      %v298 = vld [vmem:[%s222 + $0x1c8] sm:$0xff]
      %v299 = vld [vmem:[%s222 + $0x1d0] sm:$0xff]
      %v300 = vld [vmem:[%s222 + $0x1d8] sm:$0xff]
      %v301 = vld [vmem:[%s222 + $0x1e0] sm:$0xff]
      %v302 = vld [vmem:[%s222 + $0x1e8] sm:$0xff]
      %v303 = vld [vmem:[%s222 + $0x1f0] sm:$0xff]
      %v304 = vld [vmem:[%s222 + $0x1f8] sm:$0xff]
      %v305 = vld [vmem:[%s222 + $0x200] sm:$0xff]
      %v306 = vld [vmem:[%s222 + $0x208] sm:$0xff]
      %v307 = vld [vmem:[%s222 + $0x210] sm:$0xff]
      %v308 = vld [vmem:[%s222 + $0x218] sm:$0xff]
      %v309 = vld [vmem:[%s222 + $0x220] sm:$0xff]
      %v310 = vld [vmem:[%s222 + $0x228] sm:$0xff]
      %v311 = vld [vmem:[%s222 + $0x230] sm:$0xff]
      %v312 = vld [vmem:[%s222 + $0x238] sm:$0xff]
      %v313 = vld [vmem:[%s222 + $0x240] sm:$0xff]
      %v314 = vld [vmem:[%s222 + $0x248] sm:$0xff]
      %v315 = vld [vmem:[%s222 + $0x250] sm:$0xff]
      %v316 = vld [vmem:[%s222 + $0x258] sm:$0xff]
      %v317 = vld [vmem:[%s222 + $0x260] sm:$0xff]
      %v318 = vld [vmem:[%s222 + $0x268] sm:$0xff]
      %v319 = vld [vmem:[%s222 + $0x270] sm:$0xff]
      %v320 = vld [vmem:[%s222 + $0x278] sm:$0xff]
      %v321 = vld [vmem:[%s222 + $0x280] sm:$0xff]
      %v322 = vld [vmem:[%s222 + $0x288] sm:$0xff]
      %v323 = vld [vmem:[%s222 + $0x290] sm:$0xff]
      %v324 = vld [vmem:[%s222 + $0x298] sm:$0xff]
      %v325 = vld [vmem:[%s222 + $0x2a0] sm:$0xff]
      %v326 = vld [vmem:[%s222 + $0x2a8] sm:$0xff]
      %v327 = vld [vmem:[%s222 + $0x2b0] sm:$0xff]
      %v328 = vld [vmem:[%s222 + $0x2b8] sm:$0xff]
      %v329 = vld [vmem:[%s222 + $0x2c0] sm:$0xff]
      %v330 = vld [vmem:[%s222 + $0x2c8] sm:$0xff]
      %v331 = vld [vmem:[%s222 + $0x2d0] sm:$0xff]
      %v332 = vld [vmem:[%s222 + $0x2d8] sm:$0xff]
      %v333 = vld [vmem:[%s222 + $0x2e0] sm:$0xff]
      %v334 = vld [vmem:[%s222 + $0x2e8] sm:$0xff]
      %v335 = vld [vmem:[%s222 + $0x2f0] sm:$0xff]
      %v336 = vld [vmem:[%s222 + $0x2f8] sm:$0xff]
      %v337 = vld [vmem:[%s222 + $0x300] sm:$0xff]
      %v338 = vld [vmem:[%s222 + $0x308] sm:$0xff]
      %v339 = vld [vmem:[%s222 + $0x310] sm:$0xff]
      %v340 = vld [vmem:[%s222 + $0x318] sm:$0xff]
      %v341 = vld [vmem:[%s222 + $0x320] sm:$0xff]
      %v342 = vld [vmem:[%s222 + $0x328] sm:$0xff]
      %v343 = vld [vmem:[%s222 + $0x330] sm:$0xff]
      %v344 = vld [vmem:[%s222 + $0x338] sm:$0xff]
      %v345 = vld [vmem:[%s222 + $0x340] sm:$0xff]
      %v346 = vld [vmem:[%s222 + $0x348] sm:$0xff]
      %v347 = vld [vmem:[%s222 + $0x350] sm:$0xff]
      %v348 = vld [vmem:[%s222 + $0x358] sm:$0xff]
      %v349 = vld [vmem:[%s222 + $0x360] sm:$0xff]
      %v350 = vld [vmem:[%s222 + $0x368] sm:$0xff]
      %v351 = vld [vmem:[%s222 + $0x370] sm:$0xff]
      %v352 = vld [vmem:[%s222 + $0x378] sm:$0xff]
      %v353 = vld [vmem:[%s222 + $0x380] sm:$0xff]
      %v354 = vld [vmem:[%s222 + $0x388] sm:$0xff]
      %v355 = vld [vmem:[%s222 + $0x390] sm:$0xff]
      %v356 = vld [vmem:[%s222 + $0x398] sm:$0xff]
      %v357 = vld [vmem:[%s222 + $0x3a0] sm:$0xff]
      %v358 = vld [vmem:[%s222 + $0x3a8] sm:$0xff]
      %v359 = vld [vmem:[%s222 + $0x3b0] sm:$0xff]
      %v360 = vld [vmem:[%s222 + $0x3b8] sm:$0xff]
      %v361 = vld [vmem:[%s222 + $0x3c0] sm:$0xff]
      %v362 = vld [vmem:[%s222 + $0x3c8] sm:$0xff]
      %v363 = vld [vmem:[%s222 + $0x3d0] sm:$0xff]
      %v364 = vld [vmem:[%s222 + $0x3d8] sm:$0xff]
      %v365 = vld [vmem:[%s222 + $0x3e0] sm:$0xff]
      %v366 = vld [vmem:[%s222 + $0x3e8] sm:$0xff]
      %v367 = vld [vmem:[%s222 + $0x3f0] sm:$0xff]
      %v368 = vld [vmem:[%s222 + $0x3f8] sm:$0xff]
      %v369 = vld [vmem:[%s222 + $0x400] sm:$0xff]
      %v370 = vld [vmem:[%s222 + $0x408] sm:$0xff]
      %v371 = vld [vmem:[%s222 + $0x410] sm:$0xff]
      %v372 = vld [vmem:[%s222 + $0x418] sm:$0xff]
      %v373 = vld [vmem:[%s222 + $0x420] sm:$0xff]
      %v374 = vld [vmem:[%s222 + $0x428] sm:$0xff]
      %v375 = vld [vmem:[%s222 + $0x430] sm:$0xff]
      %v376 = vld [vmem:[%s222 + $0x438] sm:$0xff]
      %v377 = vld [vmem:[%s222 + $0x440] sm:$0xff]
      %v378 = vld [vmem:[%s222 + $0x448] sm:$0xff]
      %v379 = vld [vmem:[%s222 + $0x450] sm:$0xff]
      %v380 = vld [vmem:[%s222 + $0x458] sm:$0xff]
      %v381 = vld [vmem:[%s222 + $0x460] sm:$0xff]
      %v382 = vld [vmem:[%s222 + $0x468] sm:$0xff]
      %v383 = vld [vmem:[%s222 + $0x470] sm:$0xff]
      %v384 = vld [vmem:[%s222 + $0x478] sm:$0xff]
      %v385 = vld [vmem:[%s222 + $0x480] sm:$0xff]
      %v386 = vld [vmem:[%s222 + $0x488] sm:$0xff]
      %v387 = vld [vmem:[%s222 + $0x490] sm:$0xff]
      %v388 = vld [vmem:[%s222 + $0x498] sm:$0xff]
      %v389 = vld [vmem:[%s222 + $0x4a0] sm:$0xff]
      %v390 = vld [vmem:[%s222 + $0x4a8] sm:$0xff]
      %v391 = vld [vmem:[%s222 + $0x4b0] sm:$0xff]
      %v392 = vld [vmem:[%s222 + $0x4b8] sm:$0xff]
      %v393 = vld [vmem:[%s222 + $0x4c0] sm:$0xff]
      %v394 = vld [vmem:[%s222 + $0x4c8] sm:$0xff]
      %v395 = vld [vmem:[%s222 + $0x4d0] sm:$0xff]
      %v396 = vld [vmem:[%s222 + $0x4d8] sm:$0xff]
      %v397 = vld [vmem:[%s222 + $0x4e0] sm:$0xff]
      %v398 = vld [vmem:[%s222 + $0x4e8] sm:$0xff]
      %v399 = vld [vmem:[%s222 + $0x4f0] sm:$0xff]
      %v400 = vld [vmem:[%s222 + $0x4f8] sm:$0xff]
      %v401 = vld [vmem:[%s222 + $0x500] sm:$0xff]
      %v402 = vld [vmem:[%s222 + $0x508] sm:$0xff]
      %v403 = vld [vmem:[%s222 + $0x510] sm:$0xff]
      %v404 = vld [vmem:[%s222 + $0x518] sm:$0xff]
      %v405 = vld [vmem:[%s222 + $0x520] sm:$0xff]
      %v406 = vld [vmem:[%s222 + $0x528] sm:$0xff]
      %v407 = vld [vmem:[%s222 + $0x530] sm:$0xff]
      %v408 = vld [vmem:[%s222 + $0x538] sm:$0xff]
      %v409 = vld [vmem:[%s222 + $0x540] sm:$0xff]
      %v410 = vld [vmem:[%s222 + $0x548] sm:$0xff]
      %v411 = vld [vmem:[%s222 + $0x550] sm:$0xff]
      %v412 = vld [vmem:[%s222 + $0x558] sm:$0xff]
      %v413 = vld [vmem:[%s222 + $0x560] sm:$0xff]
      %v414 = vld [vmem:[%s222 + $0x568] sm:$0xff]
      %v415 = vld [vmem:[%s222 + $0x570] sm:$0xff]
      %v416 = vld [vmem:[%s222 + $0x578] sm:$0xff]
      %v417 = vld [vmem:[%s222 + $0x580] sm:$0xff]
      %v418 = vld [vmem:[%s222 + $0x588] sm:$0xff]
      %v419 = vld [vmem:[%s222 + $0x590] sm:$0xff]
      %v420 = vld [vmem:[%s222 + $0x598] sm:$0xff]
      %v421 = vld [vmem:[%s222 + $0x5a0] sm:$0xff]
      %v422 = vld [vmem:[%s222 + $0x5a8] sm:$0xff]
      %v423 = vld [vmem:[%s222 + $0x5b0] sm:$0xff]
      %v424 = vld [vmem:[%s222 + $0x5b8] sm:$0xff]
      %v425 = vld [vmem:[%s222 + $0x5c0] sm:$0xff]
      %v426 = vld [vmem:[%s222 + $0x5c8] sm:$0xff]
      %v427 = vld [vmem:[%s222 + $0x5d0] sm:$0xff]
      %v428 = vld [vmem:[%s222 + $0x5d8] sm:$0xff]
      %v429 = vld [vmem:[%s222 + $0x5e0] sm:$0xff]
      %v430 = vld [vmem:[%s222 + $0x5e8] sm:$0xff]
      %v431 = vld [vmem:[%s222 + $0x5f0] sm:$0xff]
      %v432 = vld [vmem:[%s222 + $0x5f8] sm:$0xff]
      %v433 = vld [vmem:[%s222 + $0x600] sm:$0xff]
      %v434 = vld [vmem:[%s222 + $0x608] sm:$0xff]
      %v435 = vld [vmem:[%s222 + $0x610] sm:$0xff]
      %v436 = vld [vmem:[%s222 + $0x618] sm:$0xff]
      %v437 = vld [vmem:[%s222 + $0x620] sm:$0xff]
      %v438 = vld [vmem:[%s222 + $0x628] sm:$0xff]
      %v439 = vld [vmem:[%s222 + $0x630] sm:$0xff]
      %v440 = vld [vmem:[%s222 + $0x638] sm:$0xff]
      %v441 = vld [vmem:[%s222 + $0x640] sm:$0xff]
      %v442 = vld [vmem:[%s222 + $0x648] sm:$0xff]
      %v443 = vld [vmem:[%s222 + $0x650] sm:$0xff]
      %v444 = vld [vmem:[%s222 + $0x658] sm:$0xff]
      %v445 = vld [vmem:[%s222 + $0x660] sm:$0xff]
      %v446 = vld [vmem:[%s222 + $0x668] sm:$0xff]
      %v447 = vld [vmem:[%s222 + $0x670] sm:$0xff]
      %v448 = vld [vmem:[%s222 + $0x678] sm:$0xff]
      %v449 = vld [vmem:[%s222 + $0x680] sm:$0xff]
      %v450 = vld [vmem:[%s222 + $0x688] sm:$0xff]
      %v451 = vld [vmem:[%s222 + $0x690] sm:$0xff]
      %v452 = vld [vmem:[%s222 + $0x698] sm:$0xff]
      %v453 = vld [vmem:[%s222 + $0x6a0] sm:$0xff]
      %v454 = vld [vmem:[%s222 + $0x6a8] sm:$0xff]
      %v455 = vld [vmem:[%s222 + $0x6b0] sm:$0xff]
      %v456 = vld [vmem:[%s222 + $0x6b8] sm:$0xff]
      %v457 = vld [vmem:[%s222 + $0x6c0] sm:$0xff]
      %v458 = vld [vmem:[%s222 + $0x6c8] sm:$0xff]
      %v459 = vld [vmem:[%s222 + $0x6d0] sm:$0xff]
      %v460 = vld [vmem:[%s222 + $0x6d8] sm:$0xff]
      %v461 = vld [vmem:[%s222 + $0x6e0] sm:$0xff]
      %v462 = vld [vmem:[%s222 + $0x6e8] sm:$0xff]
      %v463 = vld [vmem:[%s222 + $0x6f0] sm:$0xff]
      %v464 = vld [vmem:[%s222 + $0x6f8] sm:$0xff]
      %v465 = vld [vmem:[%s222 + $0x700] sm:$0xff]
      %v466 = vld [vmem:[%s222 + $0x708] sm:$0xff]
      %v467 = vld [vmem:[%s222 + $0x710] sm:$0xff]
      %v468 = vld [vmem:[%s222 + $0x718] sm:$0xff]
      %v469 = vld [vmem:[%s222 + $0x720] sm:$0xff]
      %v470 = vld [vmem:[%s222 + $0x728] sm:$0xff]
      %v471 = vld [vmem:[%s222 + $0x730] sm:$0xff]
      %v472 = vld [vmem:[%s222 + $0x738] sm:$0xff]
      %v473 = vld [vmem:[%s222 + $0x740] sm:$0xff]
      %v474 = vld [vmem:[%s222 + $0x748] sm:$0xff]
      %v475 = vld [vmem:[%s222 + $0x750] sm:$0xff]
      %v476 = vld [vmem:[%s222 + $0x758] sm:$0xff]
      %v477 = vld [vmem:[%s222 + $0x760] sm:$0xff]
      %v478 = vld [vmem:[%s222 + $0x768] sm:$0xff]
      %v479 = vld [vmem:[%s222 + $0x770] sm:$0xff]
      %v480 = vld [vmem:[%s222 + $0x778] sm:$0xff]
      %v481 = vld [vmem:[%s222 + $0x780] sm:$0xff]
      %v482 = vld [vmem:[%s222 + $0x788] sm:$0xff]
      %v483 = vld [vmem:[%s222 + $0x790] sm:$0xff]
      %v484 = vld [vmem:[%s222 + $0x798] sm:$0xff]
      %v485 = vld [vmem:[%s222 + $0x7a0] sm:$0xff]
      %v486 = vld [vmem:[%s222 + $0x7a8] sm:$0xff]
      %v487 = vld [vmem:[%s222 + $0x7b0] sm:$0xff]
      %v488 = vld [vmem:[%s222 + $0x7b8] sm:$0xff]
      %v489 = vld [vmem:[%s222 + $0x7c0] sm:$0xff]
      %v490 = vld [vmem:[%s222 + $0x7c8] sm:$0xff]
      %v491 = vld [vmem:[%s222 + $0x7d0] sm:$0xff]
      %v492 = vld [vmem:[%s222 + $0x7d8] sm:$0xff]
      %v493 = vld [vmem:[%s222 + $0x7e0] sm:$0xff]
      %v494 = vld [vmem:[%s222 + $0x7e8] sm:$0xff]
      %v495 = vld [vmem:[%s222 + $0x7f0] sm:$0xff]
      %v496 = vld [vmem:[%s222 + $0x7f8] sm:$0xff]
      %v498 = vcombine.high %v240, %v240
      %v500 = vunpack.c.l.s4 1966171168
      %v501 = vunpack.c.0.s8 %v500
      %v502 = vlaneseq
      %v503 = vshrl.u32 %v502, 7
      %v504 = vsub.s32 %v501, %v503
      %v505 = vrot.slane %v240, %v504
      %v507 = vunpack.c.l.s4 1966171168
      %v508 = vunpack.c.0.s8 %v507
      %v509 = vlaneseq
      %v510 = vshrl.u32 %v509, 7
      %v511 = vsub.s32 %v508, %v510
      %v512 = vrot.slane %v498, %v511
      %v513 = vcombine.high %v505, %v505
      %v514 = vcombine.high %v512, %v512
      %v516 = vunpack.c.l.s4 1966171168
      %v517 = vunpack.c.0.s8 %v516
      %v518 = vlaneseq
      %v519 = vshrl.u32 %v518, 7
      %v520 = vsub.s32 %v517, %v519
      %v521 = vrot.slane %v505, %v520
      %v523 = vunpack.c.l.s4 1966171168
      %v524 = vunpack.c.0.s8 %v523
      %v525 = vlaneseq
      %v526 = vshrl.u32 %v525, 7
      %v527 = vsub.s32 %v524, %v526
      %v528 = vrot.slane %v512, %v527
      %v530 = vunpack.c.l.s4 1966171168
      %v531 = vunpack.c.0.s8 %v530
      %v532 = vlaneseq
      %v533 = vshrl.u32 %v532, 7
      %v534 = vsub.s32 %v531, %v533
      %v535 = vrot.slane %v513, %v534
      %v537 = vunpack.c.l.s4 1966171168
      %v538 = vunpack.c.0.s8 %v537
      %v539 = vlaneseq
      %v540 = vshrl.u32 %v539, 7
      %v541 = vsub.s32 %v538, %v540
      %v542 = vrot.slane %v514, %v541
      %v543 = vcombine.high %v521, %v521
      %v544 = vcombine.high %v528, %v528
      %v545 = vcombine.high %v535, %v535
      %v546 = vcombine.high %v542, %v542
      %v811 = vunpack.c.l.b16 %v241
      %v812 = vunpack.c.h.b16 %v241
      %v813 = vunpack.c.l.b16 %v242
      %v814 = vunpack.c.h.b16 %v242
      %v815 = vunpack.c.l.b16 %v243
      %v816 = vunpack.c.h.b16 %v243
      %v817 = vunpack.c.l.b16 %v244
      %v818 = vunpack.c.h.b16 %v244
      %v819 = vunpack.c.l.b16 %v245
      %v820 = vunpack.c.h.b16 %v245
      %v821 = vunpack.c.l.b16 %v246
      %v822 = vunpack.c.h.b16 %v246
      %v823 = vunpack.c.l.b16 %v247
      %v824 = vunpack.c.h.b16 %v247
      %v825 = vunpack.c.l.b16 %v248
      %v826 = vunpack.c.h.b16 %v248
      %v827 = vunpack.c.l.b16 %v249
      %v828 = vunpack.c.h.b16 %v249
      %v829 = vunpack.c.l.b16 %v250
      %v830 = vunpack.c.h.b16 %v250
      %v831 = vunpack.c.l.b16 %v251
      %v832 = vunpack.c.h.b16 %v251
      %v833 = vunpack.c.l.b16 %v252
      %v834 = vunpack.c.h.b16 %v252
      %v835 = vunpack.c.l.b16 %v253
      %v836 = vunpack.c.h.b16 %v253
      %v837 = vunpack.c.l.b16 %v254
      %v838 = vunpack.c.h.b16 %v254
      %v839 = vunpack.c.l.b16 %v255
      %v840 = vunpack.c.h.b16 %v255
      %v841 = vunpack.c.l.b16 %v256
      %v842 = vunpack.c.h.b16 %v256
      %v843 = vunpack.c.l.b16 %v257
      %v844 = vunpack.c.h.b16 %v257
      %v845 = vunpack.c.l.b16 %v258
      %v846 = vunpack.c.h.b16 %v258
      %v847 = vunpack.c.l.b16 %v259
      %v848 = vunpack.c.h.b16 %v259
      %v849 = vunpack.c.l.b16 %v260
      %v850 = vunpack.c.h.b16 %v260
      %v851 = vunpack.c.l.b16 %v261
      %v852 = vunpack.c.h.b16 %v261
      %v853 = vunpack.c.l.b16 %v262
      %v854 = vunpack.c.h.b16 %v262
      %v855 = vunpack.c.l.b16 %v263
      %v856 = vunpack.c.h.b16 %v263
      %v857 = vunpack.c.l.b16 %v264
      %v858 = vunpack.c.h.b16 %v264
      %v859 = vunpack.c.l.b16 %v265
      %v860 = vunpack.c.h.b16 %v265
      %v861 = vunpack.c.l.b16 %v266
      %v862 = vunpack.c.h.b16 %v266
      %v863 = vunpack.c.l.b16 %v267
      %v864 = vunpack.c.h.b16 %v267
      %v865 = vunpack.c.l.b16 %v268
      %v866 = vunpack.c.h.b16 %v268
      %v867 = vunpack.c.l.b16 %v269
      %v868 = vunpack.c.h.b16 %v269
      %v869 = vunpack.c.l.b16 %v270
      %v870 = vunpack.c.h.b16 %v270
      %v871 = vunpack.c.l.b16 %v271
      %v872 = vunpack.c.h.b16 %v271
      %v873 = vunpack.c.l.b16 %v272
      %v874 = vunpack.c.h.b16 %v272
      %v875 = vunpack.c.l.b16 %v273
      %v876 = vunpack.c.h.b16 %v273
      %v877 = vunpack.c.l.b16 %v274
      %v878 = vunpack.c.h.b16 %v274
      %v879 = vunpack.c.l.b16 %v275
      %v880 = vunpack.c.h.b16 %v275
      %v881 = vunpack.c.l.b16 %v276
      %v882 = vunpack.c.h.b16 %v276
      %v883 = vunpack.c.l.b16 %v277
      %v884 = vunpack.c.h.b16 %v277
      %v885 = vunpack.c.l.b16 %v278
      %v886 = vunpack.c.h.b16 %v278
      %v887 = vunpack.c.l.b16 %v279
      %v888 = vunpack.c.h.b16 %v279
      %v889 = vunpack.c.l.b16 %v280
      %v890 = vunpack.c.h.b16 %v280
      %v891 = vunpack.c.l.b16 %v281
      %v892 = vunpack.c.h.b16 %v281
      %v893 = vunpack.c.l.b16 %v282
      %v894 = vunpack.c.h.b16 %v282
      %v895 = vunpack.c.l.b16 %v283
      %v896 = vunpack.c.h.b16 %v283
      %v897 = vunpack.c.l.b16 %v284
      %v898 = vunpack.c.h.b16 %v284
      %v899 = vunpack.c.l.b16 %v285
      %v900 = vunpack.c.h.b16 %v285
      %v901 = vunpack.c.l.b16 %v286
      %v902 = vunpack.c.h.b16 %v286
      %v903 = vunpack.c.l.b16 %v287
      %v904 = vunpack.c.h.b16 %v287
      %v905 = vunpack.c.l.b16 %v288
      %v906 = vunpack.c.h.b16 %v288
      %v907 = vunpack.c.l.b16 %v289
      %v908 = vunpack.c.h.b16 %v289
      %v909 = vunpack.c.l.b16 %v290
      %v910 = vunpack.c.h.b16 %v290
      %v911 = vunpack.c.l.b16 %v291
      %v912 = vunpack.c.h.b16 %v291
      %v913 = vunpack.c.l.b16 %v292
      %v914 = vunpack.c.h.b16 %v292
      %v915 = vunpack.c.l.b16 %v293
      %v916 = vunpack.c.h.b16 %v293
      %v917 = vunpack.c.l.b16 %v294
      %v918 = vunpack.c.h.b16 %v294
      %v919 = vunpack.c.l.b16 %v295
      %v920 = vunpack.c.h.b16 %v295
      %v921 = vunpack.c.l.b16 %v296
      %v922 = vunpack.c.h.b16 %v296
      %v923 = vunpack.c.l.b16 %v297
      %v924 = vunpack.c.h.b16 %v297
      %v925 = vunpack.c.l.b16 %v298
      %v926 = vunpack.c.h.b16 %v298
      %v927 = vunpack.c.l.b16 %v299
      %v928 = vunpack.c.h.b16 %v299
      %v929 = vunpack.c.l.b16 %v300
      %v930 = vunpack.c.h.b16 %v300
      %v931 = vunpack.c.l.b16 %v301
      %v932 = vunpack.c.h.b16 %v301
      %v933 = vunpack.c.l.b16 %v302
      %v934 = vunpack.c.h.b16 %v302
      %v935 = vunpack.c.l.b16 %v303
      %v936 = vunpack.c.h.b16 %v303
      %v937 = vunpack.c.l.b16 %v304
      %v938 = vunpack.c.h.b16 %v304
      %v939 = vunpack.c.l.b16 %v305
      %v940 = vunpack.c.h.b16 %v305
      %v941 = vunpack.c.l.b16 %v306
      %v942 = vunpack.c.h.b16 %v306
      %v943 = vunpack.c.l.b16 %v307
      %v944 = vunpack.c.h.b16 %v307
      %v945 = vunpack.c.l.b16 %v308
      %v946 = vunpack.c.h.b16 %v308
      %v947 = vunpack.c.l.b16 %v309
      %v948 = vunpack.c.h.b16 %v309
      %v949 = vunpack.c.l.b16 %v310
      %v950 = vunpack.c.h.b16 %v310
      %v951 = vunpack.c.l.b16 %v311
      %v952 = vunpack.c.h.b16 %v311
      %v953 = vunpack.c.l.b16 %v312
      %v954 = vunpack.c.h.b16 %v312
      %v955 = vunpack.c.l.b16 %v313
      %v956 = vunpack.c.h.b16 %v313
      %v957 = vunpack.c.l.b16 %v314
      %v958 = vunpack.c.h.b16 %v314
      %v959 = vunpack.c.l.b16 %v315
      %v960 = vunpack.c.h.b16 %v315
      %v961 = vunpack.c.l.b16 %v316
      %v962 = vunpack.c.h.b16 %v316
      %v963 = vunpack.c.l.b16 %v317
      %v964 = vunpack.c.h.b16 %v317
      %v965 = vunpack.c.l.b16 %v318
      %v966 = vunpack.c.h.b16 %v318
      %v967 = vunpack.c.l.b16 %v319
      %v968 = vunpack.c.h.b16 %v319
      %v969 = vunpack.c.l.b16 %v320
      %v970 = vunpack.c.h.b16 %v320
      %v971 = vunpack.c.l.b16 %v321
      %v972 = vunpack.c.h.b16 %v321
      %v973 = vunpack.c.l.b16 %v322
      %v974 = vunpack.c.h.b16 %v322
      %v975 = vunpack.c.l.b16 %v323
      %v976 = vunpack.c.h.b16 %v323
      %v977 = vunpack.c.l.b16 %v324
      %v978 = vunpack.c.h.b16 %v324
      %v979 = vunpack.c.l.b16 %v325
      %v980 = vunpack.c.h.b16 %v325
      %v981 = vunpack.c.l.b16 %v326
      %v982 = vunpack.c.h.b16 %v326
      %v983 = vunpack.c.l.b16 %v327
      %v984 = vunpack.c.h.b16 %v327
      %v985 = vunpack.c.l.b16 %v328
      %v986 = vunpack.c.h.b16 %v328
      %v987 = vunpack.c.l.b16 %v329
      %v988 = vunpack.c.h.b16 %v329
      %v989 = vunpack.c.l.b16 %v330
      %v990 = vunpack.c.h.b16 %v330
      %v991 = vunpack.c.l.b16 %v331
      %v992 = vunpack.c.h.b16 %v331
      %v993 = vunpack.c.l.b16 %v332
      %v994 = vunpack.c.h.b16 %v332
      %v995 = vunpack.c.l.b16 %v333
      %v996 = vunpack.c.h.b16 %v333
      %v997 = vunpack.c.l.b16 %v334
      %v998 = vunpack.c.h.b16 %v334
      %v999 = vunpack.c.l.b16 %v335
      %v1000 = vunpack.c.h.b16 %v335
      %v1001 = vunpack.c.l.b16 %v336
      %v1002 = vunpack.c.h.b16 %v336
      %v1003 = vunpack.c.l.b16 %v337
      %v1004 = vunpack.c.h.b16 %v337
      %v1005 = vunpack.c.l.b16 %v338
      %v1006 = vunpack.c.h.b16 %v338
      %v1007 = vunpack.c.l.b16 %v339
      %v1008 = vunpack.c.h.b16 %v339
      %v1009 = vunpack.c.l.b16 %v340
      %v1010 = vunpack.c.h.b16 %v340
      %v1011 = vunpack.c.l.b16 %v341
      %v1012 = vunpack.c.h.b16 %v341
      %v1013 = vunpack.c.l.b16 %v342
      %v1014 = vunpack.c.h.b16 %v342
      %v1015 = vunpack.c.l.b16 %v343
      %v1016 = vunpack.c.h.b16 %v343
      %v1017 = vunpack.c.l.b16 %v344
      %v1018 = vunpack.c.h.b16 %v344
      %v1019 = vunpack.c.l.b16 %v345
      %v1020 = vunpack.c.h.b16 %v345
      %v1021 = vunpack.c.l.b16 %v346
      %v1022 = vunpack.c.h.b16 %v346
      %v1023 = vunpack.c.l.b16 %v347
      %v1024 = vunpack.c.h.b16 %v347
      %v1025 = vunpack.c.l.b16 %v348
      %v1026 = vunpack.c.h.b16 %v348
      %v1027 = vunpack.c.l.b16 %v349
      %v1028 = vunpack.c.h.b16 %v349
      %v1029 = vunpack.c.l.b16 %v350
      %v1030 = vunpack.c.h.b16 %v350
      %v1031 = vunpack.c.l.b16 %v351
      %v1032 = vunpack.c.h.b16 %v351
      %v1033 = vunpack.c.l.b16 %v352
      %v1034 = vunpack.c.h.b16 %v352
      %v1035 = vunpack.c.l.b16 %v353
      %v1036 = vunpack.c.h.b16 %v353
      %v1037 = vunpack.c.l.b16 %v354
      %v1038 = vunpack.c.h.b16 %v354
      %v1039 = vunpack.c.l.b16 %v355
      %v1040 = vunpack.c.h.b16 %v355
      %v1041 = vunpack.c.l.b16 %v356
      %v1042 = vunpack.c.h.b16 %v356
      %v1043 = vunpack.c.l.b16 %v357
      %v1044 = vunpack.c.h.b16 %v357
      %v1045 = vunpack.c.l.b16 %v358
      %v1046 = vunpack.c.h.b16 %v358
      %v1047 = vunpack.c.l.b16 %v359
      %v1048 = vunpack.c.h.b16 %v359
      %v1049 = vunpack.c.l.b16 %v360
      %v1050 = vunpack.c.h.b16 %v360
      %v1051 = vunpack.c.l.b16 %v361
      %v1052 = vunpack.c.h.b16 %v361
      %v1053 = vunpack.c.l.b16 %v362
      %v1054 = vunpack.c.h.b16 %v362
      %v1055 = vunpack.c.l.b16 %v363
      %v1056 = vunpack.c.h.b16 %v363
      %v1057 = vunpack.c.l.b16 %v364
      %v1058 = vunpack.c.h.b16 %v364
      %v1059 = vunpack.c.l.b16 %v365
      %v1060 = vunpack.c.h.b16 %v365
      %v1061 = vunpack.c.l.b16 %v366
      %v1062 = vunpack.c.h.b16 %v366
      %v1063 = vunpack.c.l.b16 %v367
      %v1064 = vunpack.c.h.b16 %v367
      %v1065 = vunpack.c.l.b16 %v368
      %v1066 = vunpack.c.h.b16 %v368
      %v1067 = vunpack.c.l.b16 %v369
      %v1068 = vunpack.c.h.b16 %v369
      %v1069 = vunpack.c.l.b16 %v370
      %v1070 = vunpack.c.h.b16 %v370
      %v1071 = vunpack.c.l.b16 %v371
      %v1072 = vunpack.c.h.b16 %v371
      %v1073 = vunpack.c.l.b16 %v372
      %v1074 = vunpack.c.h.b16 %v372
      %v1075 = vunpack.c.l.b16 %v373
      %v1076 = vunpack.c.h.b16 %v373
      %v1077 = vunpack.c.l.b16 %v374
      %v1078 = vunpack.c.h.b16 %v374
      %v1079 = vunpack.c.l.b16 %v375
      %v1080 = vunpack.c.h.b16 %v375
      %v1081 = vunpack.c.l.b16 %v376
      %v1082 = vunpack.c.h.b16 %v376
      %v1083 = vunpack.c.l.b16 %v377
      %v1084 = vunpack.c.h.b16 %v377
      %v1085 = vunpack.c.l.b16 %v378
      %v1086 = vunpack.c.h.b16 %v378
      %v1087 = vunpack.c.l.b16 %v379
      %v1088 = vunpack.c.h.b16 %v379
      %v1089 = vunpack.c.l.b16 %v380
      %v1090 = vunpack.c.h.b16 %v380
      %v1091 = vunpack.c.l.b16 %v381
      %v1092 = vunpack.c.h.b16 %v381
      %v1093 = vunpack.c.l.b16 %v382
      %v1094 = vunpack.c.h.b16 %v382
      %v1095 = vunpack.c.l.b16 %v383
      %v1096 = vunpack.c.h.b16 %v383
      %v1097 = vunpack.c.l.b16 %v384
      %v1098 = vunpack.c.h.b16 %v384
      %v1099 = vunpack.c.l.b16 %v385
      %v1100 = vunpack.c.h.b16 %v385
      %v1101 = vunpack.c.l.b16 %v386
      %v1102 = vunpack.c.h.b16 %v386
      %v1103 = vunpack.c.l.b16 %v387
      %v1104 = vunpack.c.h.b16 %v387
      %v1105 = vunpack.c.l.b16 %v388
      %v1106 = vunpack.c.h.b16 %v388
      %v1107 = vunpack.c.l.b16 %v389
      %v1108 = vunpack.c.h.b16 %v389
      %v1109 = vunpack.c.l.b16 %v390
      %v1110 = vunpack.c.h.b16 %v390
      %v1111 = vunpack.c.l.b16 %v391
      %v1112 = vunpack.c.h.b16 %v391
      %v1113 = vunpack.c.l.b16 %v392
      %v1114 = vunpack.c.h.b16 %v392
      %v1115 = vunpack.c.l.b16 %v393
      %v1116 = vunpack.c.h.b16 %v393
      %v1117 = vunpack.c.l.b16 %v394
      %v1118 = vunpack.c.h.b16 %v394
      %v1119 = vunpack.c.l.b16 %v395
      %v1120 = vunpack.c.h.b16 %v395
      %v1121 = vunpack.c.l.b16 %v396
      %v1122 = vunpack.c.h.b16 %v396
      %v1123 = vunpack.c.l.b16 %v397
      %v1124 = vunpack.c.h.b16 %v397
      %v1125 = vunpack.c.l.b16 %v398
      %v1126 = vunpack.c.h.b16 %v398
      %v1127 = vunpack.c.l.b16 %v399
      %v1128 = vunpack.c.h.b16 %v399
      %v1129 = vunpack.c.l.b16 %v400
      %v1130 = vunpack.c.h.b16 %v400
      %v1131 = vunpack.c.l.b16 %v401
      %v1132 = vunpack.c.h.b16 %v401
      %v1133 = vunpack.c.l.b16 %v402
      %v1134 = vunpack.c.h.b16 %v402
      %v1135 = vunpack.c.l.b16 %v403
      %v1136 = vunpack.c.h.b16 %v403
      %v1137 = vunpack.c.l.b16 %v404
      %v1138 = vunpack.c.h.b16 %v404
      %v1139 = vunpack.c.l.b16 %v405
      %v1140 = vunpack.c.h.b16 %v405
      %v1141 = vunpack.c.l.b16 %v406
      %v1142 = vunpack.c.h.b16 %v406
      %v1143 = vunpack.c.l.b16 %v407
      %v1144 = vunpack.c.h.b16 %v407
      %v1145 = vunpack.c.l.b16 %v408
      %v1146 = vunpack.c.h.b16 %v408
      %v1147 = vunpack.c.l.b16 %v409
      %v1148 = vunpack.c.h.b16 %v409
      %v1149 = vunpack.c.l.b16 %v410
      %v1150 = vunpack.c.h.b16 %v410
      %v1151 = vunpack.c.l.b16 %v411
      %v1152 = vunpack.c.h.b16 %v411
      %v1153 = vunpack.c.l.b16 %v412
      %v1154 = vunpack.c.h.b16 %v412
      %v1155 = vunpack.c.l.b16 %v413
      %v1156 = vunpack.c.h.b16 %v413
      %v1157 = vunpack.c.l.b16 %v414
      %v1158 = vunpack.c.h.b16 %v414
      %v1159 = vunpack.c.l.b16 %v415
      %v1160 = vunpack.c.h.b16 %v415
      %v1161 = vunpack.c.l.b16 %v416
      %v1162 = vunpack.c.h.b16 %v416
      %v1163 = vunpack.c.l.b16 %v417
      %v1164 = vunpack.c.h.b16 %v417
      %v1165 = vunpack.c.l.b16 %v418
      %v1166 = vunpack.c.h.b16 %v418
      %v1167 = vunpack.c.l.b16 %v419
      %v1168 = vunpack.c.h.b16 %v419
      %v1169 = vunpack.c.l.b16 %v420
      %v1170 = vunpack.c.h.b16 %v420
      %v1171 = vunpack.c.l.b16 %v421
      %v1172 = vunpack.c.h.b16 %v421
      %v1173 = vunpack.c.l.b16 %v422
      %v1174 = vunpack.c.h.b16 %v422
      %v1175 = vunpack.c.l.b16 %v423
      %v1176 = vunpack.c.h.b16 %v423
      %v1177 = vunpack.c.l.b16 %v424
      %v1178 = vunpack.c.h.b16 %v424
      %v1179 = vunpack.c.l.b16 %v425
      %v1180 = vunpack.c.h.b16 %v425
      %v1181 = vunpack.c.l.b16 %v426
      %v1182 = vunpack.c.h.b16 %v426
      %v1183 = vunpack.c.l.b16 %v427
      %v1184 = vunpack.c.h.b16 %v427
      %v1185 = vunpack.c.l.b16 %v428
      %v1186 = vunpack.c.h.b16 %v428
      %v1187 = vunpack.c.l.b16 %v429
      %v1188 = vunpack.c.h.b16 %v429
      %v1189 = vunpack.c.l.b16 %v430
      %v1190 = vunpack.c.h.b16 %v430
      %v1191 = vunpack.c.l.b16 %v431
      %v1192 = vunpack.c.h.b16 %v431
      %v1193 = vunpack.c.l.b16 %v432
      %v1194 = vunpack.c.h.b16 %v432
      %v1195 = vunpack.c.l.b16 %v433
      %v1196 = vunpack.c.h.b16 %v433
      %v1197 = vunpack.c.l.b16 %v434
      %v1198 = vunpack.c.h.b16 %v434
      %v1199 = vunpack.c.l.b16 %v435
      %v1200 = vunpack.c.h.b16 %v435
      %v1201 = vunpack.c.l.b16 %v436
      %v1202 = vunpack.c.h.b16 %v436
      %v1203 = vunpack.c.l.b16 %v437
      %v1204 = vunpack.c.h.b16 %v437
      %v1205 = vunpack.c.l.b16 %v438
      %v1206 = vunpack.c.h.b16 %v438
      %v1207 = vunpack.c.l.b16 %v439
      %v1208 = vunpack.c.h.b16 %v439
      %v1209 = vunpack.c.l.b16 %v440
      %v1210 = vunpack.c.h.b16 %v440
      %v1211 = vunpack.c.l.b16 %v441
      %v1212 = vunpack.c.h.b16 %v441
      %v1213 = vunpack.c.l.b16 %v442
      %v1214 = vunpack.c.h.b16 %v442
      %v1215 = vunpack.c.l.b16 %v443
      %v1216 = vunpack.c.h.b16 %v443
      %v1217 = vunpack.c.l.b16 %v444
      %v1218 = vunpack.c.h.b16 %v444
      %v1219 = vunpack.c.l.b16 %v445
      %v1220 = vunpack.c.h.b16 %v445
      %v1221 = vunpack.c.l.b16 %v446
      %v1222 = vunpack.c.h.b16 %v446
      %v1223 = vunpack.c.l.b16 %v447
      %v1224 = vunpack.c.h.b16 %v447
      %v1225 = vunpack.c.l.b16 %v448
      %v1226 = vunpack.c.h.b16 %v448
      %v1227 = vunpack.c.l.b16 %v449
      %v1228 = vunpack.c.h.b16 %v449
      %v1229 = vunpack.c.l.b16 %v450
      %v1230 = vunpack.c.h.b16 %v450
      %v1231 = vunpack.c.l.b16 %v451
      %v1232 = vunpack.c.h.b16 %v451
      %v1233 = vunpack.c.l.b16 %v452
      %v1234 = vunpack.c.h.b16 %v452
      %v1235 = vunpack.c.l.b16 %v453
      %v1236 = vunpack.c.h.b16 %v453
      %v1237 = vunpack.c.l.b16 %v454
      %v1238 = vunpack.c.h.b16 %v454
      %v1239 = vunpack.c.l.b16 %v455
      %v1240 = vunpack.c.h.b16 %v455
      %v1241 = vunpack.c.l.b16 %v456
      %v1242 = vunpack.c.h.b16 %v456
      %v1243 = vunpack.c.l.b16 %v457
      %v1244 = vunpack.c.h.b16 %v457
      %v1245 = vunpack.c.l.b16 %v458
      %v1246 = vunpack.c.h.b16 %v458
      %v1247 = vunpack.c.l.b16 %v459
      %v1248 = vunpack.c.h.b16 %v459
      %v1249 = vunpack.c.l.b16 %v460
      %v1250 = vunpack.c.h.b16 %v460
      %v1251 = vunpack.c.l.b16 %v461
      %v1252 = vunpack.c.h.b16 %v461
      %v1253 = vunpack.c.l.b16 %v462
      %v1254 = vunpack.c.h.b16 %v462
      %v1255 = vunpack.c.l.b16 %v463
      %v1256 = vunpack.c.h.b16 %v463
      %v1257 = vunpack.c.l.b16 %v464
      %v1258 = vunpack.c.h.b16 %v464
      %v1259 = vunpack.c.l.b16 %v465
      %v1260 = vunpack.c.h.b16 %v465
      %v1261 = vunpack.c.l.b16 %v466
      %v1262 = vunpack.c.h.b16 %v466
      %v1263 = vunpack.c.l.b16 %v467
      %v1264 = vunpack.c.h.b16 %v467
      %v1265 = vunpack.c.l.b16 %v468
      %v1266 = vunpack.c.h.b16 %v468
      %v1267 = vunpack.c.l.b16 %v469
      %v1268 = vunpack.c.h.b16 %v469
      %v1269 = vunpack.c.l.b16 %v470
      %v1270 = vunpack.c.h.b16 %v470
      %v1271 = vunpack.c.l.b16 %v471
      %v1272 = vunpack.c.h.b16 %v471
      %v1273 = vunpack.c.l.b16 %v472
      %v1274 = vunpack.c.h.b16 %v472
      %v1275 = vunpack.c.l.b16 %v473
      %v1276 = vunpack.c.h.b16 %v473
      %v1277 = vunpack.c.l.b16 %v474
      %v1278 = vunpack.c.h.b16 %v474
      %v1279 = vunpack.c.l.b16 %v475
      %v1280 = vunpack.c.h.b16 %v475
      %v1281 = vunpack.c.l.b16 %v476
      %v1282 = vunpack.c.h.b16 %v476
      %v1283 = vunpack.c.l.b16 %v477
      %v1284 = vunpack.c.h.b16 %v477
      %v1285 = vunpack.c.l.b16 %v478
      %v1286 = vunpack.c.h.b16 %v478
      %v1287 = vunpack.c.l.b16 %v479
      %v1288 = vunpack.c.h.b16 %v479
      %v1289 = vunpack.c.l.b16 %v480
      %v1290 = vunpack.c.h.b16 %v480
      %v1291 = vunpack.c.l.b16 %v481
      %v1292 = vunpack.c.h.b16 %v481
      %v1293 = vunpack.c.l.b16 %v482
      %v1294 = vunpack.c.h.b16 %v482
      %v1295 = vunpack.c.l.b16 %v483
      %v1296 = vunpack.c.h.b16 %v483
      %v1297 = vunpack.c.l.b16 %v484
      %v1298 = vunpack.c.h.b16 %v484
      %v1299 = vunpack.c.l.b16 %v485
      %v1300 = vunpack.c.h.b16 %v485
      %v1301 = vunpack.c.l.b16 %v486
      %v1302 = vunpack.c.h.b16 %v486
      %v1303 = vunpack.c.l.b16 %v487
      %v1304 = vunpack.c.h.b16 %v487
      %v1305 = vunpack.c.l.b16 %v488
      %v1306 = vunpack.c.h.b16 %v488
      %v1307 = vunpack.c.l.b16 %v489
      %v1308 = vunpack.c.h.b16 %v489
      %v1309 = vunpack.c.l.b16 %v490
      %v1310 = vunpack.c.h.b16 %v490
      %v1311 = vunpack.c.l.b16 %v491
      %v1312 = vunpack.c.h.b16 %v491
      %v1313 = vunpack.c.l.b16 %v492
      %v1314 = vunpack.c.h.b16 %v492
      %v1315 = vunpack.c.l.b16 %v493
      %v1316 = vunpack.c.h.b16 %v493
      %v1317 = vunpack.c.l.b16 %v494
      %v1318 = vunpack.c.h.b16 %v494
      %v1319 = vunpack.c.l.b16 %v495
      %v1320 = vunpack.c.h.b16 %v495
      %v1321 = vunpack.c.l.b16 %v496
      %v1322 = vunpack.c.h.b16 %v496
      %v1323 = vpack.c.b16 %v815, %v811
      %v1324 = vpack.c.b16 %v816, %v812
      %v1325 = vpack.c.b16 %v817, %v813
      %v1326 = vpack.c.b16 %v818, %v814
      %v1327 = vpack.c.b16 %v823, %v819
      %v1328 = vpack.c.b16 %v824, %v820
      %v1329 = vpack.c.b16 %v825, %v821
      %v1330 = vpack.c.b16 %v826, %v822
      %v1331 = vpack.c.b16 %v831, %v827
      %v1332 = vpack.c.b16 %v832, %v828
      %v1333 = vpack.c.b16 %v833, %v829
      %v1334 = vpack.c.b16 %v834, %v830
      %v1335 = vpack.c.b16 %v839, %v835
      %v1336 = vpack.c.b16 %v840, %v836
      %v1337 = vpack.c.b16 %v841, %v837
      %v1338 = vpack.c.b16 %v842, %v838
      %v1339 = vpack.c.b16 %v847, %v843
      %v1340 = vpack.c.b16 %v848, %v844
      %v1341 = vpack.c.b16 %v849, %v845
      %v1342 = vpack.c.b16 %v850, %v846
      %v1343 = vpack.c.b16 %v855, %v851
      %v1344 = vpack.c.b16 %v856, %v852
      %v1345 = vpack.c.b16 %v857, %v853
      %v1346 = vpack.c.b16 %v858, %v854
      %v1347 = vpack.c.b16 %v863, %v859
      %v1348 = vpack.c.b16 %v864, %v860
      %v1349 = vpack.c.b16 %v865, %v861
      %v1350 = vpack.c.b16 %v866, %v862
      %v1351 = vpack.c.b16 %v871, %v867
      %v1352 = vpack.c.b16 %v872, %v868
      %v1353 = vpack.c.b16 %v873, %v869
      %v1354 = vpack.c.b16 %v874, %v870
      %v1355 = vpack.c.b16 %v879, %v875
      %v1356 = vpack.c.b16 %v880, %v876
      %v1357 = vpack.c.b16 %v881, %v877
      %v1358 = vpack.c.b16 %v882, %v878
      %v1359 = vpack.c.b16 %v887, %v883
      %v1360 = vpack.c.b16 %v888, %v884
      %v1361 = vpack.c.b16 %v889, %v885
      %v1362 = vpack.c.b16 %v890, %v886
      %v1363 = vpack.c.b16 %v895, %v891
      %v1364 = vpack.c.b16 %v896, %v892
      %v1365 = vpack.c.b16 %v897, %v893
      %v1366 = vpack.c.b16 %v898, %v894
      %v1367 = vpack.c.b16 %v903, %v899
      %v1368 = vpack.c.b16 %v904, %v900
      %v1369 = vpack.c.b16 %v905, %v901
      %v1370 = vpack.c.b16 %v906, %v902
      %v1371 = vpack.c.b16 %v911, %v907
      %v1372 = vpack.c.b16 %v912, %v908
      %v1373 = vpack.c.b16 %v913, %v909
      %v1374 = vpack.c.b16 %v914, %v910
      %v1375 = vpack.c.b16 %v919, %v915
      %v1376 = vpack.c.b16 %v920, %v916
      %v1377 = vpack.c.b16 %v921, %v917
      %v1378 = vpack.c.b16 %v922, %v918
      %v1379 = vpack.c.b16 %v927, %v923
      %v1380 = vpack.c.b16 %v928, %v924
      %v1381 = vpack.c.b16 %v929, %v925
      %v1382 = vpack.c.b16 %v930, %v926
      %v1383 = vpack.c.b16 %v935, %v931
      %v1384 = vpack.c.b16 %v936, %v932
      %v1385 = vpack.c.b16 %v937, %v933
      %v1386 = vpack.c.b16 %v938, %v934
      %v1387 = vpack.c.b16 %v943, %v939
      %v1388 = vpack.c.b16 %v944, %v940
      %v1389 = vpack.c.b16 %v945, %v941
      %v1390 = vpack.c.b16 %v946, %v942
      %v1391 = vpack.c.b16 %v951, %v947
      %v1392 = vpack.c.b16 %v952, %v948
      %v1393 = vpack.c.b16 %v953, %v949
      %v1394 = vpack.c.b16 %v954, %v950
      %v1395 = vpack.c.b16 %v959, %v955
      %v1396 = vpack.c.b16 %v960, %v956
      %v1397 = vpack.c.b16 %v961, %v957
      %v1398 = vpack.c.b16 %v962, %v958
      %v1399 = vpack.c.b16 %v967, %v963
      %v1400 = vpack.c.b16 %v968, %v964
      %v1401 = vpack.c.b16 %v969, %v965
      %v1402 = vpack.c.b16 %v970, %v966
      %v1403 = vpack.c.b16 %v975, %v971
      %v1404 = vpack.c.b16 %v976, %v972
      %v1405 = vpack.c.b16 %v977, %v973
      %v1406 = vpack.c.b16 %v978, %v974
      %v1407 = vpack.c.b16 %v983, %v979
      %v1408 = vpack.c.b16 %v984, %v980
      %v1409 = vpack.c.b16 %v985, %v981
      %v1410 = vpack.c.b16 %v986, %v982
      %v1411 = vpack.c.b16 %v991, %v987
      %v1412 = vpack.c.b16 %v992, %v988
      %v1413 = vpack.c.b16 %v993, %v989
      %v1414 = vpack.c.b16 %v994, %v990
      %v1415 = vpack.c.b16 %v999, %v995
      %v1416 = vpack.c.b16 %v1000, %v996
      %v1417 = vpack.c.b16 %v1001, %v997
      %v1418 = vpack.c.b16 %v1002, %v998
      %v1419 = vpack.c.b16 %v1007, %v1003
      %v1420 = vpack.c.b16 %v1008, %v1004
      %v1421 = vpack.c.b16 %v1009, %v1005
      %v1422 = vpack.c.b16 %v1010, %v1006
      %v1423 = vpack.c.b16 %v1015, %v1011
      %v1424 = vpack.c.b16 %v1016, %v1012
      %v1425 = vpack.c.b16 %v1017, %v1013
      %v1426 = vpack.c.b16 %v1018, %v1014
      %v1427 = vpack.c.b16 %v1023, %v1019
      %v1428 = vpack.c.b16 %v1024, %v1020
      %v1429 = vpack.c.b16 %v1025, %v1021
      %v1430 = vpack.c.b16 %v1026, %v1022
      %v1431 = vpack.c.b16 %v1031, %v1027
      %v1432 = vpack.c.b16 %v1032, %v1028
      %v1433 = vpack.c.b16 %v1033, %v1029
      %v1434 = vpack.c.b16 %v1034, %v1030
      %v1435 = vpack.c.b16 %v1039, %v1035
      %v1436 = vpack.c.b16 %v1040, %v1036
      %v1437 = vpack.c.b16 %v1041, %v1037
      %v1438 = vpack.c.b16 %v1042, %v1038
      %v1439 = vpack.c.b16 %v1047, %v1043
      %v1440 = vpack.c.b16 %v1048, %v1044
      %v1441 = vpack.c.b16 %v1049, %v1045
      %v1442 = vpack.c.b16 %v1050, %v1046
      %v1443 = vpack.c.b16 %v1055, %v1051
      %v1444 = vpack.c.b16 %v1056, %v1052
      %v1445 = vpack.c.b16 %v1057, %v1053
      %v1446 = vpack.c.b16 %v1058, %v1054
      %v1447 = vpack.c.b16 %v1063, %v1059
      %v1448 = vpack.c.b16 %v1064, %v1060
      %v1449 = vpack.c.b16 %v1065, %v1061
      %v1450 = vpack.c.b16 %v1066, %v1062
      %v1451 = vpack.c.b16 %v1071, %v1067
      %v1452 = vpack.c.b16 %v1072, %v1068
      %v1453 = vpack.c.b16 %v1073, %v1069
      %v1454 = vpack.c.b16 %v1074, %v1070
      %v1455 = vpack.c.b16 %v1079, %v1075
      %v1456 = vpack.c.b16 %v1080, %v1076
      %v1457 = vpack.c.b16 %v1081, %v1077
      %v1458 = vpack.c.b16 %v1082, %v1078
      %v1459 = vpack.c.b16 %v1087, %v1083
      %v1460 = vpack.c.b16 %v1088, %v1084
      %v1461 = vpack.c.b16 %v1089, %v1085
      %v1462 = vpack.c.b16 %v1090, %v1086
      %v1463 = vpack.c.b16 %v1095, %v1091
      %v1464 = vpack.c.b16 %v1096, %v1092
      %v1465 = vpack.c.b16 %v1097, %v1093
      %v1466 = vpack.c.b16 %v1098, %v1094
      %v1467 = vpack.c.b16 %v1103, %v1099
      %v1468 = vpack.c.b16 %v1104, %v1100
      %v1469 = vpack.c.b16 %v1105, %v1101
      %v1470 = vpack.c.b16 %v1106, %v1102
      %v1471 = vpack.c.b16 %v1111, %v1107
      %v1472 = vpack.c.b16 %v1112, %v1108
      %v1473 = vpack.c.b16 %v1113, %v1109
      %v1474 = vpack.c.b16 %v1114, %v1110
      %v1475 = vpack.c.b16 %v1119, %v1115
      %v1476 = vpack.c.b16 %v1120, %v1116
      %v1477 = vpack.c.b16 %v1121, %v1117
      %v1478 = vpack.c.b16 %v1122, %v1118
      %v1479 = vpack.c.b16 %v1127, %v1123
      %v1480 = vpack.c.b16 %v1128, %v1124
      %v1481 = vpack.c.b16 %v1129, %v1125
      %v1482 = vpack.c.b16 %v1130, %v1126
      %v1483 = vpack.c.b16 %v1135, %v1131
      %v1484 = vpack.c.b16 %v1136, %v1132
      %v1485 = vpack.c.b16 %v1137, %v1133
      %v1486 = vpack.c.b16 %v1138, %v1134
      %v1487 = vpack.c.b16 %v1143, %v1139
      %v1488 = vpack.c.b16 %v1144, %v1140
      %v1489 = vpack.c.b16 %v1145, %v1141
      %v1490 = vpack.c.b16 %v1146, %v1142
      %v1491 = vpack.c.b16 %v1151, %v1147
      %v1492 = vpack.c.b16 %v1152, %v1148
      %v1493 = vpack.c.b16 %v1153, %v1149
      %v1494 = vpack.c.b16 %v1154, %v1150
      %v1495 = vpack.c.b16 %v1159, %v1155
      %v1496 = vpack.c.b16 %v1160, %v1156
      %v1497 = vpack.c.b16 %v1161, %v1157
      %v1498 = vpack.c.b16 %v1162, %v1158
      %v1499 = vpack.c.b16 %v1167, %v1163
      %v1500 = vpack.c.b16 %v1168, %v1164
      %v1501 = vpack.c.b16 %v1169, %v1165
      %v1502 = vpack.c.b16 %v1170, %v1166
      %v1503 = vpack.c.b16 %v1175, %v1171
      %v1504 = vpack.c.b16 %v1176, %v1172
      %v1505 = vpack.c.b16 %v1177, %v1173
      %v1506 = vpack.c.b16 %v1178, %v1174
      %v1507 = vpack.c.b16 %v1183, %v1179
      %v1508 = vpack.c.b16 %v1184, %v1180
      %v1509 = vpack.c.b16 %v1185, %v1181
      %v1510 = vpack.c.b16 %v1186, %v1182
      %v1511 = vpack.c.b16 %v1191, %v1187
      %v1512 = vpack.c.b16 %v1192, %v1188
      %v1513 = vpack.c.b16 %v1193, %v1189
      %v1514 = vpack.c.b16 %v1194, %v1190
      %v1515 = vpack.c.b16 %v1199, %v1195
      %v1516 = vpack.c.b16 %v1200, %v1196
      %v1517 = vpack.c.b16 %v1201, %v1197
      %v1518 = vpack.c.b16 %v1202, %v1198
      %v1519 = vpack.c.b16 %v1207, %v1203
      %v1520 = vpack.c.b16 %v1208, %v1204
      %v1521 = vpack.c.b16 %v1209, %v1205
      %v1522 = vpack.c.b16 %v1210, %v1206
      %v1523 = vpack.c.b16 %v1215, %v1211
      %v1524 = vpack.c.b16 %v1216, %v1212
      %v1525 = vpack.c.b16 %v1217, %v1213
      %v1526 = vpack.c.b16 %v1218, %v1214
      %v1527 = vpack.c.b16 %v1223, %v1219
      %v1528 = vpack.c.b16 %v1224, %v1220
      %v1529 = vpack.c.b16 %v1225, %v1221
      %v1530 = vpack.c.b16 %v1226, %v1222
      %v1531 = vpack.c.b16 %v1231, %v1227
      %v1532 = vpack.c.b16 %v1232, %v1228
      %v1533 = vpack.c.b16 %v1233, %v1229
      %v1534 = vpack.c.b16 %v1234, %v1230
      %v1535 = vpack.c.b16 %v1239, %v1235
      %v1536 = vpack.c.b16 %v1240, %v1236
      %v1537 = vpack.c.b16 %v1241, %v1237
      %v1538 = vpack.c.b16 %v1242, %v1238
      %v1539 = vpack.c.b16 %v1247, %v1243
      %v1540 = vpack.c.b16 %v1248, %v1244
      %v1541 = vpack.c.b16 %v1249, %v1245
      %v1542 = vpack.c.b16 %v1250, %v1246
      %v1543 = vpack.c.b16 %v1255, %v1251
      %v1544 = vpack.c.b16 %v1256, %v1252
      %v1545 = vpack.c.b16 %v1257, %v1253
      %v1546 = vpack.c.b16 %v1258, %v1254
      %v1547 = vpack.c.b16 %v1263, %v1259
      %v1548 = vpack.c.b16 %v1264, %v1260
      %v1549 = vpack.c.b16 %v1265, %v1261
      %v1550 = vpack.c.b16 %v1266, %v1262
      %v1551 = vpack.c.b16 %v1271, %v1267
      %v1552 = vpack.c.b16 %v1272, %v1268
      %v1553 = vpack.c.b16 %v1273, %v1269
      %v1554 = vpack.c.b16 %v1274, %v1270
      %v1555 = vpack.c.b16 %v1279, %v1275
      %v1556 = vpack.c.b16 %v1280, %v1276
      %v1557 = vpack.c.b16 %v1281, %v1277
      %v1558 = vpack.c.b16 %v1282, %v1278
      %v1559 = vpack.c.b16 %v1287, %v1283
      %v1560 = vpack.c.b16 %v1288, %v1284
      %v1561 = vpack.c.b16 %v1289, %v1285
      %v1562 = vpack.c.b16 %v1290, %v1286
      %v1563 = vpack.c.b16 %v1295, %v1291
      %v1564 = vpack.c.b16 %v1296, %v1292
      %v1565 = vpack.c.b16 %v1297, %v1293
      %v1566 = vpack.c.b16 %v1298, %v1294
      %v1567 = vpack.c.b16 %v1303, %v1299
      %v1568 = vpack.c.b16 %v1304, %v1300
      %v1569 = vpack.c.b16 %v1305, %v1301
      %v1570 = vpack.c.b16 %v1306, %v1302
      %v1571 = vpack.c.b16 %v1311, %v1307
      %v1572 = vpack.c.b16 %v1312, %v1308
      %v1573 = vpack.c.b16 %v1313, %v1309
      %v1574 = vpack.c.b16 %v1314, %v1310
      %v1575 = vpack.c.b16 %v1319, %v1315
      %v1576 = vpack.c.b16 %v1320, %v1316
      %v1577 = vpack.c.b16 %v1321, %v1317
      %v1578 = vpack.c.b16 %v1322, %v1318
      %1835 = vmatprep.subr.bf16.mxu0 %v1352
      %1836 = vmatpush1.bf16.msra.mxu0 %v1351
      %1837 = vmatprep.subr.bf16.mxu0 %v1348
      %1838 = vmatpush1.bf16.msra.mxu0 %v1347
      %1839 = vmatprep.subr.bf16.mxu0 %v1344
      %1840 = vmatpush1.bf16.msra.mxu0 %v1343
      %1841 = vmatprep.subr.bf16.mxu0 %v1340
      %1842 = vmatpush1.bf16.msra.mxu0 %v1339
      %1843 = vmatprep.subr.bf16.mxu0 %v1336
      %1844 = vmatpush1.bf16.msra.mxu0 %v1335
      %1845 = vmatprep.subr.bf16.mxu0 %v1332
      %1846 = vmatpush1.bf16.msra.mxu0 %v1331
      %1847 = vmatprep.subr.bf16.mxu0 %v1328
      %1848 = vmatpush1.bf16.msra.mxu0 %v1327
      %1849 = vmatprep.subr.bf16.mxu0 %v1324
      %1850 = vmatpush1.bf16.msra.mxu0 %v1323
      %1851 = vmatprep.subr.bf16.mxu0 %v1384
      %1852 = vmatpush2.bf16.msra.mxu0 %v1383
      %1853 = vmatprep.subr.bf16.mxu0 %v1380
      %1854 = vmatpush2.bf16.msra.mxu0 %v1379
      %1855 = vmatprep.subr.bf16.mxu0 %v1376
      %1856 = vmatpush2.bf16.msra.mxu0 %v1375
      %1857 = vmatprep.subr.bf16.mxu0 %v1372
      %1858 = vmatpush2.bf16.msra.mxu0 %v1371
      %1859 = vmatprep.subr.bf16.mxu0 %v1368
      %1860 = vmatpush2.bf16.msra.mxu0 %v1367
      %1861 = vmatprep.subr.bf16.mxu0 %v1364
      %1862 = vmatpush2.bf16.msra.mxu0 %v1363
      %1863 = vmatprep.subr.bf16.mxu0 %v1360
      %1864 = vmatpush2.bf16.msra.mxu0 %v1359
      %1865 = vmatprep.subr.bf16.mxu0 %v1356
      %1866 = vmatpush2.bf16.msra.mxu0 %v1355
      %1867 = vmatprep.mubr.bf16.mxu0 %v535
      %1868 = vmatmul.mubr.bf16.gmra.mxu0 %v521
      %v1869 = vpop.f32.mrf.mxu0
      %v1870 = vadd.f32 0.0, %v1869
      %v1871 = vpop.f32.mrf.mxu0
      %v1872 = vadd.f32 0.0, %v1871
      %v1873 = vpop.f32.mrf.mxu0
      %v1874 = vpop.f32.mrf.mxu0
      %1875 = vdwg.mxu0
      %1876 = vmatprep.subr.bf16.mxu0 %v1416
      %1877 = vmatpush1.bf16.msra.mxu0 %v1415
      %1878 = vmatprep.subr.bf16.mxu0 %v1412
      %1879 = vmatpush1.bf16.msra.mxu0 %v1411
      %1880 = vmatprep.subr.bf16.mxu0 %v1408
      %1881 = vmatpush1.bf16.msra.mxu0 %v1407
      %1882 = vmatprep.subr.bf16.mxu0 %v1404
      %1883 = vmatpush1.bf16.msra.mxu0 %v1403
      %1884 = vmatprep.subr.bf16.mxu0 %v1400
      %1885 = vmatpush1.bf16.msra.mxu0 %v1399
      %1886 = vmatprep.subr.bf16.mxu0 %v1396
      %1887 = vmatpush1.bf16.msra.mxu0 %v1395
      %1888 = vmatprep.subr.bf16.mxu0 %v1392
      %1889 = vmatpush1.bf16.msra.mxu0 %v1391
      %1890 = vmatprep.subr.bf16.mxu0 %v1388
      %1891 = vmatpush1.bf16.msra.mxu0 %v1387
      %1892 = vmatprep.subr.bf16.mxu0 %v1448
      %1893 = vmatpush2.bf16.msra.mxu0 %v1447
      %1894 = vmatprep.subr.bf16.mxu0 %v1444
      %1895 = vmatpush2.bf16.msra.mxu0 %v1443
      %1896 = vmatprep.subr.bf16.mxu0 %v1440
      %1897 = vmatpush2.bf16.msra.mxu0 %v1439
      %1898 = vmatprep.subr.bf16.mxu0 %v1436
      %1899 = vmatpush2.bf16.msra.mxu0 %v1435
      %1900 = vmatprep.subr.bf16.mxu0 %v1432
      %1901 = vmatpush2.bf16.msra.mxu0 %v1431
      %1902 = vmatprep.subr.bf16.mxu0 %v1428
      %1903 = vmatpush2.bf16.msra.mxu0 %v1427
      %1904 = vmatprep.subr.bf16.mxu0 %v1424
      %1905 = vmatpush2.bf16.msra.mxu0 %v1423
      %1906 = vmatprep.subr.bf16.mxu0 %v1420
      %1907 = vmatpush2.bf16.msra.mxu0 %v1419
      %1908 = vmatprep.mubr.bf16.mxu0 %v545
      %1909 = vmatmul.mubr.bf16.gmra.mxu0 %v543
      %v1910 = vpop.f32.mrf.mxu0
      %v1911 = vadd.f32 %v1870, %v1910
      %v1912 = vpop.f32.mrf.mxu0
      %v1913 = vadd.f32 %v1872, %v1912
      %v1914 = vpop.f32.mrf.mxu0
      %v1915 = vpop.f32.mrf.mxu0
      %1916 = vdwg.mxu0
      %1917 = vmatprep.subr.bf16.mxu0 %v1480
      %1918 = vmatpush1.bf16.msra.mxu0 %v1479
      %1919 = vmatprep.subr.bf16.mxu0 %v1476
      %1920 = vmatpush1.bf16.msra.mxu0 %v1475
      %1921 = vmatprep.subr.bf16.mxu0 %v1472
      %1922 = vmatpush1.bf16.msra.mxu0 %v1471
      %1923 = vmatprep.subr.bf16.mxu0 %v1468
      %1924 = vmatpush1.bf16.msra.mxu0 %v1467
      %1925 = vmatprep.subr.bf16.mxu0 %v1464
      %1926 = vmatpush1.bf16.msra.mxu0 %v1463
      %1927 = vmatprep.subr.bf16.mxu0 %v1460
      %1928 = vmatpush1.bf16.msra.mxu0 %v1459
      %1929 = vmatprep.subr.bf16.mxu0 %v1456
      %1930 = vmatpush1.bf16.msra.mxu0 %v1455
      %1931 = vmatprep.subr.bf16.mxu0 %v1452
      %1932 = vmatpush1.bf16.msra.mxu0 %v1451
      %1933 = vmatprep.subr.bf16.mxu0 %v1512
      %1934 = vmatpush2.bf16.msra.mxu0 %v1511
      %1935 = vmatprep.subr.bf16.mxu0 %v1508
      %1936 = vmatpush2.bf16.msra.mxu0 %v1507
      %1937 = vmatprep.subr.bf16.mxu0 %v1504
      %1938 = vmatpush2.bf16.msra.mxu0 %v1503
      %1939 = vmatprep.subr.bf16.mxu0 %v1500
      %1940 = vmatpush2.bf16.msra.mxu0 %v1499
      %1941 = vmatprep.subr.bf16.mxu0 %v1496
      %1942 = vmatpush2.bf16.msra.mxu0 %v1495
      %1943 = vmatprep.subr.bf16.mxu0 %v1492
      %1944 = vmatpush2.bf16.msra.mxu0 %v1491
      %1945 = vmatprep.subr.bf16.mxu0 %v1488
      %1946 = vmatpush2.bf16.msra.mxu0 %v1487
      %1947 = vmatprep.subr.bf16.mxu0 %v1484
      %1948 = vmatpush2.bf16.msra.mxu0 %v1483
      %1949 = vmatprep.mubr.bf16.mxu0 %v542
      %1950 = vmatmul.mubr.bf16.gmra.mxu0 %v528
      %v1951 = vpop.f32.mrf.mxu0
      %v1952 = vadd.f32 %v1911, %v1951
      %v1953 = vpop.f32.mrf.mxu0
      %v1954 = vadd.f32 %v1913, %v1953
      %v1955 = vpop.f32.mrf.mxu0
      %v1956 = vpop.f32.mrf.mxu0
      %1957 = vdwg.mxu0
      %1958 = vmatprep.subr.bf16.mxu0 %v1544
      %1959 = vmatpush1.bf16.msra.mxu0 %v1543
      %1960 = vmatprep.subr.bf16.mxu0 %v1540
      %1961 = vmatpush1.bf16.msra.mxu0 %v1539
      %1962 = vmatprep.subr.bf16.mxu0 %v1536
      %1963 = vmatpush1.bf16.msra.mxu0 %v1535
      %1964 = vmatprep.subr.bf16.mxu0 %v1532
      %1965 = vmatpush1.bf16.msra.mxu0 %v1531
      %1966 = vmatprep.subr.bf16.mxu0 %v1528
      %1967 = vmatpush1.bf16.msra.mxu0 %v1527
      %1968 = vmatprep.subr.bf16.mxu0 %v1524
      %1969 = vmatpush1.bf16.msra.mxu0 %v1523
      %1970 = vmatprep.subr.bf16.mxu0 %v1520
      %1971 = vmatpush1.bf16.msra.mxu0 %v1519
      %1972 = vmatprep.subr.bf16.mxu0 %v1516
      %1973 = vmatpush1.bf16.msra.mxu0 %v1515
      %1974 = vmatprep.subr.bf16.mxu0 %v1576
      %1975 = vmatpush2.bf16.msra.mxu0 %v1575
      %1976 = vmatprep.subr.bf16.mxu0 %v1572
      %1977 = vmatpush2.bf16.msra.mxu0 %v1571
      %1978 = vmatprep.subr.bf16.mxu0 %v1568
      %1979 = vmatpush2.bf16.msra.mxu0 %v1567
      %1980 = vmatprep.subr.bf16.mxu0 %v1564
      %1981 = vmatpush2.bf16.msra.mxu0 %v1563
      %1982 = vmatprep.subr.bf16.mxu0 %v1560
      %1983 = vmatpush2.bf16.msra.mxu0 %v1559
      %1984 = vmatprep.subr.bf16.mxu0 %v1556
      %1985 = vmatpush2.bf16.msra.mxu0 %v1555
      %1986 = vmatprep.subr.bf16.mxu0 %v1552
      %1987 = vmatpush2.bf16.msra.mxu0 %v1551
      %1988 = vmatprep.subr.bf16.mxu0 %v1548
      %1989 = vmatpush2.bf16.msra.mxu0 %v1547
      %1990 = vmatprep.mubr.bf16.mxu0 %v546
      %1991 = vmatmul.mubr.bf16.gmra.mxu0 %v544
      %v1992 = vpop.f32.mrf.mxu0
      %v1993 = vadd.f32 %v1952, %v1992
      %v1994 = vpop.f32.mrf.mxu0
      %v1995 = vadd.f32 %v1954, %v1994
      %v1996 = vpop.f32.mrf.mxu0
      %v1997 = vpop.f32.mrf.mxu0
      %1998 = vdwg.mxu0
      %1999 = vmatprep.subr.bf16.mxu0 %v1354
      %2000 = vmatpush1.bf16.msra.mxu0 %v1353
      %2001 = vmatprep.subr.bf16.mxu0 %v1350
      %2002 = vmatpush1.bf16.msra.mxu0 %v1349
      %2003 = vmatprep.subr.bf16.mxu0 %v1346
      %2004 = vmatpush1.bf16.msra.mxu0 %v1345
      %2005 = vmatprep.subr.bf16.mxu0 %v1342
      %2006 = vmatpush1.bf16.msra.mxu0 %v1341
      %2007 = vmatprep.subr.bf16.mxu0 %v1338
      %2008 = vmatpush1.bf16.msra.mxu0 %v1337
      %2009 = vmatprep.subr.bf16.mxu0 %v1334
      %2010 = vmatpush1.bf16.msra.mxu0 %v1333
      %2011 = vmatprep.subr.bf16.mxu0 %v1330
      %2012 = vmatpush1.bf16.msra.mxu0 %v1329
      %2013 = vmatprep.subr.bf16.mxu0 %v1326
      %2014 = vmatpush1.bf16.msra.mxu0 %v1325
      %2015 = vmatprep.subr.bf16.mxu0 %v1386
      %2016 = vmatpush2.bf16.msra.mxu0 %v1385
      %2017 = vmatprep.subr.bf16.mxu0 %v1382
      %2018 = vmatpush2.bf16.msra.mxu0 %v1381
      %2019 = vmatprep.subr.bf16.mxu0 %v1378
      %2020 = vmatpush2.bf16.msra.mxu0 %v1377
      %2021 = vmatprep.subr.bf16.mxu0 %v1374
      %2022 = vmatpush2.bf16.msra.mxu0 %v1373
      %2023 = vmatprep.subr.bf16.mxu0 %v1370
      %2024 = vmatpush2.bf16.msra.mxu0 %v1369
      %2025 = vmatprep.subr.bf16.mxu0 %v1366
      %2026 = vmatpush2.bf16.msra.mxu0 %v1365
      %2027 = vmatprep.subr.bf16.mxu0 %v1362
      %2028 = vmatpush2.bf16.msra.mxu0 %v1361
      %2029 = vmatprep.subr.bf16.mxu0 %v1358
      %2030 = vmatpush2.bf16.msra.mxu0 %v1357
      %2031 = vmatprep.mubr.bf16.mxu0 %v535
      %2032 = vmatmul.mubr.bf16.gmra.mxu0 %v521
      %v2033 = vpop.f32.mrf.mxu0
      %v2034 = vadd.f32 0.0, %v2033
      %v2035 = vpop.f32.mrf.mxu0
      %v2036 = vadd.f32 0.0, %v2035
      %v2037 = vpop.f32.mrf.mxu0
      %v2038 = vpop.f32.mrf.mxu0
      %2039 = vdwg.mxu0
      %2040 = vmatprep.subr.bf16.mxu0 %v1418
      %2041 = vmatpush1.bf16.msra.mxu0 %v1417
      %2042 = vmatprep.subr.bf16.mxu0 %v1414
      %2043 = vmatpush1.bf16.msra.mxu0 %v1413
      %2044 = vmatprep.subr.bf16.mxu0 %v1410
      %2045 = vmatpush1.bf16.msra.mxu0 %v1409
      %2046 = vmatprep.subr.bf16.mxu0 %v1406
      %2047 = vmatpush1.bf16.msra.mxu0 %v1405
      %2048 = vmatprep.subr.bf16.mxu0 %v1402
      %2049 = vmatpush1.bf16.msra.mxu0 %v1401
      %2050 = vmatprep.subr.bf16.mxu0 %v1398
      %2051 = vmatpush1.bf16.msra.mxu0 %v1397
      %2052 = vmatprep.subr.bf16.mxu0 %v1394
      %2053 = vmatpush1.bf16.msra.mxu0 %v1393
      %2054 = vmatprep.subr.bf16.mxu0 %v1390
      %2055 = vmatpush1.bf16.msra.mxu0 %v1389
      %2056 = vmatprep.subr.bf16.mxu0 %v1450
      %2057 = vmatpush2.bf16.msra.mxu0 %v1449
      %2058 = vmatprep.subr.bf16.mxu0 %v1446
      %2059 = vmatpush2.bf16.msra.mxu0 %v1445
      %2060 = vmatprep.subr.bf16.mxu0 %v1442
      %2061 = vmatpush2.bf16.msra.mxu0 %v1441
      %2062 = vmatprep.subr.bf16.mxu0 %v1438
      %2063 = vmatpush2.bf16.msra.mxu0 %v1437
      %2064 = vmatprep.subr.bf16.mxu0 %v1434
      %2065 = vmatpush2.bf16.msra.mxu0 %v1433
      %2066 = vmatprep.subr.bf16.mxu0 %v1430
      %2067 = vmatpush2.bf16.msra.mxu0 %v1429
      %2068 = vmatprep.subr.bf16.mxu0 %v1426
      %2069 = vmatpush2.bf16.msra.mxu0 %v1425
      %2070 = vmatprep.subr.bf16.mxu0 %v1422
      %2071 = vmatpush2.bf16.msra.mxu0 %v1421
      %2072 = vmatprep.mubr.bf16.mxu0 %v545
      %2073 = vmatmul.mubr.bf16.gmra.mxu0 %v543
      %v2074 = vpop.f32.mrf.mxu0
      %v2075 = vadd.f32 %v2034, %v2074
      %v2076 = vpop.f32.mrf.mxu0
      %v2077 = vadd.f32 %v2036, %v2076
      %v2078 = vpop.f32.mrf.mxu0
      %v2079 = vpop.f32.mrf.mxu0
      %2080 = vdwg.mxu0
      %2081 = vmatprep.subr.bf16.mxu0 %v1482
      %2082 = vmatpush1.bf16.msra.mxu0 %v1481
      %2083 = vmatprep.subr.bf16.mxu0 %v1478
      %2084 = vmatpush1.bf16.msra.mxu0 %v1477
      %2085 = vmatprep.subr.bf16.mxu0 %v1474
      %2086 = vmatpush1.bf16.msra.mxu0 %v1473
      %2087 = vmatprep.subr.bf16.mxu0 %v1470
      %2088 = vmatpush1.bf16.msra.mxu0 %v1469
      %2089 = vmatprep.subr.bf16.mxu0 %v1466
      %2090 = vmatpush1.bf16.msra.mxu0 %v1465
      %2091 = vmatprep.subr.bf16.mxu0 %v1462
      %2092 = vmatpush1.bf16.msra.mxu0 %v1461
      %2093 = vmatprep.subr.bf16.mxu0 %v1458
      %2094 = vmatpush1.bf16.msra.mxu0 %v1457
      %2095 = vmatprep.subr.bf16.mxu0 %v1454
      %2096 = vmatpush1.bf16.msra.mxu0 %v1453
      %2097 = vmatprep.subr.bf16.mxu0 %v1514
      %2098 = vmatpush2.bf16.msra.mxu0 %v1513
      %2099 = vmatprep.subr.bf16.mxu0 %v1510
      %2100 = vmatpush2.bf16.msra.mxu0 %v1509
      %2101 = vmatprep.subr.bf16.mxu0 %v1506
      %2102 = vmatpush2.bf16.msra.mxu0 %v1505
      %2103 = vmatprep.subr.bf16.mxu0 %v1502
      %2104 = vmatpush2.bf16.msra.mxu0 %v1501
      %2105 = vmatprep.subr.bf16.mxu0 %v1498
      %2106 = vmatpush2.bf16.msra.mxu0 %v1497
      %2107 = vmatprep.subr.bf16.mxu0 %v1494
      %2108 = vmatpush2.bf16.msra.mxu0 %v1493
      %2109 = vmatprep.subr.bf16.mxu0 %v1490
      %2110 = vmatpush2.bf16.msra.mxu0 %v1489
      %2111 = vmatprep.subr.bf16.mxu0 %v1486
      %2112 = vmatpush2.bf16.msra.mxu0 %v1485
      %2113 = vmatprep.mubr.bf16.mxu0 %v542
      %2114 = vmatmul.mubr.bf16.gmra.mxu0 %v528
      %v2115 = vpop.f32.mrf.mxu0
      %v2116 = vadd.f32 %v2075, %v2115
      %v2117 = vpop.f32.mrf.mxu0
      %v2118 = vadd.f32 %v2077, %v2117
      %v2119 = vpop.f32.mrf.mxu0
      %v2120 = vpop.f32.mrf.mxu0
      %2121 = vdwg.mxu0
      %2122 = vmatprep.subr.bf16.mxu0 %v1546
      %2123 = vmatpush1.bf16.msra.mxu0 %v1545
      %2124 = vmatprep.subr.bf16.mxu0 %v1542
      %2125 = vmatpush1.bf16.msra.mxu0 %v1541
      %2126 = vmatprep.subr.bf16.mxu0 %v1538
      %2127 = vmatpush1.bf16.msra.mxu0 %v1537
      %2128 = vmatprep.subr.bf16.mxu0 %v1534
      %2129 = vmatpush1.bf16.msra.mxu0 %v1533
      %2130 = vmatprep.subr.bf16.mxu0 %v1530
      %2131 = vmatpush1.bf16.msra.mxu0 %v1529
      %2132 = vmatprep.subr.bf16.mxu0 %v1526
      %2133 = vmatpush1.bf16.msra.mxu0 %v1525
      %2134 = vmatprep.subr.bf16.mxu0 %v1522
      %2135 = vmatpush1.bf16.msra.mxu0 %v1521
      %2136 = vmatprep.subr.bf16.mxu0 %v1518
      %2137 = vmatpush1.bf16.msra.mxu0 %v1517
      %2138 = vmatprep.subr.bf16.mxu0 %v1578
      %2139 = vmatpush2.bf16.msra.mxu0 %v1577
      %2140 = vmatprep.subr.bf16.mxu0 %v1574
      %2141 = vmatpush2.bf16.msra.mxu0 %v1573
      %2142 = vmatprep.subr.bf16.mxu0 %v1570
      %2143 = vmatpush2.bf16.msra.mxu0 %v1569
      %2144 = vmatprep.subr.bf16.mxu0 %v1566
      %2145 = vmatpush2.bf16.msra.mxu0 %v1565
      %2146 = vmatprep.subr.bf16.mxu0 %v1562
      %2147 = vmatpush2.bf16.msra.mxu0 %v1561
      %2148 = vmatprep.subr.bf16.mxu0 %v1558
      %2149 = vmatpush2.bf16.msra.mxu0 %v1557
      %2150 = vmatprep.subr.bf16.mxu0 %v1554
      %2151 = vmatpush2.bf16.msra.mxu0 %v1553
      %2152 = vmatprep.subr.bf16.mxu0 %v1550
      %2153 = vmatpush2.bf16.msra.mxu0 %v1549
      %2154 = vmatprep.mubr.bf16.mxu0 %v546
      %2155 = vmatmul.mubr.bf16.gmra.mxu0 %v544
      %v2156 = vpop.f32.mrf.mxu0
      %v2157 = vadd.f32 %v2116, %v2156
      %v2158 = vpop.f32.mrf.mxu0
      %v2159 = vadd.f32 %v2118, %v2158
      %v2160 = vpop.f32.mrf.mxu0
      %v2161 = vpop.f32.mrf.mxu0
      %2162 = vdwg.mxu0
      %v2167 = vcombine.low %v1993, %v1995
      %v2168 = vcombine.low %v2157, %v2159
      %v2170 = vunpack.c.l.s4 1983009808
      %v2171 = vunpack.c.0.s8 %v2170
      %v2172 = vlaneseq
      %v2173 = vshrl.u32 %v2172, 7
      %v2174 = vsub.s32 %v2171, %v2173
      %v2175 = vrot.slane %v2167, %v2174
      %v2177 = vunpack.c.l.s4 1983009808
      %v2178 = vunpack.c.0.s8 %v2177
      %v2179 = vlaneseq
      %v2180 = vshrl.u32 %v2179, 7
      %v2181 = vsub.s32 %v2178, %v2180
      %v2182 = vrot.slane %v2168, %v2181
      %v2183 = vcombine.low %v2175, %v2182
      %v2185 = vadd.f32 %v239, %v2183
      %2186 = vst [vmem:[#allocation2] sm:$0xff] %v2185
      %p2187 = scmp.eq.s32.totalorder %s20, 3
      // Predicated region
      $region33: #{patchgan_forward.12} parent=27 // pred_check
        %p2188 = pneg %p2187
      $region34: #{patchgan_forward.12} parent=27 // pred_check_branch
        %2190 = sbr.rel (%p2188) target = $region36
      $region35: #{patchgan_forward.12} parent=27 // pred_region
        %v2191 = vld [vmem:[#allocation2] sm:$0xff]
        %2192 = vst [vmem:[%s228] sm:$0xff] %v2191
        %v2194 = vcombine.high %v2191, %v2191
        %v2196 = vunpack.c.l.s4 1983009808
        %v2197 = vunpack.c.0.s8 %v2196
        %v2198 = vlaneseq
        %v2199 = vshrl.u32 %v2198, 7
        %v2200 = vsub.s32 %v2197, %v2199
        %v2201 = vrot.slane %v2191, %v2200
        %v2203 = vunpack.c.l.s4 1983009808
        %v2204 = vunpack.c.0.s8 %v2203
        %v2205 = vlaneseq
        %v2206 = vshrl.u32 %v2205, 7
        %v2207 = vsub.s32 %v2204, %v2206
        %v2208 = vrot.slane %v2194, %v2207
        %v2209 = vcombine.high %v2201, %v2201
        %v2210 = vcombine.high %v2208, %v2208
        %vm2215 = vcmask 1041408
        %v2216 = vsel %vm2215, %v2201, 0.0
        %v2217 = vrot.slane %v2216, 4
        %v2218 = vadd.f32 %v2216, %v2217
        %v2219 = vrot.slane %v2218, 2
        %v2220 = vadd.f32 %v2218, %v2219
        %v2221 = vrot.slane %v2220, 1
        %v2222 = vadd.f32 %v2220, %v2221
        %v2223 = vsel %vm2215, %v2209, 0.0
        %v2224 = vrot.slane %v2223, 4
        %v2225 = vadd.f32 %v2223, %v2224
        %v2226 = vrot.slane %v2225, 2
        %v2227 = vadd.f32 %v2225, %v2226
        %v2228 = vrot.slane %v2227, 1
        %v2229 = vadd.f32 %v2227, %v2228
        %v2230 = vsel %vm2215, %v2208, 0.0
        %v2231 = vrot.slane %v2230, 4
        %v2232 = vadd.f32 %v2230, %v2231
        %v2233 = vrot.slane %v2232, 2
        %v2234 = vadd.f32 %v2232, %v2233
        %v2235 = vrot.slane %v2234, 1
        %v2236 = vadd.f32 %v2234, %v2235
        %v2237 = vsel %vm2215, %v2210, 0.0
        %v2238 = vrot.slane %v2237, 4
        %v2239 = vadd.f32 %v2237, %v2238
        %v2240 = vrot.slane %v2239, 2
        %v2241 = vadd.f32 %v2239, %v2240
        %v2242 = vrot.slane %v2241, 1
        %v2243 = vadd.f32 %v2241, %v2242
        %v2244 = vmul.f32 %v2191, %v2191
        %v2246 = vcombine.high %v2244, %v2244
        %v2248 = vunpack.c.l.s4 1983009808
        %v2249 = vunpack.c.0.s8 %v2248
        %v2250 = vlaneseq
        %v2251 = vshrl.u32 %v2250, 7
        %v2252 = vsub.s32 %v2249, %v2251
        %v2253 = vrot.slane %v2244, %v2252
        %v2255 = vunpack.c.l.s4 1983009808
        %v2256 = vunpack.c.0.s8 %v2255
        %v2257 = vlaneseq
        %v2258 = vshrl.u32 %v2257, 7
        %v2259 = vsub.s32 %v2256, %v2258
        %v2260 = vrot.slane %v2246, %v2259
        %v2261 = vcombine.high %v2253, %v2253
        %v2262 = vcombine.high %v2260, %v2260
        %v2267 = vsel %vm2215, %v2253, 0.0
        %v2268 = vrot.slane %v2267, 4
        %v2269 = vadd.f32 %v2267, %v2268
        %v2270 = vrot.slane %v2269, 2
        %v2271 = vadd.f32 %v2269, %v2270
        %v2272 = vrot.slane %v2271, 1
        %v2273 = vadd.f32 %v2271, %v2272
        %v2274 = vsel %vm2215, %v2261, 0.0
        %v2275 = vrot.slane %v2274, 4
        %v2276 = vadd.f32 %v2274, %v2275
        %v2277 = vrot.slane %v2276, 2
        %v2278 = vadd.f32 %v2276, %v2277
        %v2279 = vrot.slane %v2278, 1
        %v2280 = vadd.f32 %v2278, %v2279
        %v2281 = vsel %vm2215, %v2260, 0.0
        %v2282 = vrot.slane %v2281, 4
        %v2283 = vadd.f32 %v2281, %v2282
        %v2284 = vrot.slane %v2283, 2
        %v2285 = vadd.f32 %v2283, %v2284
        %v2286 = vrot.slane %v2285, 1
        %v2287 = vadd.f32 %v2285, %v2286
        %v2288 = vsel %vm2215, %v2262, 0.0
        %v2289 = vrot.slane %v2288, 4
        %v2290 = vadd.f32 %v2288, %v2289
        %v2291 = vrot.slane %v2290, 2
        %v2292 = vadd.f32 %v2290, %v2291
        %v2293 = vrot.slane %v2292, 1
        %v2294 = vadd.f32 %v2292, %v2293
        %vm2295 = vcmask 1040384
        %v2296 = vsel %vm2295, %v2222, %v2273
        %v2297 = vsel %vm2295, %v2229, %v2280
        %v2298 = vsel %vm2295, %v2236, %v2287
        %v2299 = vsel %vm2295, %v2243, %v2294
        %v2304 = vcombine.low %v2296, %v2297
        %v2305 = vcombine.low %v2298, %v2299
        %v2307 = vunpack.c.l.s4 1983009808
        %v2308 = vunpack.c.0.s8 %v2307
        %v2309 = vlaneseq
        %v2310 = vshrl.u32 %v2309, 7
        %v2311 = vsub.s32 %v2308, %v2310
        %v2312 = vrot.slane %v2304, %v2311
        %v2314 = vunpack.c.l.s4 1983009808
        %v2315 = vunpack.c.0.s8 %v2314
        %v2316 = vlaneseq
        %v2317 = vshrl.u32 %v2316, 7
        %v2318 = vsub.s32 %v2315, %v2317
        %v2319 = vrot.slane %v2305, %v2318
        %v2320 = vcombine.low %v2312, %v2319
        %2322 = vst [vmem:[%s233] sm:$0xff] %v2320
      $region36: #{patchgan_forward.12} parent=27 // pred_fallthru
        _
      %p2323 = scmp.lt.s32.totalorder %s19, 0
      %s2324 = scalar_select %p2323, %s19, 0
      %s2325 = smul.addr %s2324, 4
      %s2326 = smul.addr %s2325, 2
      %s2327 = scalar_lea.vmem %s2, %s2326
      %p2328 = scmp.lt.s32.totalorder %s19, 0
      %s2329 = scalar_select %p2328, %s19, 0
      %s2330 = smul.addr %s2329, 4
      %s2331 = smul.addr %s2330, 2
      %s2332 = scalar_lea.vmem %s3, %s2331
      // Predicated region
      $region37: #{patchgan_forward.12} parent=27 // pred_check
        %p2333 = pneg %p99
      $region38: #{patchgan_forward.12} parent=27 // pred_check_branch
        %2335 = sbr.rel (%p2333) target = $region40
      $region39: #{patchgan_forward.12} parent=27 // pred_region
        _
      $region40: #{patchgan_forward.12} parent=27 // pred_fallthru
        _
      // Predicated region
      $region41: #{patchgan_forward.12} parent=27 // pred_check
        %p2336 = pneg %p125
      $region42: #{patchgan_forward.12} parent=27 // pred_check_branch
        %2338 = sbr.rel (%p2336) target = $region44
      $region43: #{patchgan_forward.12} parent=27 // pred_region
        _
      $region44: #{patchgan_forward.12} parent=27 // pred_fallthru
        _
      // Predicated region
      $region45: #{patchgan_forward.12} parent=27 // pred_check
        %p2339 = pneg %p99
      $region46: #{patchgan_forward.12} parent=27 // pred_check_branch
        %2341 = sbr.rel (%p2339) target = $region48
      $region47: #{patchgan_forward.12} parent=27 // pred_region
        %p2342 = scmp.lt.s32.totalorder %s19, 0
        %s2343 = scalar_select %p2342, %s19, 0
        %s2344 = smul.addr %s2343, 4
        %s2345 = smul.addr %s2344, 2
        %s2346 = scalar_lea.vmem %s2, %s2345
      $region48: #{patchgan_forward.12} parent=27 // pred_fallthru
        _
      // Predicated region
      $region49: #{patchgan_forward.12} parent=27 // pred_check
        %p2347 = pneg %p125
      $region50: #{patchgan_forward.12} parent=27 // pred_check_branch
        %2349 = sbr.rel (%p2347) target = $region52
      $region51: #{patchgan_forward.12} parent=27 // pred_region
        %p2350 = scmp.lt.s32.totalorder %s19, 0
        %s2351 = scalar_select %p2350, %s19, 0
        %s2352 = smul.addr %s2351, 4
        %s2353 = smul.addr %s2352, 2
        %s2354 = scalar_lea.vmem %s3, %s2353
      $region52: #{patchgan_forward.12} parent=27 // pred_fallthru
        _
    $region28: #{patchgan_forward.12} parent=5 // pred_fallthru
      _
    %p2355 = scmp.le.s32.totalorder 2, %s10
    // Predicated region
    $region53: #{patchgan_forward.12} parent=5 // pred_check
      %p2356 = pneg %p2355
    $region54: #{patchgan_forward.12} parent=5 // pred_check_branch
      %2358 = sbr.rel (%p2356) target = $region56
    $region55: #{patchgan_forward.12} parent=5 // pred_region
      %s2359 = ssub.s32 %s10, 2
    $region56: #{patchgan_forward.12} parent=5 // pred_fallthru
      _
  $region6: #{patchgan_forward.12} parent=0 // loop_footer
    %s14 = sadd.s32 1, %s10
  $region7: #{patchgan_forward.12} parent=0 // loop_footer_branch
    %9 = sbr.rel target = $region3
  $region8: #{patchgan_forward.12} parent=0 // loop_exit
    _

// kernel: patchgan_forward.13
$region0: #{patchgan_forward.13}
  #allocation0 [shape = 'u32[]', space=smem, size = 0x4, offset = 0x4, fixed_abs, tag = 'smem constant byte address 0x4 - core index']
  #allocation1 [shape = 'u32[144,128]{1,0:T(1,128)}', space=vmem, size = 0x12000, scoped, tag = 'internal scratch']
  %s0 = inlined_call_operand.vmem [shape: f32[2,512], index: 0, kind: input, shape index: {}]
  %s1 = inlined_call_operand.vmem [shape: f32[1,2,512], index: 1, kind: input, shape index: {}]
  %s2 = inlined_call_operand.vmem [shape: f32[1,512], index: 2, kind: input, shape index: {}]
  %s3 = inlined_call_operand.vmem [shape: f32[1,512], index: 3, kind: input, shape index: {}]
  %s4 = inlined_call_operand.vmem [shape: bf16[512,128], index: 4, kind: input, shape index: {}]
  %s5 = inlined_call_operand.vmem [shape: f32[1,128], index: 5, kind: input, shape index: {}]
  %s6 = inlined_call_operand.vmem [shape: f32[2,128], index: 6, kind: output, shape index: {}]
  %s7 = sld [smem:[#allocation0]]
  $region34: #{patchgan_forward.13} parent=0
    _
  %s9 = ssub.s32 1, %s7
  %s10 = scalar_select 0, %s9, %s7
  // Predicated region
  $region2: #{patchgan_forward.13} parent=0 // pred_check
    _
  $region3: #{patchgan_forward.13} parent=0 // pred_check_branch
    %12 = sbr.rel (0) target = $region5
  $region4: #{patchgan_forward.13} parent=0 // pred_region
    _
  $region5: #{patchgan_forward.13} parent=0 // pred_fallthru
    _
  // Predicated region
  $region6: #{patchgan_forward.13} parent=0 // pred_check
    _
  $region7: #{patchgan_forward.13} parent=0 // pred_check_branch
    %14 = sbr.rel (0) target = $region9
  $region8: #{patchgan_forward.13} parent=0 // pred_region
    _
  $region9: #{patchgan_forward.13} parent=0 // pred_fallthru
    _
  // Predicated region
  $region10: #{patchgan_forward.13} parent=0 // pred_check
    _
  $region11: #{patchgan_forward.13} parent=0 // pred_check_branch
    %16 = sbr.rel (0) target = $region13
  $region12: #{patchgan_forward.13} parent=0 // pred_region
    _
  $region13: #{patchgan_forward.13} parent=0 // pred_fallthru
    _
  // Predicated region
  $region14: #{patchgan_forward.13} parent=0 // pred_check
    _
  $region15: #{patchgan_forward.13} parent=0 // pred_check_branch
    %18 = sbr.rel (0) target = $region17
  $region16: #{patchgan_forward.13} parent=0 // pred_region
    _
  $region17: #{patchgan_forward.13} parent=0 // pred_fallthru
    _
  // Predicated region
  $region18: #{patchgan_forward.13} parent=0 // pred_check
    _
  $region19: #{patchgan_forward.13} parent=0 // pred_check_branch
    %20 = sbr.rel (0) target = $region21
  $region20: #{patchgan_forward.13} parent=0 // pred_region
    _
  $region21: #{patchgan_forward.13} parent=0 // pred_fallthru
    _
  // Predicated region
  $region22: #{patchgan_forward.13} parent=0 // pred_check
    _
  $region23: #{patchgan_forward.13} parent=0 // pred_check_branch
    %22 = sbr.rel (0) target = $region25
  $region24: #{patchgan_forward.13} parent=0 // pred_region
    _
  $region25: #{patchgan_forward.13} parent=0 // pred_fallthru
    _
  %v24 = vld [vmem:[%s1] sm:$0xff]
  %v25 = vadd.f32 %v24, 0.0
  %v26 = vmul.f32 %v25, 0.5
  %v27 = vmul.f32 %v26, %v26
  %v29 = vrot.slane %v27, 7
  %v31 = vsub.f32 %v26, %v29
  %v32 = vadd.f32 %v31, 1e-05
  %v33 = vrsqrt.pop %v32
  %v34 = vld [vmem:[%s2] sm:$0xf]
  %v37 = vunpack.c.l.s4 1966171168
  %v38 = vunpack.c.0.s8 %v37
  %v39 = vlaneseq
  %v40 = vshrl.u32 %v39, 7
  %v41 = vsub.s32 %v38, %v40
  %v42 = vrot.slane %v33, %v41
  %v43 = vcombine.high %v42, %v42
  %v45 = vmul.f32 %v34, %v43
  %v46 = vld [vmem:[%s3] sm:$0xf]
  %v49 = vunpack.c.l.s4 857870592
  %v50 = vunpack.c.0.s8 %v49
  %v51 = vlaneseq
  %v52 = vshrl.u32 %v51, 7
  %v53 = vsub.s32 %v50, %v52
  %v54 = vrot.slane %v45, %v53
  %v56 = vmul.f32 %v26, %v54
  %v59 = vunpack.c.l.s4 1966171168
  %v60 = vunpack.c.0.s8 %v59
  %v61 = vlaneseq
  %v62 = vshrl.u32 %v61, 7
  %v63 = vsub.s32 %v60, %v62
  %v64 = vrot.slane %v56, %v63
  %v66 = vsub.f32 %v46, %v64
  %v67 = vld [vmem:[%s0] sm:$0xff]
  %v68 = vlaneseq
  %v69 = vshrl.u32 %v68, 7
  %v70 = vsub.s32 0, %v69
  %v71 = vrot.slane %v45, %v70
  %v72 = vlaneseq
  %v73 = vshrl.u32 %v72, 7
  %v74 = vsub.s32 1, %v73
  %v75 = vrot.slane %v45, %v74
  %v76 = vlaneseq
  %v77 = vshrl.u32 %v76, 7
  %v78 = vsub.s32 2, %v77
  %v79 = vrot.slane %v45, %v78
  %v80 = vlaneseq
  %v81 = vshrl.u32 %v80, 7
  %v82 = vsub.s32 3, %v81
  %v83 = vrot.slane %v45, %v82
  %v84 = vcombine.low %v71, %v75
  %v85 = vcombine.low %v79, %v83
  %v87 = vunpack.c.l.s4 1983009808
  %v88 = vunpack.c.0.s8 %v87
  %v89 = vlaneseq
  %v90 = vshrl.u32 %v89, 7
  %v91 = vsub.s32 %v88, %v90
  %v92 = vrot.slane %v84, %v91
  %v94 = vunpack.c.l.s4 1983009808
  %v95 = vunpack.c.0.s8 %v94
  %v96 = vlaneseq
  %v97 = vshrl.u32 %v96, 7
  %v98 = vsub.s32 %v95, %v97
  %v99 = vrot.slane %v85, %v98
  %v100 = vcombine.low %v92, %v99
  %v102 = vmul.f32 %v67, %v100
  %v104 = vlaneseq
  %v105 = vshrl.u32 %v104, 7
  %v106 = vsub.s32 0, %v105
  %v107 = vrot.slane %v66, %v106
  %v108 = vlaneseq
  %v109 = vshrl.u32 %v108, 7
  %v110 = vsub.s32 1, %v109
  %v111 = vrot.slane %v66, %v110
  %v112 = vlaneseq
  %v113 = vshrl.u32 %v112, 7
  %v114 = vsub.s32 2, %v113
  %v115 = vrot.slane %v66, %v114
  %v116 = vlaneseq
  %v117 = vshrl.u32 %v116, 7
  %v118 = vsub.s32 3, %v117
  %v119 = vrot.slane %v66, %v118
  %v120 = vcombine.low %v107, %v111
  %v121 = vcombine.low %v115, %v119
  %v123 = vunpack.c.l.s4 1983009808
  %v124 = vunpack.c.0.s8 %v123
  %v125 = vlaneseq
  %v126 = vshrl.u32 %v125, 7
  %v127 = vsub.s32 %v124, %v126
  %v128 = vrot.slane %v120, %v127
  %v130 = vunpack.c.l.s4 1983009808
  %v131 = vunpack.c.0.s8 %v130
  %v132 = vlaneseq
  %v133 = vshrl.u32 %v132, 7
  %v134 = vsub.s32 %v131, %v133
  %v135 = vrot.slane %v121, %v134
  %v136 = vcombine.low %v128, %v135
  %v138 = vadd.f32 %v102, %v136
  %v139 = vmul.f32 %v138, 0.2
  %v140 = vmax.f32 %v138, %v139
  %v142 = vcombine.high %v140, %v140
  %v144 = vunpack.c.l.s4 1983009808
  %v145 = vunpack.c.0.s8 %v144
  %v146 = vlaneseq
  %v147 = vshrl.u32 %v146, 7
  %v148 = vsub.s32 %v145, %v147
  %v149 = vrot.slane %v140, %v148
  %v151 = vunpack.c.l.s4 1983009808
  %v152 = vunpack.c.0.s8 %v151
  %v153 = vlaneseq
  %v154 = vshrl.u32 %v153, 7
  %v155 = vsub.s32 %v152, %v154
  %v156 = vrot.slane %v142, %v155
  %v157 = vcombine.high %v149, %v149
  %v158 = vcombine.high %v156, %v156
  %v163 = vpack.c.bf16 %v149, %v149
  %v164 = vpack.c.bf16 %v157, %v157
  %v165 = vpack.c.bf16 %v156, %v156
  %v166 = vpack.c.bf16 %v158, %v158
  %v167 = vld [vmem:[%s4] sm:$0xf]
  %v168 = vld [vmem:[%s4 + $0x4] sm:$0xf]
  %v169 = vld [vmem:[%s4 + $0x8] sm:$0xf]
  %v170 = vld [vmem:[%s4 + $0xc] sm:$0xf]
  %v171 = vld [vmem:[%s4 + $0x10] sm:$0xf]
  %v172 = vld [vmem:[%s4 + $0x14] sm:$0xf]
  %v173 = vld [vmem:[%s4 + $0x18] sm:$0xf]
  %v174 = vld [vmem:[%s4 + $0x1c] sm:$0xf]
  %v175 = vld [vmem:[%s4 + $0x20] sm:$0xf]
  %v176 = vld [vmem:[%s4 + $0x24] sm:$0xf]
  %v177 = vld [vmem:[%s4 + $0x28] sm:$0xf]
  %v178 = vld [vmem:[%s4 + $0x2c] sm:$0xf]
  %v179 = vld [vmem:[%s4 + $0x30] sm:$0xf]
  %v180 = vld [vmem:[%s4 + $0x34] sm:$0xf]
  %v181 = vld [vmem:[%s4 + $0x38] sm:$0xf]
  %v182 = vld [vmem:[%s4 + $0x3c] sm:$0xf]
  %v183 = vld [vmem:[%s4 + $0x40] sm:$0xf]
  %v184 = vld [vmem:[%s4 + $0x44] sm:$0xf]
  %v185 = vld [vmem:[%s4 + $0x48] sm:$0xf]
  %v186 = vld [vmem:[%s4 + $0x4c] sm:$0xf]
  %v187 = vld [vmem:[%s4 + $0x50] sm:$0xf]
  %v188 = vld [vmem:[%s4 + $0x54] sm:$0xf]
  %v189 = vld [vmem:[%s4 + $0x58] sm:$0xf]
  %v190 = vld [vmem:[%s4 + $0x5c] sm:$0xf]
  %v191 = vld [vmem:[%s4 + $0x60] sm:$0xf]
  %v192 = vld [vmem:[%s4 + $0x64] sm:$0xf]
  %v193 = vld [vmem:[%s4 + $0x68] sm:$0xf]
  %v194 = vld [vmem:[%s4 + $0x6c] sm:$0xf]
  %v195 = vld [vmem:[%s4 + $0x70] sm:$0xf]
  %v196 = vld [vmem:[%s4 + $0x74] sm:$0xf]
  %v197 = vld [vmem:[%s4 + $0x78] sm:$0xf]
  %v198 = vld [vmem:[%s4 + $0x7c] sm:$0xf]
  %v199 = vld [vmem:[%s4 + $0x80] sm:$0xf]
  %v200 = vld [vmem:[%s4 + $0x84] sm:$0xf]
  %v201 = vld [vmem:[%s4 + $0x88] sm:$0xf]
  %v202 = vld [vmem:[%s4 + $0x8c] sm:$0xf]
  %v203 = vld [vmem:[%s4 + $0x90] sm:$0xf]
  %v204 = vld [vmem:[%s4 + $0x94] sm:$0xf]
  %v205 = vld [vmem:[%s4 + $0x98] sm:$0xf]
  %v206 = vld [vmem:[%s4 + $0x9c] sm:$0xf]
  %v207 = vld [vmem:[%s4 + $0xa0] sm:$0xf]
  %v208 = vld [vmem:[%s4 + $0xa4] sm:$0xf]
  %v209 = vld [vmem:[%s4 + $0xa8] sm:$0xf]
  %v210 = vld [vmem:[%s4 + $0xac] sm:$0xf]
  %v211 = vld [vmem:[%s4 + $0xb0] sm:$0xf]
  %v212 = vld [vmem:[%s4 + $0xb4] sm:$0xf]
  %v213 = vld [vmem:[%s4 + $0xb8] sm:$0xf]
  %v214 = vld [vmem:[%s4 + $0xbc] sm:$0xf]
  %v215 = vld [vmem:[%s4 + $0xc0] sm:$0xf]
  %v216 = vld [vmem:[%s4 + $0xc4] sm:$0xf]
  %v217 = vld [vmem:[%s4 + $0xc8] sm:$0xf]
  %v218 = vld [vmem:[%s4 + $0xcc] sm:$0xf]
  %v219 = vld [vmem:[%s4 + $0xd0] sm:$0xf]
  %v220 = vld [vmem:[%s4 + $0xd4] sm:$0xf]
  %v221 = vld [vmem:[%s4 + $0xd8] sm:$0xf]
  %v222 = vld [vmem:[%s4 + $0xdc] sm:$0xf]
  %v223 = vld [vmem:[%s4 + $0xe0] sm:$0xf]
  %v224 = vld [vmem:[%s4 + $0xe4] sm:$0xf]
  %v225 = vld [vmem:[%s4 + $0xe8] sm:$0xf]
  %v226 = vld [vmem:[%s4 + $0xec] sm:$0xf]
  %v227 = vld [vmem:[%s4 + $0xf0] sm:$0xf]
  %v228 = vld [vmem:[%s4 + $0xf4] sm:$0xf]
  %v229 = vld [vmem:[%s4 + $0xf8] sm:$0xf]
  %v230 = vld [vmem:[%s4 + $0xfc] sm:$0xf]
  %v231 = vld [vmem:[%s5] sm:$0x1]
  %v233 = vlaneseq
  %v234 = vshrl.u32 %v233, 7
  %v235 = vsub.s32 0, %v234
  %v236 = vrot.slane %v231, %v235
  %v302 = vunpack.c.l.b16 %v167
  %v303 = vunpack.c.l.b16 %v168
  %v304 = vunpack.c.l.b16 %v169
  %v305 = vunpack.c.l.b16 %v170
  %v306 = vunpack.c.l.b16 %v171
  %v307 = vunpack.c.l.b16 %v172
  %v308 = vunpack.c.l.b16 %v173
  %v309 = vunpack.c.l.b16 %v174
  %v310 = vunpack.c.l.b16 %v175
  %v311 = vunpack.c.l.b16 %v176
  %v312 = vunpack.c.l.b16 %v177
  %v313 = vunpack.c.l.b16 %v178
  %v314 = vunpack.c.l.b16 %v179
  %v315 = vunpack.c.l.b16 %v180
  %v316 = vunpack.c.l.b16 %v181
  %v317 = vunpack.c.l.b16 %v182
  %v318 = vunpack.c.l.b16 %v183
  %v319 = vunpack.c.l.b16 %v184
  %v320 = vunpack.c.l.b16 %v185
  %v321 = vunpack.c.l.b16 %v186
  %v322 = vunpack.c.l.b16 %v187
  %v323 = vunpack.c.l.b16 %v188
  %v324 = vunpack.c.l.b16 %v189
  %v325 = vunpack.c.l.b16 %v190
  %v326 = vunpack.c.l.b16 %v191
  %v327 = vunpack.c.l.b16 %v192
  %v328 = vunpack.c.l.b16 %v193
  %v329 = vunpack.c.l.b16 %v194
  %v330 = vunpack.c.l.b16 %v195
  %v331 = vunpack.c.l.b16 %v196
  %v332 = vunpack.c.l.b16 %v197
  %v333 = vunpack.c.l.b16 %v198
  %v334 = vunpack.c.l.b16 %v199
  %v335 = vunpack.c.l.b16 %v200
  %v336 = vunpack.c.l.b16 %v201
  %v337 = vunpack.c.l.b16 %v202
  %v338 = vunpack.c.l.b16 %v203
  %v339 = vunpack.c.l.b16 %v204
  %v340 = vunpack.c.l.b16 %v205
  %v341 = vunpack.c.l.b16 %v206
  %v342 = vunpack.c.l.b16 %v207
  %v343 = vunpack.c.l.b16 %v208
  %v344 = vunpack.c.l.b16 %v209
  %v345 = vunpack.c.l.b16 %v210
  %v346 = vunpack.c.l.b16 %v211
  %v347 = vunpack.c.l.b16 %v212
  %v348 = vunpack.c.l.b16 %v213
  %v349 = vunpack.c.l.b16 %v214
  %v350 = vunpack.c.l.b16 %v215
  %v351 = vunpack.c.l.b16 %v216
  %v352 = vunpack.c.l.b16 %v217
  %v353 = vunpack.c.l.b16 %v218
  %v354 = vunpack.c.l.b16 %v219
  %v355 = vunpack.c.l.b16 %v220
  %v356 = vunpack.c.l.b16 %v221
  %v357 = vunpack.c.l.b16 %v222
  %v358 = vunpack.c.l.b16 %v223
  %v359 = vunpack.c.l.b16 %v224
  %v360 = vunpack.c.l.b16 %v225
  %v361 = vunpack.c.l.b16 %v226
  %v362 = vunpack.c.l.b16 %v227
  %v363 = vunpack.c.l.b16 %v228
  %v364 = vunpack.c.l.b16 %v229
  %v365 = vunpack.c.l.b16 %v230
  %v366 = vpack.c.b16 %v303, %v302
  %v367 = vpack.c.b16 %v305, %v304
  %v368 = vpack.c.b16 %v307, %v306
  %v369 = vpack.c.b16 %v309, %v308
  %v370 = vpack.c.b16 %v311, %v310
  %v371 = vpack.c.b16 %v313, %v312
  %v372 = vpack.c.b16 %v315, %v314
  %v373 = vpack.c.b16 %v317, %v316
  %v374 = vpack.c.b16 %v319, %v318
  %v375 = vpack.c.b16 %v321, %v320
  %v376 = vpack.c.b16 %v323, %v322
  %v377 = vpack.c.b16 %v325, %v324
  %v378 = vpack.c.b16 %v327, %v326
  %v379 = vpack.c.b16 %v329, %v328
  %v380 = vpack.c.b16 %v331, %v330
  %v381 = vpack.c.b16 %v333, %v332
  %v382 = vpack.c.b16 %v335, %v334
  %v383 = vpack.c.b16 %v337, %v336
  %v384 = vpack.c.b16 %v339, %v338
  %v385 = vpack.c.b16 %v341, %v340
  %v386 = vpack.c.b16 %v343, %v342
  %v387 = vpack.c.b16 %v345, %v344
  %v388 = vpack.c.b16 %v347, %v346
  %v389 = vpack.c.b16 %v349, %v348
  %v390 = vpack.c.b16 %v351, %v350
  %v391 = vpack.c.b16 %v353, %v352
  %v392 = vpack.c.b16 %v355, %v354
  %v393 = vpack.c.b16 %v357, %v356
  %v394 = vpack.c.b16 %v359, %v358
  %v395 = vpack.c.b16 %v361, %v360
  %v396 = vpack.c.b16 %v363, %v362
  %v397 = vpack.c.b16 %v365, %v364
  %430 = vmatprep.subr.bf16.mxu0 0
  %431 = vmatpush1.bf16.msra.mxu0 %v373
  %432 = vmatprep.subr.bf16.mxu0 0
  %433 = vmatpush1.bf16.msra.mxu0 %v372
  %434 = vmatprep.subr.bf16.mxu0 0
  %435 = vmatpush1.bf16.msra.mxu0 %v371
  %436 = vmatprep.subr.bf16.mxu0 0
  %437 = vmatpush1.bf16.msra.mxu0 %v370
  %438 = vmatprep.subr.bf16.mxu0 0
  %439 = vmatpush1.bf16.msra.mxu0 %v369
  %440 = vmatprep.subr.bf16.mxu0 0
  %441 = vmatpush1.bf16.msra.mxu0 %v368
  %442 = vmatprep.subr.bf16.mxu0 0
  %443 = vmatpush1.bf16.msra.mxu0 %v367
  %444 = vmatprep.subr.bf16.mxu0 0
  %445 = vmatpush1.bf16.msra.mxu0 %v366
  %446 = vmatprep.subr.bf16.mxu0 0
  %447 = vmatpush2.bf16.msra.mxu0 %v381
  %448 = vmatprep.subr.bf16.mxu0 0
  %449 = vmatpush2.bf16.msra.mxu0 %v380
  %450 = vmatprep.subr.bf16.mxu0 0
  %451 = vmatpush2.bf16.msra.mxu0 %v379
  %452 = vmatprep.subr.bf16.mxu0 0
  %453 = vmatpush2.bf16.msra.mxu0 %v378
  %454 = vmatprep.subr.bf16.mxu0 0
  %455 = vmatpush2.bf16.msra.mxu0 %v377
  %456 = vmatprep.subr.bf16.mxu0 0
  %457 = vmatpush2.bf16.msra.mxu0 %v376
  %458 = vmatprep.subr.bf16.mxu0 0
  %459 = vmatpush2.bf16.msra.mxu0 %v375
  %460 = vmatprep.subr.bf16.mxu0 0
  %461 = vmatpush2.bf16.msra.mxu0 %v374
  %462 = vmatprep.mubr.bf16.mxu0 %v164
  %463 = vmatmul.mubr.bf16.gmra.mxu0 %v163
  %v464 = vpop.f32.mrf.mxu0
  %v465 = vadd.f32 %v236, %v464
  %v466 = vpop.f32.mrf.mxu0
  %v467 = vpop.f32.mrf.mxu0
  %v468 = vpop.f32.mrf.mxu0
  %469 = vdwg.mxu0
  %470 = vmatprep.subr.bf16.mxu0 0
  %471 = vmatpush1.bf16.msra.mxu0 %v389
  %472 = vmatprep.subr.bf16.mxu0 0
  %473 = vmatpush1.bf16.msra.mxu0 %v388
  %474 = vmatprep.subr.bf16.mxu0 0
  %475 = vmatpush1.bf16.msra.mxu0 %v387
  %476 = vmatprep.subr.bf16.mxu0 0
  %477 = vmatpush1.bf16.msra.mxu0 %v386
  %478 = vmatprep.subr.bf16.mxu0 0
  %479 = vmatpush1.bf16.msra.mxu0 %v385
  %480 = vmatprep.subr.bf16.mxu0 0
  %481 = vmatpush1.bf16.msra.mxu0 %v384
  %482 = vmatprep.subr.bf16.mxu0 0
  %483 = vmatpush1.bf16.msra.mxu0 %v383
  %484 = vmatprep.subr.bf16.mxu0 0
  %485 = vmatpush1.bf16.msra.mxu0 %v382
  %486 = vmatprep.subr.bf16.mxu0 0
  %487 = vmatpush2.bf16.msra.mxu0 %v397
  %488 = vmatprep.subr.bf16.mxu0 0
  %489 = vmatpush2.bf16.msra.mxu0 %v396
  %490 = vmatprep.subr.bf16.mxu0 0
  %491 = vmatpush2.bf16.msra.mxu0 %v395
  %492 = vmatprep.subr.bf16.mxu0 0
  %493 = vmatpush2.bf16.msra.mxu0 %v394
  %494 = vmatprep.subr.bf16.mxu0 0
  %495 = vmatpush2.bf16.msra.mxu0 %v393
  %496 = vmatprep.subr.bf16.mxu0 0
  %497 = vmatpush2.bf16.msra.mxu0 %v392
  %498 = vmatprep.subr.bf16.mxu0 0
  %499 = vmatpush2.bf16.msra.mxu0 %v391
  %500 = vmatprep.subr.bf16.mxu0 0
  %501 = vmatpush2.bf16.msra.mxu0 %v390
  %502 = vmatprep.mubr.bf16.mxu0 %v166
  %503 = vmatmul.mubr.bf16.gmra.mxu0 %v165
  %v504 = vpop.f32.mrf.mxu0
  %v505 = vadd.f32 %v465, %v504
  %v506 = vpop.f32.mrf.mxu0
  %v507 = vpop.f32.mrf.mxu0
  %v508 = vpop.f32.mrf.mxu0
  %509 = vdwg.mxu0
  %510 = vst [vmem:[%s6] sm:$0x3] %v505
  // Predicated region
  $region26: #{patchgan_forward.13} parent=0 // pred_check
    _
  $region27: #{patchgan_forward.13} parent=0 // pred_check_branch
    %512 = sbr.rel (0) target = $region29
  $region28: #{patchgan_forward.13} parent=0 // pred_region
    _
  $region29: #{patchgan_forward.13} parent=0 // pred_fallthru
    _
  // Predicated region
  $region30: #{patchgan_forward.13} parent=0 // pred_check
    _
  $region31: #{patchgan_forward.13} parent=0 // pred_check_branch
    %514 = sbr.rel (0) target = $region33
  $region32: #{patchgan_forward.13} parent=0 // pred_region
    _
  $region33: #{patchgan_forward.13} parent=0 // pred_fallthru
    _

</llo_original>
